<compile_context>
chip_gen: v7x
topology: tpu7x:2x2x1
jax: 0.10.0
libtpu: 0.0.40
codegen_flags: <defaults>
</compile_context>

<pallas_src>
import functools

import jax
import jax.numpy as jnp
from jax import lax
from jax.experimental import pallas as pl
from jax.experimental.pallas import tpu as pltpu

NEG_SLOPE = 0.1  # LeakyReLU(negative_slope=0.1) used throughout the block


def _leaky_relu(x):
    # max(x, a*x) == LeakyReLU(a) for 0 < a < 1; one vmul + one vmax.
    return jnp.maximum(x, NEG_SLOPE * x)


# ------------------------------ fused kernel --------------------------------

def _bottleneck_kernel(*refs, THO, stride, W, Wo, n_slabs, use_projection,
                       matmul_dtype):
    it = iter(refs)
    x_mid_ref = next(it)                               # (1, THI, W, Cin)
    x_top_ref = next(it)                               # (1, 1,   W, Cin)
    x_bot_ref = next(it) if stride == 1 else None      # (1, 1,   W, Cin)
    w1_ref = next(it)                                  # (Cin, Cmid)
    w2_ref = next(it)                                  # (9*Cmid, Cmid)
    w3_ref = next(it)                                  # (Cmid, Cout)
    wp_ref = next(it) if use_projection else None      # (Cin, Cout)
    o_ref = next(it)                                   # (1, THO, Wo, Cout)
    h1_ref = next(it)                                  # (IN_ROWS, W+2, Cmid)

    s = pl.program_id(1)
    THI = THO * stride                 # input rows owned by this slab
    IN_ROWS = (THO - 1) * stride + 3   # padded h1 rows needed by the 3x3
    Wp = W + 2
    Cin = x_mid_ref.shape[-1]
    Cmid = w1_ref.shape[-1]
    Cout = w3_ref.shape[-1]

    def mm(a, b):
        # MXU matmul; bf16 inputs by default, always f32 accumulation.
        if matmul_dtype is not None:
            a = a.astype(matmul_dtype)
            b = b.astype(matmul_dtype)
        return jnp.dot(a, b, preferred_element_type=jnp.float32)

    def conv1(rows_2d):                # (rows, Cin) -> (rows, Cmid), activated
        return _leaky_relu(mm(rows_2d, w1_ref[...]))

    # ---- conv1 directly into a zero-padded h1 scratch (padding AFTER the
    #      1x1: no xpad scratch, no x->xpad copy, no full-slab zero fill) -----
    # Only the border columns are ever padding; zero just those strips each
    # step (cheap, and megacore-safe since every core has its own scratch).
    zero_col = jnp.zeros((IN_ROWS, 1, Cmid), h1_ref.dtype)
    h1_ref[:, 0:1, :] = zero_col
    h1_ref[:, Wp - 1:Wp, :] = zero_col

    # Interior rows: conv1 of the THI input rows owned by this slab.
    xm = x_mid_ref[0]                                       # (THI, W, Cin)
    mid = conv1(xm.reshape(THI * W, Cin)).reshape(THI, W, Cmid)
    h1_ref[1:THI + 1, 1:W + 1, :] = mid.astype(h1_ref.dtype)

    zero_row = jnp.zeros((1, W, Cmid), h1_ref.dtype)

    # Top halo (padded row 0): zero at the image top edge, else conv1 of
    # image row s*THI - 1.
    @pl.when(s == 0)
    def _():
        h1_ref[0:1, 1:W + 1, :] = zero_row

    @pl.when(s > 0)
    def _():
        top = conv1(x_top_ref[0, 0]).reshape(1, W, Cmid)
        h1_ref[0:1, 1:W + 1, :] = top.astype(h1_ref.dtype)

    if stride == 1:
        # Bottom halo (padded row THI+1): zero at the image bottom edge, else
        # conv1 of image row (s+1)*THI.  stride=2 needs no bottom halo
        # (IN_ROWS == THI + 1 there), so that input/DMA is dropped entirely.
        @pl.when(s == n_slabs - 1)
        def _():
            h1_ref[THI + 1:THI + 2, 1:W + 1, :] = zero_row

        @pl.when(s < n_slabs - 1)
        def _():
            bot = conv1(x_bot_ref[0, 0]).reshape(1, W, Cmid)
            h1_ref[THI + 1:THI + 2, 1:W + 1, :] = bot.astype(h1_ref.dtype)

    # ---- conv2: 3x3 / stride as ONE im2col matmul (K = 9*Cmid) -------------
    # TODO(synk): build the im2col from 3 sublane-aligned ky row-groups plus
    # pltpu.roll for the kx shifts to move this assembly onto the idle XLU.
    patches = []
    for ky in range(3):
        for kx in range(3):
            if stride == 1:
                patch = h1_ref[ky:ky + THO, kx:kx + Wo, :]
            else:
                # Strided window read straight off the scratch ref (no value-
                # level double-strided slicing).
                # TODO(synk): a space-to-depth conv1 store would make these
                # reads fully contiguous.
                patch = h1_ref[pl.ds(ky, THO, stride), pl.ds(kx, Wo, stride), :]
            patches.append(patch)                           # (THO, Wo, Cmid)
    im2col = jnp.concatenate(patches, axis=-1).reshape(THO * Wo, 9 * Cmid)
    h2 = _leaky_relu(mm(im2col, w2_ref[...]))               # (THO*Wo, Cmid)

    # ---- conv3 (1x1 + LeakyReLU), shortcut, residual add, final LeakyReLU --
    # NOTE: conv3 carries its own LeakyReLU *before* the residual add
    # (PyTorch Conv2d(activation) semantics), so it cannot be fused with the
    # projection matmul without changing the module's math.
    h3 = _leaky_relu(mm(h2, w3_ref[...]))                   # (THO*Wo, Cout)

    if stride == 1:
        xs = xm                                             # (THO, Wo, Cin)
    else:
        xs = x_mid_ref[0, pl.ds(0, THO, stride), pl.ds(0, Wo, stride), :]
    xs = xs.reshape(THO * Wo, Cin)
    if use_projection:
        shortcut = mm(xs, wp_ref[...])                      # (THO*Wo, Cout)
    else:
        # Identity path (mirrors PyTorch): only shape-valid when Cin == Cout
        # (or broadcastable) -- the same constraint PyTorch hits at conv3 + X.
        shortcut = xs.astype(jnp.float32)

    out = _leaky_relu(h3 + shortcut)                        # (THO*Wo, Cout)
    # Natural NHWC block store: for Cout a multiple of 128 this is already
    # lane-dense, with no (THO, Wo*Cout) relayout.
    o_ref[0] = out.reshape(THO, Wo, Cout).astype(o_ref.dtype)


# ------------------------------- sizing helpers ------------------------------

def _vmem_capacity_bytes():
    """Per-core VMEM capacity; conservative 64 MiB (v7x) if unqueryable."""
    try:
        cap = getattr(pltpu.get_tpu_info(), "vmem_capacity_bytes", None)
        if cap:
            return int(cap)
    except Exception:
        pass
    return 64 * 1024 * 1024


def _slab_bytes(tho, stride, w, wo, cin, cmid, cout, x_item, w_item):
    """Rough per-step VMEM working set (double-buffered blocks + f32 temps)."""
    thi = tho * stride
    in_rows = (tho - 1) * stride + 3
    wp = w + 2
    n_halo = 2 if stride == 1 else 1
    io_blocks = 2 * x_item * (thi * w * cin + n_halo * w * cin)   # x blocks
    io_blocks += 2 * x_item * tho * wo * cout                     # out block
    weights = 2 * w_item * (cin * cmid + 9 * cmid * cmid
                            + cmid * cout + cin * cout)
    scratch = 4 * in_rows * wp * cmid                             # h1 (f32)
    temps = 4 * (thi * w * cmid                                   # conv1 out
                 + tho * wo * 9 * cmid                            # im2col
                 + tho * wo * (cmid + 2 * cout))                  # h2/h3/out
    return io_blocks + weights + scratch + temps


def _pick_tile_rows(n_batch, ho, stride, w, wo, cin, cmid, cout,
                    x_item, w_item, budget, max_tile_rows=None):
    """Largest output-row slab that fits the budget.

    Candidates are divisors of Ho that keep the flattened output rows
    8-aligned (or cover all of Ho).  When batch == 1 we insist on >= 2 slabs
    so both v7x TensorCores get work (dimension_semantics can only shard work
    that exists).
    """
    cands = [d for d in range(1, ho + 1)
             if ho % d == 0 and (d % 8 == 0 or d == ho)]
    if max_tile_rows is not None:
        limited = [d for d in cands if d <= max_tile_rows]
        cands = limited or [min(cands)]
    fitting = [d for d in cands
               if _slab_bytes(d, stride, w, wo, cin, cmid, cout,
                              x_item, w_item) <= budget]
    if not fitting:
        fitting = [min(cands)]
    if n_batch < 2:
        multi = [d for d in fitting if d < ho]
        if multi:
            return max(multi)
    return max(fitting)


# --------------------------------- wrapper -----------------------------------

def resnet_bottleneck_block(x_nchw, params, stride=1,
                            matmul_dtype=jnp.bfloat16, max_tile_rows=None):
    """Fused Pallas forward of ResNetBottleneckBlock (NCHW in / NCHW out).

    params: {"w1": (Cin, Cmid), "w2": (3, 3, Cmid, Cmid),
             "w3": (Cmid, Cout), "wp": (Cin, Cout)}   (all bias-free)
    matmul_dtype: dtype fed to the MXU (default bf16, f32 accumulation);
      pass None for exact f32 operands.
    """
    w1, w2, w3 = params["w1"], params["w2"], params["w3"]
    n, cin, h, w = x_nchw.shape
    cmid = w1.shape[1]
    cout = w3.shape[1]
    assert w2.shape == (3, 3, cmid, cmid), w2.shape
    assert stride in (1, 2), "only stride 1 or 2 supported"
    if stride == 2:
        assert h % 2 == 0 and w % 2 == 0, "stride=2 slab tiling needs even H, W"

    ho = (h + 2 - 3) // stride + 1
    wo = (w + 2 - 3) // stride + 1

    # Shortcut gate mirrors the PyTorch module exactly: it compares x against
    # conv2's output shape, whose channel count is Cmid (the module's
    # `out_channels`), not the block output Cout.  As in PyTorch, the identity
    # path is only shape-valid when Cin == Cout (or broadcastable).
    use_projection = (h, w) != (ho, wo) or cin != cmid

    # TODO(synk): when chaining blocks, accept/return NHWC directly and drop
    # these transposes (each is an extra HBM pass over the tensor).
    x = jnp.transpose(x_nchw, (0, 2, 3, 1))               # NHWC, C on lanes

    wdt = matmul_dtype if matmul_dtype is not None else w1.dtype
    w1c = w1.astype(wdt)
    w2r = w2.reshape(9 * cmid, cmid).astype(wdt)           # im2col weight layout
    w3c = w3.astype(wdt)

    cap = _vmem_capacity_bytes()
    # Bigger slabs on 128 MiB parts (v5e/v6e); conservative on v7x's 64 MiB.
    budget = 20 * 1024 * 1024 if cap >= 96 * 1024 * 1024 else 10 * 1024 * 1024

    x_item = x.dtype.itemsize
    w_item = jnp.dtype(wdt).itemsize
    tho = _pick_tile_rows(n, ho, stride, w, wo, cin, cmid, cout,
                          x_item, w_item, budget, max_tile_rows)
    thi = tho * stride
    n_slabs = ho // tho
    in_rows = (tho - 1) * stride + 3
    assert ho % tho == 0 and h % thi == 0

    kernel = functools.partial(
        _bottleneck_kernel, THO=tho, stride=stride, W=w, Wo=wo,
        n_slabs=n_slabs, use_projection=use_projection,
        matmul_dtype=matmul_dtype)

    x_mid_spec = pl.BlockSpec((1, thi, w, cin), lambda b, s: (b, s, 0, 0))
    # 1-row halo blocks (block index == row index since the row-block is 1).
    x_top_spec = pl.BlockSpec(
        (1, 1, w, cin), lambda b, s: (b, jnp.maximum(s * thi - 1, 0), 0, 0))

    def w_spec(shape):
        # TODO(synk): single-buffer these constant-index weight blocks
        # (pipeline_mode=pl.Buffered(1)) to reclaim VMEM at 1024-channel scale.
        return pl.BlockSpec(shape, lambda b, s: (0,) * len(shape))

    in_specs = [x_mid_spec, x_top_spec]
    inputs = [x, x]
    if stride == 1:                         # stride=2 never reads a bottom halo
        in_specs.append(pl.BlockSpec(
            (1, 1, w, cin),
            lambda b, s: (b, jnp.minimum((s + 1) * thi, h - 1), 0, 0)))
        inputs.append(x)
    in_specs += [w_spec((cin, cmid)), w_spec((9 * cmid, cmid)),
                 w_spec((cmid, cout))]
    inputs += [w1c, w2r, w3c]
    if use_projection:
        in_specs.append(w_spec((cin, cout)))
        inputs.append(params["wp"].astype(wdt))

    est = _slab_bytes(tho, stride, w, wo, cin, cmid, cout, x_item, w_item)
    # Never request the entire physical VMEM (v7x has only 64 MiB per core).
    vmem_limit = int(min(cap * 3 // 4, max(16 * 1024 * 1024, 3 * est)))

    out = pl.pallas_call(
        kernel,
        out_shape=jax.ShapeDtypeStruct((n, ho, wo, cout), x.dtype),
        grid_spec=pltpu.PrefetchScalarGridSpec(
            num_scalar_prefetch=0,
            grid=(n, n_slabs),
            in_specs=in_specs,
            out_specs=pl.BlockSpec((1, tho, wo, cout),
                                   lambda b, s: (b, s, 0, 0)),
            # TODO(synk): keep h1 in matmul_dtype (bf16) to halve scratch and
            # im2col VMEM at ResNet-scale channel counts.
            scratch_shapes=[pltpu.VMEM((in_rows, w + 2, cmid), jnp.float32)]),
        compiler_params=pltpu.CompilerParams(
            dimension_semantics=("parallel", "parallel"),
            vmem_limit_bytes=vmem_limit),
    )(*inputs)

    return jnp.transpose(out, (0, 3, 1, 2))                # NHWC -> NCHW


# --------------------------- pure-JAX reference -----------------------------

def _ref_block(x_nchw, params, stride=1):
    def conv(x, w_hwio, s, padding):
        return lax.conv_general_dilated(
            x, w_hwio, (s, s), padding,
            dimension_numbers=("NHWC", "HWIO", "NHWC"),
            precision=lax.Precision.HIGHEST)

    w1, w2, w3, wp = params["w1"], params["w2"], params["w3"], params["wp"]
    cin, cmid = w1.shape
    cout = w3.shape[1]
    x = jnp.transpose(x_nchw, (0, 2, 3, 1))
    h1 = _leaky_relu(conv(x, w1.reshape(1, 1, cin, cmid), 1, "VALID"))
    h2 = _leaky_relu(conv(h1, w2, stride, [(1, 1), (1, 1)]))
    h3 = _leaky_relu(conv(h2, w3.reshape(1, 1, cmid, cout), 1, "VALID"))
    # Same gate as the PyTorch module (compares against conv2's shape).
    if x.shape[1:3] != h2.shape[1:3] or cin != cmid:
        shortcut = conv(x, wp.reshape(1, 1, cin, cout), stride, "VALID")
    else:
        shortcut = x
    out = _leaky_relu(h3 + shortcut)
    return jnp.transpose(out, (0, 3, 1, 2))


# --------------------------------- main -------------------------------------

if __name__ == "__main__":
    # in_channels=4, out_channels=8, stride=1 -> block output channels 32
    N, CIN, H, W_ = 2, 4, 16, 16
    CMID = 8
    COUT = 4 * CMID

    key = jax.random.PRNGKey(0)
    kx_, k1, k2, k3, kp = jax.random.split(key, 5)

    def bf16_representable(v):
        # Snap test data to bf16-representable values so the check is
        # insensitive to whether any matmul path (the kernel's MXU or the XLA
        # conv reference) rounds its inputs to bf16; only accumulation-order
        # and intermediate-rounding noise remains.
        return v.astype(jnp.bfloat16).astype(jnp.float32)

    def kaiming_uniform(k, shape, fan_in):
        bound = 1.0 / jnp.sqrt(jnp.float32(fan_in))
        return bf16_representable(
            jax.random.uniform(k, shape, jnp.float32, -bound, bound))

    params = {
        "w1": kaiming_uniform(k1, (CIN, CMID), CIN),              # conv1 1x1
        "w2": kaiming_uniform(k2, (3, 3, CMID, CMID), 9 * CMID),  # conv2 3x3
        "w3": kaiming_uniform(k3, (CMID, COUT), CMID),            # conv3 1x1
        "wp": kaiming_uniform(kp, (CIN, COUT), CIN),              # projection
    }
    x = bf16_representable(jax.random.normal(kx_, (N, CIN, H, W_), jnp.float32))

    ref = jax.block_until_ready(_ref_block(x, params, stride=1))

    # Default configuration (bf16 MXU inputs, f32 accumulation).
    out = jax.block_until_ready(resnet_bottleneck_block(x, params, stride=1))
    assert out.shape == (N, COUT, H, W_), out.shape
    err = float(jnp.max(jnp.abs(out - ref)))
    assert jnp.allclose(out, ref, atol=5e-2, rtol=5e-2), err

    # Force two row-slabs to exercise the halo-row (padding-after-conv1) path.
    out2 = jax.block_until_ready(
        resnet_bottleneck_block(x, params, stride=1, max_tile_rows=8))
    err2 = float(jnp.max(jnp.abs(out2 - ref)))
    assert jnp.allclose(out2, ref, atol=5e-2, rtol=5e-2), err2

    print("KERNEL_OK")
</pallas_src>

<mosaic_0001>
module attributes {stable_mosaic.version = 11 : i64} {
  func.func @_bottleneck_kernel(%arg0: i32, %arg1: i32, %arg2: memref<1x16x16x4xf32, #tpu.memory_space<vmem>>, %arg3: memref<1x1x16x4xf32, #tpu.memory_space<vmem>>, %arg4: memref<1x1x16x4xf32, #tpu.memory_space<vmem>>, %arg5: memref<4x8xbf16, #tpu.memory_space<vmem>>, %arg6: memref<72x8xbf16, #tpu.memory_space<vmem>>, %arg7: memref<8x32xbf16, #tpu.memory_space<vmem>>, %arg8: memref<4x32xbf16, #tpu.memory_space<vmem>>, %arg9: memref<1x16x16x32xf32, #tpu.memory_space<vmem>>, %arg10: memref<18x18x8xf32, #tpu.memory_space<vmem>>) attributes {dimension_semantics = [#tpu.dimension_semantics<parallel>, #tpu.dimension_semantics<parallel>], iteration_bounds = array<i64: 2, 1>, scalar_prefetch = 0 : i64, scratch_operands = 1 : i64, tpu.core_type = #tpu.core_type<tc>, window_params = [{transform_indices = @transform_0, window_bounds = array<i64: 1, 16, 16, 4>}, {transform_indices = @transform_1, window_bounds = array<i64: 1, 1, 16, 4>}, {transform_indices = @transform_2, window_bounds = array<i64: 1, 1, 16, 4>}, {pipeline_mode = #tpu.pipeline_mode<synchronous>, transform_indices = @transform_3, window_bounds = array<i64: 4, 8>}, {pipeline_mode = #tpu.pipeline_mode<synchronous>, transform_indices = @transform_4, window_bounds = array<i64: 72, 8>}, {pipeline_mode = #tpu.pipeline_mode<synchronous>, transform_indices = @transform_5, window_bounds = array<i64: 8, 32>}, {pipeline_mode = #tpu.pipeline_mode<synchronous>, transform_indices = @transform_6, window_bounds = array<i64: 4, 32>}, {transform_indices = @transform_7, window_bounds = array<i64: 1, 16, 16, 32>}]} {
    %cst = arith.constant 0.000000e+00 : f32
    %0 = vector.broadcast %cst : f32 to vector<18x1x8xf32>
    %c0 = arith.constant 0 : index
    %c0_0 = arith.constant 0 : index
    %c0_1 = arith.constant 0 : index
    %1 = vector.load %arg10[%c0, %c0_0, %c0_1] : memref<18x18x8xf32, #tpu.memory_space<vmem>>, vector<18x1x8xf32>
    tpu.vector_store %arg10[%c0, %c0_0, %c0_1], %0 {strides = array<i32>} : memref<18x18x8xf32, #tpu.memory_space<vmem>>, vector<18x1x8xf32>,
    %c0_2 = arith.constant 0 : index
    %c17 = arith.constant 17 : index
    %c0_3 = arith.constant 0 : index
    %2 = vector.load %arg10[%c0_2, %c17, %c0_3] : memref<18x18x8xf32, #tpu.memory_space<vmem>>, vector<18x1x8xf32>
    tpu.vector_store %arg10[%c0_2, %c17, %c0_3], %0 {strides = array<i32>} : memref<18x18x8xf32, #tpu.memory_space<vmem>>, vector<18x1x8xf32>,
    %c0_4 = arith.constant 0 : index
    %c0_5 = arith.constant 0 : index
    %c0_6 = arith.constant 0 : index
    %c0_7 = arith.constant 0 : index
    %3 = vector.load %arg2[%c0_4, %c0_5, %c0_6, %c0_7] : memref<1x16x16x4xf32, #tpu.memory_space<vmem>>, vector<1x16x16x4xf32>
    %4 = vector.shape_cast %3 : vector<1x16x16x4xf32> to vector<16x16x4xf32>
    %5 = vector.shape_cast %4 : vector<16x16x4xf32> to vector<256x4xf32>
    %c0_8 = arith.constant 0 : index
    %c0_9 = arith.constant 0 : index
    %6 = vector.load %arg5[%c0_8, %c0_9] : memref<4x8xbf16, #tpu.memory_space<vmem>>, vector<4x8xbf16>
    %7 = arith.truncf %5 : vector<256x4xf32> to vector<256x4xbf16>
    %cst_10 = arith.constant dense<0.000000e+00> : vector<256x8xf32>
    %8 = tpu.matmul %7, %6, %cst_10 {dimension_numbers = #tpu.dot_dimension_numbers<[1], [0], [0], [1], [0, 0, 1, 1], [], []>} : vector<256x4xbf16>, vector<4x8xbf16>, vector<256x8xf32> -> vector<256x8xf32>
    %cst_11 = arith.constant 1.000000e-01 : f32
    %9 = vector.broadcast %cst_11 : f32 to vector<256x8xf32>
    %10 = arith.mulf %9, %8 : vector<256x8xf32>
    %11 = arith.maximumf %8, %10 : vector<256x8xf32>
    %12 = vector.shape_cast %11 : vector<256x8xf32> to vector<16x16x8xf32>
    %c1 = arith.constant 1 : index
    %c1_12 = arith.constant 1 : index
    %c0_13 = arith.constant 0 : index
    %13 = vector.load %arg10[%c1, %c1_12, %c0_13] : memref<18x18x8xf32, #tpu.memory_space<vmem>>, vector<16x16x8xf32>
    tpu.vector_store %arg10[%c1, %c1_12, %c0_13], %12 {strides = array<i32>} : memref<18x18x8xf32, #tpu.memory_space<vmem>>, vector<16x16x8xf32>,
    %cst_14 = arith.constant 0.000000e+00 : f32
    %14 = vector.broadcast %cst_14 : f32 to vector<1x16x8xf32>
    %c0_i32 = arith.constant 0 : i32
    %15 = arith.cmpi eq, %arg1, %c0_i32 : i32
    %16 = arith.extui %15 : i1 to i32
    %c0_i32_15 = arith.constant 0 : i32
    %17 = arith.cmpi ne, %16, %c0_i32_15 : i32
    scf.if %17 {
      %c0_64 = arith.constant 0 : index
      %c1_65 = arith.constant 1 : index
      %c0_66 = arith.constant 0 : index
      %62 = vector.load %arg10[%c0_64, %c1_65, %c0_66] : memref<18x18x8xf32, #tpu.memory_space<vmem>>, vector<1x16x8xf32>
      tpu.vector_store %arg10[%c0_64, %c1_65, %c0_66], %14 {strides = array<i32>} : memref<18x18x8xf32, #tpu.memory_space<vmem>>, vector<1x16x8xf32>,
    } else {
    }
    %c0_i32_16 = arith.constant 0 : i32
    %18 = arith.cmpi sgt, %arg1, %c0_i32_16 : i32
    %19 = arith.extui %18 : i1 to i32
    %c0_i32_17 = arith.constant 0 : i32
    %20 = arith.cmpi ne, %19, %c0_i32_17 : i32
    scf.if %20 {
      %c0_64 = arith.constant 0 : index
      %c0_65 = arith.constant 0 : index
      %c0_66 = arith.constant 0 : index
      %c0_67 = arith.constant 0 : index
      %62 = vector.load %arg3[%c0_64, %c0_65, %c0_66, %c0_67] : memref<1x1x16x4xf32, #tpu.memory_space<vmem>>, vector<1x1x16x4xf32>
      %63 = vector.shape_cast %62 : vector<1x1x16x4xf32> to vector<16x4xf32>
      %c0_68 = arith.constant 0 : index
      %c0_69 = arith.constant 0 : index
      %64 = vector.load %arg5[%c0_68, %c0_69] : memref<4x8xbf16, #tpu.memory_space<vmem>>, vector<4x8xbf16>
      %65 = arith.truncf %63 : vector<16x4xf32> to vector<16x4xbf16>
      %cst_70 = arith.constant dense<0.000000e+00> : vector<16x8xf32>
      %66 = tpu.matmul %65, %64, %cst_70 {dimension_numbers = #tpu.dot_dimension_numbers<[1], [0], [0], [1], [0, 0, 1, 1], [], []>} : vector<16x4xbf16>, vector<4x8xbf16>, vector<16x8xf32> -> vector<16x8xf32>
      %cst_71 = arith.constant 1.000000e-01 : f32
      %67 = vector.broadcast %cst_71 : f32 to vector<16x8xf32>
      %68 = arith.mulf %67, %66 : vector<16x8xf32>
      %69 = arith.maximumf %66, %68 : vector<16x8xf32>
      %70 = vector.shape_cast %69 : vector<16x8xf32> to vector<1x16x8xf32>
      %c0_72 = arith.constant 0 : index
      %c1_73 = arith.constant 1 : index
      %c0_74 = arith.constant 0 : index
      %71 = vector.load %arg10[%c0_72, %c1_73, %c0_74] : memref<18x18x8xf32, #tpu.memory_space<vmem>>, vector<1x16x8xf32>
      tpu.vector_store %arg10[%c0_72, %c1_73, %c0_74], %70 {strides = array<i32>} : memref<18x18x8xf32, #tpu.memory_space<vmem>>, vector<1x16x8xf32>,
    } else {
    }
    %c0_i32_18 = arith.constant 0 : i32
    %21 = arith.cmpi eq, %arg1, %c0_i32_18 : i32
    %22 = arith.extui %21 : i1 to i32
    %c0_i32_19 = arith.constant 0 : i32
    %23 = arith.cmpi ne, %22, %c0_i32_19 : i32
    scf.if %23 {
      %c17_64 = arith.constant 17 : index
      %c1_65 = arith.constant 1 : index
      %c0_66 = arith.constant 0 : index
      %62 = vector.load %arg10[%c17_64, %c1_65, %c0_66] : memref<18x18x8xf32, #tpu.memory_space<vmem>>, vector<1x16x8xf32>
      tpu.vector_store %arg10[%c17_64, %c1_65, %c0_66], %14 {strides = array<i32>} : memref<18x18x8xf32, #tpu.memory_space<vmem>>, vector<1x16x8xf32>,
    } else {
    }
    %c0_i32_20 = arith.constant 0 : i32
    %24 = arith.cmpi slt, %arg1, %c0_i32_20 : i32
    %25 = arith.extui %24 : i1 to i32
    %c0_i32_21 = arith.constant 0 : i32
    %26 = arith.cmpi ne, %25, %c0_i32_21 : i32
    scf.if %26 {
      %c0_64 = arith.constant 0 : index
      %c0_65 = arith.constant 0 : index
      %c0_66 = arith.constant 0 : index
      %c0_67 = arith.constant 0 : index
      %62 = vector.load %arg4[%c0_64, %c0_65, %c0_66, %c0_67] : memref<1x1x16x4xf32, #tpu.memory_space<vmem>>, vector<1x1x16x4xf32>
      %63 = vector.shape_cast %62 : vector<1x1x16x4xf32> to vector<16x4xf32>
      %c0_68 = arith.constant 0 : index
      %c0_69 = arith.constant 0 : index
      %64 = vector.load %arg5[%c0_68, %c0_69] : memref<4x8xbf16, #tpu.memory_space<vmem>>, vector<4x8xbf16>
      %65 = arith.truncf %63 : vector<16x4xf32> to vector<16x4xbf16>
      %cst_70 = arith.constant dense<0.000000e+00> : vector<16x8xf32>
      %66 = tpu.matmul %65, %64, %cst_70 {dimension_numbers = #tpu.dot_dimension_numbers<[1], [0], [0], [1], [0, 0, 1, 1], [], []>} : vector<16x4xbf16>, vector<4x8xbf16>, vector<16x8xf32> -> vector<16x8xf32>
      %cst_71 = arith.constant 1.000000e-01 : f32
      %67 = vector.broadcast %cst_71 : f32 to vector<16x8xf32>
      %68 = arith.mulf %67, %66 : vector<16x8xf32>
      %69 = arith.maximumf %66, %68 : vector<16x8xf32>
      %70 = vector.shape_cast %69 : vector<16x8xf32> to vector<1x16x8xf32>
      %c17_72 = arith.constant 17 : index
      %c1_73 = arith.constant 1 : index
      %c0_74 = arith.constant 0 : index
      %71 = vector.load %arg10[%c17_72, %c1_73, %c0_74] : memref<18x18x8xf32, #tpu.memory_space<vmem>>, vector<1x16x8xf32>
      tpu.vector_store %arg10[%c17_72, %c1_73, %c0_74], %70 {strides = array<i32>} : memref<18x18x8xf32, #tpu.memory_space<vmem>>, vector<1x16x8xf32>,
    } else {
    }
    %c0_22 = arith.constant 0 : index
    %c0_23 = arith.constant 0 : index
    %c0_24 = arith.constant 0 : index
    %27 = vector.load %arg10[%c0_22, %c0_23, %c0_24] : memref<18x18x8xf32, #tpu.memory_space<vmem>>, vector<16x16x8xf32>
    %c0_25 = arith.constant 0 : index
    %c1_26 = arith.constant 1 : index
    %c0_27 = arith.constant 0 : index
    %28 = vector.load %arg10[%c0_25, %c1_26, %c0_27] : memref<18x18x8xf32, #tpu.memory_space<vmem>>, vector<16x16x8xf32>
    %c0_28 = arith.constant 0 : index
    %c2 = arith.constant 2 : index
    %c0_29 = arith.constant 0 : index
    %29 = vector.load %arg10[%c0_28, %c2, %c0_29] : memref<18x18x8xf32, #tpu.memory_space<vmem>>, vector<16x16x8xf32>
    %c1_30 = arith.constant 1 : index
    %c0_31 = arith.constant 0 : index
    %c0_32 = arith.constant 0 : index
    %30 = vector.load %arg10[%c1_30, %c0_31, %c0_32] : memref<18x18x8xf32, #tpu.memory_space<vmem>>, vector<16x16x8xf32>
    %c1_33 = arith.constant 1 : index
    %c1_34 = arith.constant 1 : index
    %c0_35 = arith.constant 0 : index
    %31 = vector.load %arg10[%c1_33, %c1_34, %c0_35] : memref<18x18x8xf32, #tpu.memory_space<vmem>>, vector<16x16x8xf32>
    %c1_36 = arith.constant 1 : index
    %c2_37 = arith.constant 2 : index
    %c0_38 = arith.constant 0 : index
    %32 = vector.load %arg10[%c1_36, %c2_37, %c0_38] : memref<18x18x8xf32, #tpu.memory_space<vmem>>, vector<16x16x8xf32>
    %c2_39 = arith.constant 2 : index
    %c0_40 = arith.constant 0 : index
    %c0_41 = arith.constant 0 : index
    %33 = vector.load %arg10[%c2_39, %c0_40, %c0_41] : memref<18x18x8xf32, #tpu.memory_space<vmem>>, vector<16x16x8xf32>
    %c2_42 = arith.constant 2 : index
    %c1_43 = arith.constant 1 : index
    %c0_44 = arith.constant 0 : index
    %34 = vector.load %arg10[%c2_42, %c1_43, %c0_44] : memref<18x18x8xf32, #tpu.memory_space<vmem>>, vector<16x16x8xf32>
    %c2_45 = arith.constant 2 : index
    %c2_46 = arith.constant 2 : index
    %c0_47 = arith.constant 0 : index
    %35 = vector.load %arg10[%c2_45, %c2_46, %c0_47] : memref<18x18x8xf32, #tpu.memory_space<vmem>>, vector<16x16x8xf32>
    %36 = tpu.concatenate %27, %28, %29, %30, %31, %32, %33, %34, %35 in 2 : vector<16x16x8xf32>, vector<16x16x8xf32>, vector<16x16x8xf32>, vector<16x16x8xf32>, vector<16x16x8xf32>, vector<16x16x8xf32>, vector<16x16x8xf32>, vector<16x16x8xf32>, vector<16x16x8xf32> -> vector<16x16x72xf32>
    %37 = vector.shape_cast %36 : vector<16x16x72xf32> to vector<256x72xf32>
    %c0_48 = arith.constant 0 : index
    %c0_49 = arith.constant 0 : index
    %38 = vector.load %arg6[%c0_48, %c0_49] : memref<72x8xbf16, #tpu.memory_space<vmem>>, vector<72x8xbf16>
    %39 = arith.truncf %37 : vector<256x72xf32> to vector<256x72xbf16>
    %cst_50 = arith.constant dense<0.000000e+00> : vector<256x8xf32>
    %40 = tpu.matmul %39, %38, %cst_50 {dimension_numbers = #tpu.dot_dimension_numbers<[1], [0], [0], [1], [0, 0, 1, 1], [], []>} : vector<256x72xbf16>, vector<72x8xbf16>, vector<256x8xf32> -> vector<256x8xf32>
    %cst_51 = arith.constant 1.000000e-01 : f32
    %41 = vector.broadcast %cst_51 : f32 to vector<256x8xf32>
    %42 = arith.mulf %41, %40 : vector<256x8xf32>
    %43 = arith.maximumf %40, %42 : vector<256x8xf32>
    %c0_52 = arith.constant 0 : index
    %c0_53 = arith.constant 0 : index
    %44 = vector.load %arg7[%c0_52, %c0_53] : memref<8x32xbf16, #tpu.memory_space<vmem>>, vector<8x32xbf16>
    %45 = arith.truncf %43 : vector<256x8xf32> to vector<256x8xbf16>
    %cst_54 = arith.constant dense<0.000000e+00> : vector<256x32xf32>
    %46 = tpu.matmul %45, %44, %cst_54 {dimension_numbers = #tpu.dot_dimension_numbers<[1], [0], [0], [1], [0, 0, 1, 1], [], []>} : vector<256x8xbf16>, vector<8x32xbf16>, vector<256x32xf32> -> vector<256x32xf32>
    %cst_55 = arith.constant 1.000000e-01 : f32
    %47 = vector.broadcast %cst_55 : f32 to vector<256x32xf32>
    %48 = arith.mulf %47, %46 : vector<256x32xf32>
    %49 = arith.maximumf %46, %48 : vector<256x32xf32>
    %50 = vector.shape_cast %4 : vector<16x16x4xf32> to vector<256x4xf32>
    %c0_56 = arith.constant 0 : index
    %c0_57 = arith.constant 0 : index
    %51 = vector.load %arg8[%c0_56, %c0_57] : memref<4x32xbf16, #tpu.memory_space<vmem>>, vector<4x32xbf16>
    %52 = arith.truncf %50 : vector<256x4xf32> to vector<256x4xbf16>
    %cst_58 = arith.constant dense<0.000000e+00> : vector<256x32xf32>
    %53 = tpu.matmul %52, %51, %cst_58 {dimension_numbers = #tpu.dot_dimension_numbers<[1], [0], [0], [1], [0, 0, 1, 1], [], []>} : vector<256x4xbf16>, vector<4x32xbf16>, vector<256x32xf32> -> vector<256x32xf32>
    %54 = arith.addf %49, %53 : vector<256x32xf32>
    %cst_59 = arith.constant 1.000000e-01 : f32
    %55 = vector.broadcast %cst_59 : f32 to vector<256x32xf32>
    %56 = arith.mulf %55, %54 : vector<256x32xf32>
    %57 = arith.maximumf %54, %56 : vector<256x32xf32>
    %58 = vector.shape_cast %57 : vector<256x32xf32> to vector<16x16x32xf32>
    %c0_60 = arith.constant 0 : index
    %c0_61 = arith.constant 0 : index
    %c0_62 = arith.constant 0 : index
    %c0_63 = arith.constant 0 : index
    %59 = vector.load %arg9[%c0_60, %c0_61, %c0_62, %c0_63] : memref<1x16x16x32xf32, #tpu.memory_space<vmem>>, vector<1x16x16x32xf32>
    %60 = vector.shape_cast %59 : vector<1x16x16x32xf32> to vector<16x16x32xf32>
    %61 = vector.shape_cast %58 : vector<16x16x32xf32> to vector<1x16x16x32xf32>
    tpu.vector_store %arg9[%c0_60, %c0_61, %c0_62, %c0_63], %61 {strides = array<i32>} : memref<1x16x16x32xf32, #tpu.memory_space<vmem>>, vector<1x16x16x32xf32>,
    return
  }
  func.func @transform_0(%arg0: i32, %arg1: i32) -> (i32, i32, i32, i32) {
    %c0_i32 = arith.constant 0 : i32
    %c0_i32_0 = arith.constant 0 : i32
    %c0_i32_1 = arith.constant 0 : i32
    return %arg0, %arg1, %c0_i32, %c0_i32_0 : i32, i32, i32, i32
  }
  func.func @transform_1(%arg0: i32, %arg1: i32) -> (i32, i32, i32, i32) {
    %c16_i32 = arith.constant 16 : i32
    %0 = arith.muli %arg1, %c16_i32 : i32
    %c1_i32 = arith.constant 1 : i32
    %1 = arith.subi %0, %c1_i32 : i32
    %c0_i32 = arith.constant 0 : i32
    %2 = arith.maxsi %1, %c0_i32 : i32
    %c0_i32_0 = arith.constant 0 : i32
    %c0_i32_1 = arith.constant 0 : i32
    %c0_i32_2 = arith.constant 0 : i32
    return %arg0, %2, %c0_i32_0, %c0_i32_1 : i32, i32, i32, i32
  }
  func.func @transform_2(%arg0: i32, %arg1: i32) -> (i32, i32, i32, i32) {
    %c1_i32 = arith.constant 1 : i32
    %0 = arith.addi %arg1, %c1_i32 : i32
    %c16_i32 = arith.constant 16 : i32
    %1 = arith.muli %0, %c16_i32 : i32
    %c15_i32 = arith.constant 15 : i32
    %2 = arith.minsi %1, %c15_i32 : i32
    %c0_i32 = arith.constant 0 : i32
    %c0_i32_0 = arith.constant 0 : i32
    %c0_i32_1 = arith.constant 0 : i32
    return %arg0, %2, %c0_i32, %c0_i32_0 : i32, i32, i32, i32
  }
  func.func @transform_3(%arg0: i32, %arg1: i32) -> (i32, i32) {
    %c0_i32 = arith.constant 0 : i32
    %c0_i32_0 = arith.constant 0 : i32
    %c0_i32_1 = arith.constant 0 : i32
    return %c0_i32, %c0_i32_0 : i32, i32
  }
  func.func @transform_4(%arg0: i32, %arg1: i32) -> (i32, i32) {
    %c0_i32 = arith.constant 0 : i32
    %c0_i32_0 = arith.constant 0 : i32
    %c0_i32_1 = arith.constant 0 : i32
    return %c0_i32, %c0_i32_0 : i32, i32
  }
  func.func @transform_5(%arg0: i32, %arg1: i32) -> (i32, i32) {
    %c0_i32 = arith.constant 0 : i32
    %c0_i32_0 = arith.constant 0 : i32
    %c0_i32_1 = arith.constant 0 : i32
    return %c0_i32, %c0_i32_0 : i32, i32
  }
  func.func @transform_6(%arg0: i32, %arg1: i32) -> (i32, i32) {
    %c0_i32 = arith.constant 0 : i32
    %c0_i32_0 = arith.constant 0 : i32
    %c0_i32_1 = arith.constant 0 : i32
    return %c0_i32, %c0_i32_0 : i32, i32
  }
  func.func @transform_7(%arg0: i32, %arg1: i32) -> (i32, i32, i32, i32) {
    %c0_i32 = arith.constant 0 : i32
    %c0_i32_0 = arith.constant 0 : i32
    %c0_i32_1 = arith.constant 0 : i32
    return %arg0, %arg1, %c0_i32, %c0_i32_0 : i32, i32, i32, i32
  }
}

</mosaic_0001>

<llo_original>
// kernel: tpu_custom_call.1
$region0: #{tpu_custom_call.1}
  #allocation0 [shape = 'u32[]', space=smem, size = 0x4, offset = 0x4, fixed_abs, tag = 'smem constant byte address 0x4 - core index']
  #allocation1 [shape = 'u32[144,128]{1,0:T(1,128)}', space=vmem, size = 0x12000, scoped, tag = 'internal scratch']
  #allocation2 [shape = 'f32[18,18,8]{2,1,0:T(8,128)}', space=vmem, size = 0x36000, scoped, tag = 'scratch operand']
  %s0 = inlined_call_operand.vmem [shape: f32[2,16,16,4], index: 0, kind: input, shape index: {}]
  %s1 = inlined_call_operand.vmem [shape: f32[2,16,16,4], index: 1, kind: input, shape index: {}]
  %s2 = inlined_call_operand.vmem [shape: f32[2,16,16,4], index: 2, kind: input, shape index: {}]
  %s3 = inlined_call_operand.vmem [shape: bf16[4,8], index: 3, kind: input, shape index: {}]
  %s4 = inlined_call_operand.vmem [shape: bf16[72,8], index: 4, kind: input, shape index: {}]
  %s5 = inlined_call_operand.vmem [shape: bf16[8,32], index: 5, kind: input, shape index: {}]
  %s6 = inlined_call_operand.vmem [shape: bf16[4,32], index: 6, kind: input, shape index: {}]
  %s7 = inlined_call_operand.hbm [shape: f32[2,16,16,32], index: 7, kind: output, shape index: {}]
  %s8 = sld [smem:[#allocation0]]
  $region77: #{tpu_custom_call.1} parent=0
    _
  %s10 = ssub.s32 1, %s8
  %s11 = scalar_select 0, %s10, %s8
  $region1: #{tpu_custom_call.1} parent=0
    #allocation3 [shape = 'u8[262144]{0}', space=vmem, size = 0x40000, scoped, tag = 'output window, operand 0']
    #allocation4 [shape = 's32[2]{0}', space=sflag, size = 0x8, scoped, tag = 'scoped memory for tpu_custom_call.1']
    %12 = vsyncpa [#allocation4], 0
    %s13 = scalar_lea.sflag [#allocation4], 1
    %14 = vsyncpa %s13, 0
    loop: start=0, step=1, limit=4
    $region2: #{tpu_custom_call.1} parent=1 // loop_pre_header
      _
    $region3: #{tpu_custom_call.1} parent=1 // loop_header
      %s16 = sphi 0, %s20
      %p17 = scmp.ge.s32.totalorder %s16, 4
      %s23 = sphi 0, %s35
      %s24 = sphi 0, %s31
      %s25 = sphi 0, %s23
      %s26 = sphi 0, %s24
      %s27 = sphi 0, %s25
      %s28 = sphi 0, %s26
      %s40 = sphi 0, %s42
      %s43 = sphi 0, %s40
      %s44 = sphi 0, %s43
      %s60 = sphi 0, %s44
      %s76 = sphi 0, %s78
      %s79 = sphi 0, %s76
      %s80 = sphi 0, %s79
      %s96 = sphi 0, %s80
      %s112 = sphi 0, %s114
      %s115 = sphi 0, %s112
      %s116 = sphi 0, %s115
      %s132 = sphi 0, %s116
      %s136 = sphi 0, %s136
      %s138 = sphi 0, %s136
      %s139 = sphi 0, %s138
      %s153 = sphi 0, %s139
      %s157 = sphi 0, %s157
      %s159 = sphi 0, %s157
      %s160 = sphi 0, %s159
      %s174 = sphi 0, %s160
      %s178 = sphi 0, %s178
      %s180 = sphi 0, %s178
      %s181 = sphi 0, %s180
      %s195 = sphi 0, %s181
      %s199 = sphi 0, %s199
      %s201 = sphi 0, %s199
      %s202 = sphi 0, %s201
      %s216 = sphi 0, %s202
      %s224 = sphi 0, %s226
      %s227 = sphi 0, %s224
      %s228 = sphi 0, %s227
      %s244 = sphi 0, %s228
    $region4: #{tpu_custom_call.1} parent=1 // loop_header_branch
      %19 = sbr.rel (%p17) target = $region8
    $region5: #{tpu_custom_call.1} parent=1 // loop_body
      %s21 = ssub.s32 %s16, 1
      %s22 = ssub.s32 %s16, 2
      %s29 = sadd.s32 1, %s24
      %p30 = scmp.ge.s32.totalorder %s29, 1
      %s31 = scalar_select %p30, 0, %s29
      %s32 = sadd.s32 1, %s23
      %s33 = scalar_select %p30, %s32, %s23
      %p34 = scmp.ge.s32.totalorder %s33, 2
      %s35 = scalar_select %p34, 0, %s33
      %s36 = ssub.s32 %s23, %s35
      %s37 = ssub.s32 %s24, %s31
      %s38 = sor.u32 %s36, %s37
      %p39 = scmp.eq.s32.totalorder %s38, 0
      %s41 = sadd.s32 %s40, 1
      %s42 = scalar_select %p39, %s40, %s41
      %p45 = pneg %p39
      %p46 = scmp.eq.s32.totalorder %s16, 1
      %p47 = por %p45, %p46
      %p48 = scmp.ne.s32.totalorder %s40, %s43
      %p49 = scmp.eq.s32.totalorder %s16, 0
      %p50 = por %p48, %p49
      %p51 = scmp.ne.s32.totalorder %s40, %s43
      %p52 = scmp.eq.s32.totalorder %s21, 1
      %p53 = por %p51, %p52
      %p54 = scmp.ne.s32.totalorder %s43, %s44
      %p55 = scmp.eq.s32.totalorder %s21, 0
      %p56 = por %p54, %p55
      %p57 = scmp.ne.s32.totalorder %s43, %s44
      %p58 = scmp.eq.s32.totalorder %s22, 1
      %p59 = por %p57, %p58
      %p61 = scmp.ne.s32.totalorder %s44, %s60
      %p62 = scmp.eq.s32.totalorder %s22, 0
      %p63 = por %p61, %p62
      %s64 = smul.u32 %s24, 16
      %s65 = ssub.s32 %s64, 1
      %p66 = scmp.gt.s32.totalorder %s65, 0
      %s67 = scalar_select %p66, %s65, 0
      %s68 = smul.u32 %s31, 16
      %s69 = ssub.s32 %s68, 1
      %p70 = scmp.gt.s32.totalorder %s69, 0
      %s71 = scalar_select %p70, %s69, 0
      %s72 = ssub.s32 %s23, %s35
      %s73 = ssub.s32 %s67, %s71
      %s74 = sor.u32 %s72, %s73
      %p75 = scmp.eq.s32.totalorder %s74, 0
      %s77 = sadd.s32 %s76, 1
      %s78 = scalar_select %p75, %s76, %s77
      %p81 = pneg %p75
      %p82 = scmp.eq.s32.totalorder %s16, 1
      %p83 = por %p81, %p82
      %p84 = scmp.ne.s32.totalorder %s76, %s79
      %p85 = scmp.eq.s32.totalorder %s16, 0
      %p86 = por %p84, %p85
      %p87 = scmp.ne.s32.totalorder %s76, %s79
      %p88 = scmp.eq.s32.totalorder %s21, 1
      %p89 = por %p87, %p88
      %p90 = scmp.ne.s32.totalorder %s79, %s80
      %p91 = scmp.eq.s32.totalorder %s21, 0
      %p92 = por %p90, %p91
      %p93 = scmp.ne.s32.totalorder %s79, %s80
      %p94 = scmp.eq.s32.totalorder %s22, 1
      %p95 = por %p93, %p94
      %p97 = scmp.ne.s32.totalorder %s80, %s96
      %p98 = scmp.eq.s32.totalorder %s22, 0
      %p99 = por %p97, %p98
      %s100 = sadd.s32 %s24, 1
      %s101 = smul.u32 %s100, 16
      %p102 = scmp.lt.s32.totalorder %s101, 15
      %s103 = scalar_select %p102, %s101, 15
      %s104 = sadd.s32 %s31, 1
      %s105 = smul.u32 %s104, 16
      %p106 = scmp.lt.s32.totalorder %s105, 15
      %s107 = scalar_select %p106, %s105, 15
      %s108 = ssub.s32 %s23, %s35
      %s109 = ssub.s32 %s103, %s107
      %s110 = sor.u32 %s108, %s109
      %p111 = scmp.eq.s32.totalorder %s110, 0
      %s113 = sadd.s32 %s112, 1
      %s114 = scalar_select %p111, %s112, %s113
      %p117 = pneg %p111
      %p118 = scmp.eq.s32.totalorder %s16, 1
      %p119 = por %p117, %p118
      %p120 = scmp.ne.s32.totalorder %s112, %s115
      %p121 = scmp.eq.s32.totalorder %s16, 0
      %p122 = por %p120, %p121
      %p123 = scmp.ne.s32.totalorder %s112, %s115
      %p124 = scmp.eq.s32.totalorder %s21, 1
      %p125 = por %p123, %p124
      %p126 = scmp.ne.s32.totalorder %s115, %s116
      %p127 = scmp.eq.s32.totalorder %s21, 0
      %p128 = por %p126, %p127
      %p129 = scmp.ne.s32.totalorder %s115, %s116
      %p130 = scmp.eq.s32.totalorder %s22, 1
      %p131 = por %p129, %p130
      %p133 = scmp.ne.s32.totalorder %s116, %s132
      %p134 = scmp.eq.s32.totalorder %s22, 0
      %p135 = por %p133, %p134
      %s137 = sadd.s32 %s136, 1
      %p140 = scmp.eq.s32.totalorder %s16, 1
      %p141 = scmp.ne.s32.totalorder %s136, %s138
      %p142 = scmp.eq.s32.totalorder %s16, 0
      %p143 = por %p141, %p142
      %p144 = scmp.ne.s32.totalorder %s136, %s138
      %p145 = scmp.eq.s32.totalorder %s21, 1
      %p146 = por %p144, %p145
      %p147 = scmp.ne.s32.totalorder %s138, %s139
      %p148 = scmp.eq.s32.totalorder %s21, 0
      %p149 = por %p147, %p148
      %p150 = scmp.ne.s32.totalorder %s138, %s139
      %p151 = scmp.eq.s32.totalorder %s22, 1
      %p152 = por %p150, %p151
      %p154 = scmp.ne.s32.totalorder %s139, %s153
      %p155 = scmp.eq.s32.totalorder %s22, 0
      %p156 = por %p154, %p155
      %s158 = sadd.s32 %s157, 1
      %p161 = scmp.eq.s32.totalorder %s16, 1
      %p162 = scmp.ne.s32.totalorder %s157, %s159
      %p163 = scmp.eq.s32.totalorder %s16, 0
      %p164 = por %p162, %p163
      %p165 = scmp.ne.s32.totalorder %s157, %s159
      %p166 = scmp.eq.s32.totalorder %s21, 1
      %p167 = por %p165, %p166
      %p168 = scmp.ne.s32.totalorder %s159, %s160
      %p169 = scmp.eq.s32.totalorder %s21, 0
      %p170 = por %p168, %p169
      %p171 = scmp.ne.s32.totalorder %s159, %s160
      %p172 = scmp.eq.s32.totalorder %s22, 1
      %p173 = por %p171, %p172
      %p175 = scmp.ne.s32.totalorder %s160, %s174
      %p176 = scmp.eq.s32.totalorder %s22, 0
      %p177 = por %p175, %p176
      %s179 = sadd.s32 %s178, 1
      %p182 = scmp.eq.s32.totalorder %s16, 1
      %p183 = scmp.ne.s32.totalorder %s178, %s180
      %p184 = scmp.eq.s32.totalorder %s16, 0
      %p185 = por %p183, %p184
      %p186 = scmp.ne.s32.totalorder %s178, %s180
      %p187 = scmp.eq.s32.totalorder %s21, 1
      %p188 = por %p186, %p187
      %p189 = scmp.ne.s32.totalorder %s180, %s181
      %p190 = scmp.eq.s32.totalorder %s21, 0
      %p191 = por %p189, %p190
      %p192 = scmp.ne.s32.totalorder %s180, %s181
      %p193 = scmp.eq.s32.totalorder %s22, 1
      %p194 = por %p192, %p193
      %p196 = scmp.ne.s32.totalorder %s181, %s195
      %p197 = scmp.eq.s32.totalorder %s22, 0
      %p198 = por %p196, %p197
      %s200 = sadd.s32 %s199, 1
      %p203 = scmp.eq.s32.totalorder %s16, 1
      %p204 = scmp.ne.s32.totalorder %s199, %s201
      %p205 = scmp.eq.s32.totalorder %s16, 0
      %p206 = por %p204, %p205
      %p207 = scmp.ne.s32.totalorder %s199, %s201
      %p208 = scmp.eq.s32.totalorder %s21, 1
      %p209 = por %p207, %p208
      %p210 = scmp.ne.s32.totalorder %s201, %s202
      %p211 = scmp.eq.s32.totalorder %s21, 0
      %p212 = por %p210, %p211
      %p213 = scmp.ne.s32.totalorder %s201, %s202
      %p214 = scmp.eq.s32.totalorder %s22, 1
      %p215 = por %p213, %p214
      %p217 = scmp.ne.s32.totalorder %s202, %s216
      %p218 = scmp.eq.s32.totalorder %s22, 0
      %p219 = por %p217, %p218
      %s220 = ssub.s32 %s23, %s35
      %s221 = ssub.s32 %s24, %s31
      %s222 = sor.u32 %s220, %s221
      %p223 = scmp.eq.s32.totalorder %s222, 0
      %s225 = sadd.s32 %s224, 1
      %s226 = scalar_select %p223, %s224, %s225
      %p229 = pneg %p223
      %p230 = scmp.eq.s32.totalorder %s16, 1
      %p231 = por %p229, %p230
      %p232 = scmp.ne.s32.totalorder %s224, %s227
      %p233 = scmp.eq.s32.totalorder %s16, 0
      %p234 = por %p232, %p233
      %p235 = scmp.ne.s32.totalorder %s224, %s227
      %p236 = scmp.eq.s32.totalorder %s21, 1
      %p237 = por %p235, %p236
      %p238 = scmp.ne.s32.totalorder %s227, %s228
      %p239 = scmp.eq.s32.totalorder %s21, 0
      %p240 = por %p238, %p239
      %p241 = scmp.ne.s32.totalorder %s227, %s228
      %p242 = scmp.eq.s32.totalorder %s22, 1
      %p243 = por %p241, %p242
      %p245 = scmp.ne.s32.totalorder %s228, %s244
      %p246 = scmp.eq.s32.totalorder %s22, 0
      %p247 = por %p245, %p246
      %p248 = scmp.le.s32.totalorder 1, %s16
      %p249 = scmp.lt.s32.totalorder %s16, 3
      %p250 = pnand %p248, %p249
      %p251 = pneg %p250
      // Predicated region
      $region9: #{tpu_custom_call.1} parent=5 // pred_check
        _
      $region10: #{tpu_custom_call.1} parent=5 // pred_check_branch
        %253 = sbr.rel (%p250) target = $region12
      $region11: #{tpu_custom_call.1} parent=5 // pred_region
        %s254 = ssub.s32 %s16, 1
        // Predicated region
        $region13: #{tpu_custom_call.1} parent=11 // pred_check
          %p255 = pneg %p149
        $region14: #{tpu_custom_call.1} parent=11 // pred_check_branch
          %257 = sbr.rel (%p255) target = $region16
        $region15: #{tpu_custom_call.1} parent=11 // pred_region
          _
        $region16: #{tpu_custom_call.1} parent=11 // pred_fallthru
          _
        // Predicated region
        $region17: #{tpu_custom_call.1} parent=11 // pred_check
          %p258 = pneg %p170
        $region18: #{tpu_custom_call.1} parent=11 // pred_check_branch
          %260 = sbr.rel (%p258) target = $region20
        $region19: #{tpu_custom_call.1} parent=11 // pred_region
          _
        $region20: #{tpu_custom_call.1} parent=11 // pred_fallthru
          _
        // Predicated region
        $region21: #{tpu_custom_call.1} parent=11 // pred_check
          %p261 = pneg %p191
        $region22: #{tpu_custom_call.1} parent=11 // pred_check_branch
          %263 = sbr.rel (%p261) target = $region24
        $region23: #{tpu_custom_call.1} parent=11 // pred_region
          _
        $region24: #{tpu_custom_call.1} parent=11 // pred_fallthru
          _
        // Predicated region
        $region25: #{tpu_custom_call.1} parent=11 // pred_check
          %p264 = pneg %p212
        $region26: #{tpu_custom_call.1} parent=11 // pred_check_branch
          %266 = sbr.rel (%p264) target = $region28
        $region27: #{tpu_custom_call.1} parent=11 // pred_region
          _
        $region28: #{tpu_custom_call.1} parent=11 // pred_fallthru
          _
      $region12: #{tpu_custom_call.1} parent=5 // pred_fallthru
        _
      %p267 = scmp.lt.s32.totalorder %s16, 2
      // Predicated region
      $region29: #{tpu_custom_call.1} parent=5 // pred_check
        %p268 = pneg %p267
      $region30: #{tpu_custom_call.1} parent=5 // pred_check_branch
        %270 = sbr.rel (%p268) target = $region32
      $region31: #{tpu_custom_call.1} parent=5 // pred_region
        // Predicated region
        $region33: #{tpu_custom_call.1} parent=31 // pred_check
          %p271 = pneg %p50
        $region34: #{tpu_custom_call.1} parent=31 // pred_check_branch
          %273 = sbr.rel (%p271) target = $region36
        $region35: #{tpu_custom_call.1} parent=31 // pred_region
          %s274 = smul.u32 16, %s24
          %p275 = scmp.lt.s32.totalorder %s23, 1
          %s276 = scalar_select %p275, %s23, 1
          %p277 = scmp.lt.s32.totalorder %s274, 15
          %s278 = scalar_select %p277, %s274, 15
          %s279 = smul.addr %s278, 2
          %s280 = smul.addr %s276, 32
          %s281 = sadd.s32 %s279, %s280
          %s282 = smul.addr %s281, 8
          %s283 = scalar_lea.vmem %s0, %s282
          %s284 = smul.u32 16, %s24
        $region36: #{tpu_custom_call.1} parent=31 // pred_fallthru
          _
        // Predicated region
        $region37: #{tpu_custom_call.1} parent=31 // pred_check
          %p285 = pneg %p86
        $region38: #{tpu_custom_call.1} parent=31 // pred_check_branch
          %287 = sbr.rel (%p285) target = $region40
        $region39: #{tpu_custom_call.1} parent=31 // pred_region
          %s288 = smul.u32 %s24, 16
          %s289 = ssub.s32 %s288, 1
          %p290 = scmp.gt.s32.totalorder %s289, 0
          %s291 = scalar_select %p290, %s289, 0
          %p292 = scmp.lt.s32.totalorder %s23, 1
          %s293 = scalar_select %p292, %s23, 1
          %p294 = scmp.lt.s32.totalorder %s291, 15
          %s295 = scalar_select %p294, %s291, 15
          %s296 = smul.addr %s295, 2
          %s297 = smul.addr %s293, 32
          %s298 = sadd.s32 %s296, %s297
          %s299 = smul.addr %s298, 8
          %s300 = scalar_lea.vmem %s1, %s299
          %s301 = smul.u32 %s24, 16
          %s302 = ssub.s32 %s301, 1
          %p303 = scmp.gt.s32.totalorder %s302, 0
          %s304 = scalar_select %p303, %s302, 0
        $region40: #{tpu_custom_call.1} parent=31 // pred_fallthru
          _
        // Predicated region
        $region41: #{tpu_custom_call.1} parent=31 // pred_check
          %p305 = pneg %p122
        $region42: #{tpu_custom_call.1} parent=31 // pred_check_branch
          %307 = sbr.rel (%p305) target = $region44
        $region43: #{tpu_custom_call.1} parent=31 // pred_region
          %s308 = sadd.s32 %s24, 1
          %s309 = smul.u32 %s308, 16
          %p310 = scmp.lt.s32.totalorder %s309, 15
          %s311 = scalar_select %p310, %s309, 15
          %p312 = scmp.lt.s32.totalorder %s23, 1
          %s313 = scalar_select %p312, %s23, 1
          %p314 = scmp.lt.s32.totalorder %s311, 15
          %s315 = scalar_select %p314, %s311, 15
          %s316 = smul.addr %s315, 2
          %s317 = smul.addr %s313, 32
          %s318 = sadd.s32 %s316, %s317
          %s319 = smul.addr %s318, 8
          %s320 = scalar_lea.vmem %s2, %s319
          %s321 = sadd.s32 %s24, 1
          %s322 = smul.u32 %s321, 16
          %p323 = scmp.lt.s32.totalorder %s322, 15
          %s324 = scalar_select %p323, %s322, 15
        $region44: #{tpu_custom_call.1} parent=31 // pred_fallthru
          _
      $region32: #{tpu_custom_call.1} parent=5 // pred_fallthru
        _
      %p325 = scmp.le.s32.totalorder 1, %s16
      %p326 = scmp.lt.s32.totalorder %s16, 3
      %p327 = pnand %p325, %p326
      %p328 = pneg %p327
      // Predicated region
      $region45: #{tpu_custom_call.1} parent=5 // pred_check
        _
      $region46: #{tpu_custom_call.1} parent=5 // pred_check_branch
        %330 = sbr.rel (%p327) target = $region48
      $region47: #{tpu_custom_call.1} parent=5 // pred_region
        %s331 = ssub.s32 %s16, 1
        %s332 = smul.u32 16, %s26
        %p333 = scmp.lt.s32.totalorder %s25, 1
        %s334 = scalar_select %p333, %s25, 1
        %p335 = scmp.lt.s32.totalorder %s332, 15
        %s336 = scalar_select %p335, %s332, 15
        %s337 = smul.addr %s336, 2
        %s338 = smul.addr %s334, 32
        %s339 = sadd.s32 %s337, %s338
        %s340 = smul.addr %s339, 8
        %s341 = scalar_lea.vmem %s0, %s340
        %p342 = pneg %p56
        %p343 = pneg %p53
        %s344 = smul.u32 %s26, 16
        %s345 = ssub.s32 %s344, 1
        %p346 = scmp.gt.s32.totalorder %s345, 0
        %s347 = scalar_select %p346, %s345, 0
        %p348 = scmp.lt.s32.totalorder %s25, 1
        %s349 = scalar_select %p348, %s25, 1
        %p350 = scmp.lt.s32.totalorder %s347, 15
        %s351 = scalar_select %p350, %s347, 15
        %s352 = smul.addr %s351, 2
        %s353 = smul.addr %s349, 32
        %s354 = sadd.s32 %s352, %s353
        %s355 = smul.addr %s354, 8
        %s356 = scalar_lea.vmem %s1, %s355
        %p357 = pneg %p92
        %p358 = pneg %p89
        %s359 = sadd.s32 %s26, 1
        %s360 = smul.u32 %s359, 16
        %p361 = scmp.lt.s32.totalorder %s360, 15
        %s362 = scalar_select %p361, %s360, 15
        %p363 = scmp.lt.s32.totalorder %s25, 1
        %s364 = scalar_select %p363, %s25, 1
        %p365 = scmp.lt.s32.totalorder %s362, 15
        %s366 = scalar_select %p365, %s362, 15
        %s367 = smul.addr %s366, 2
        %s368 = smul.addr %s364, 32
        %s369 = sadd.s32 %s367, %s368
        %s370 = smul.addr %s369, 8
        %s371 = scalar_lea.vmem %s2, %s370
        %p372 = pneg %p128
        %p373 = pneg %p125
        %p374 = pneg %p149
        %p375 = pneg %p146
        %p376 = pneg %p170
        %p377 = pneg %p167
        %p378 = pneg %p191
        %p379 = pneg %p188
        %p380 = pneg %p212
        %p381 = pneg %p209
        %p382 = pneg %p240
        %p383 = pneg %p237
        %s384 = sand.u32 %s227, 1
        %s385 = scalar_lea.sflag [#allocation4], %s384
        %s386 = sand.u32 %s227, 1
        %s387 = smul.addr %s386, 256
        %s388 = scalar_lea.vmem [#allocation3], %s387
        %s389 = smul.u32 16, %s26
        %p390 = scmp.lt.s32.totalorder %s25, 1
        %s391 = scalar_select %p390, %s25, 1
        %p392 = scmp.lt.s32.totalorder %s389, 15
        %s393 = scalar_select %p392, %s389, 15
        %s394 = smul.addr %s393, 2
        %s395 = smul.addr %s391, 32
        %s396 = sadd.s32 %s394, %s395
        %s397 = smul.addr %s396, 8
        %s398 = scalar_lea.vmem %s0, %s397
        %s399 = smul.u32 16, %s26
        %s400 = smul.u32 %s26, 16
        %s401 = ssub.s32 %s400, 1
        %p402 = scmp.gt.s32.totalorder %s401, 0
        %s403 = scalar_select %p402, %s401, 0
        %p404 = scmp.lt.s32.totalorder %s25, 1
        %s405 = scalar_select %p404, %s25, 1
        %p406 = scmp.lt.s32.totalorder %s403, 15
        %s407 = scalar_select %p406, %s403, 15
        %s408 = smul.addr %s407, 2
        %s409 = smul.addr %s405, 32
        %s410 = sadd.s32 %s408, %s409
        %s411 = smul.addr %s410, 8
        %s412 = scalar_lea.vmem %s1, %s411
        %s413 = smul.u32 %s26, 16
        %s414 = ssub.s32 %s413, 1
        %p415 = scmp.gt.s32.totalorder %s414, 0
        %s416 = scalar_select %p415, %s414, 0
        %s417 = sadd.s32 %s26, 1
        %s418 = smul.u32 %s417, 16
        %p419 = scmp.lt.s32.totalorder %s418, 15
        %s420 = scalar_select %p419, %s418, 15
        %p421 = scmp.lt.s32.totalorder %s25, 1
        %s422 = scalar_select %p421, %s25, 1
        %p423 = scmp.lt.s32.totalorder %s420, 15
        %s424 = scalar_select %p423, %s420, 15
        %s425 = smul.addr %s424, 2
        %s426 = smul.addr %s422, 32
        %s427 = sadd.s32 %s425, %s426
        %s428 = smul.addr %s427, 8
        %s429 = scalar_lea.vmem %s2, %s428
        %s430 = sadd.s32 %s26, 1
        %s431 = smul.u32 %s430, 16
        %p432 = scmp.lt.s32.totalorder %s431, 15
        %s433 = scalar_select %p432, %s431, 15
        %s434 = smul.u32 16, %s26
        %vm436 = vcmask 57344
        %437 = vst.msk [vmem:[#allocation2] sm:$0x1] %vm436, 0.0
        %438 = vst.msk [vmem:[#allocation2 + $0x18] sm:$0x1] %vm436, 0.0
        %439 = vst.msk [vmem:[#allocation2 + $0x30] sm:$0x1] %vm436, 0.0
        %440 = vst.msk [vmem:[#allocation2 + $0x48] sm:$0x1] %vm436, 0.0
        %441 = vst.msk [vmem:[#allocation2 + $0x60] sm:$0x1] %vm436, 0.0
        %442 = vst.msk [vmem:[#allocation2 + $0x78] sm:$0x1] %vm436, 0.0
        %443 = vst.msk [vmem:[#allocation2 + $0x90] sm:$0x1] %vm436, 0.0
        %444 = vst.msk [vmem:[#allocation2 + $0xa8] sm:$0x1] %vm436, 0.0
        %445 = vst.msk [vmem:[#allocation2 + $0xc0] sm:$0x1] %vm436, 0.0
        %446 = vst.msk [vmem:[#allocation2 + $0xd8] sm:$0x1] %vm436, 0.0
        %447 = vst.msk [vmem:[#allocation2 + $0xf0] sm:$0x1] %vm436, 0.0
        %448 = vst.msk [vmem:[#allocation2 + $0x108] sm:$0x1] %vm436, 0.0
        %449 = vst.msk [vmem:[#allocation2 + $0x120] sm:$0x1] %vm436, 0.0
        %450 = vst.msk [vmem:[#allocation2 + $0x138] sm:$0x1] %vm436, 0.0
        %451 = vst.msk [vmem:[#allocation2 + $0x150] sm:$0x1] %vm436, 0.0
        %452 = vst.msk [vmem:[#allocation2 + $0x168] sm:$0x1] %vm436, 0.0
        %453 = vst.msk [vmem:[#allocation2 + $0x180] sm:$0x1] %vm436, 0.0
        %454 = vst.msk [vmem:[#allocation2 + $0x198] sm:$0x1] %vm436, 0.0
        %455 = vst.msk [vmem:[#allocation2 + $0x11] sm:$0x1] %vm436, 0.0
        %456 = vst.msk [vmem:[#allocation2 + $0x29] sm:$0x1] %vm436, 0.0
        %457 = vst.msk [vmem:[#allocation2 + $0x41] sm:$0x1] %vm436, 0.0
        %458 = vst.msk [vmem:[#allocation2 + $0x59] sm:$0x1] %vm436, 0.0
        %459 = vst.msk [vmem:[#allocation2 + $0x71] sm:$0x1] %vm436, 0.0
        %460 = vst.msk [vmem:[#allocation2 + $0x89] sm:$0x1] %vm436, 0.0
        %461 = vst.msk [vmem:[#allocation2 + $0xa1] sm:$0x1] %vm436, 0.0
        %462 = vst.msk [vmem:[#allocation2 + $0xb9] sm:$0x1] %vm436, 0.0
        %463 = vst.msk [vmem:[#allocation2 + $0xd1] sm:$0x1] %vm436, 0.0
        %464 = vst.msk [vmem:[#allocation2 + $0xe9] sm:$0x1] %vm436, 0.0
        %465 = vst.msk [vmem:[#allocation2 + $0x101] sm:$0x1] %vm436, 0.0
        %466 = vst.msk [vmem:[#allocation2 + $0x119] sm:$0x1] %vm436, 0.0
        %467 = vst.msk [vmem:[#allocation2 + $0x131] sm:$0x1] %vm436, 0.0
        %468 = vst.msk [vmem:[#allocation2 + $0x149] sm:$0x1] %vm436, 0.0
        %469 = vst.msk [vmem:[#allocation2 + $0x161] sm:$0x1] %vm436, 0.0
        %470 = vst.msk [vmem:[#allocation2 + $0x179] sm:$0x1] %vm436, 0.0
        %471 = vst.msk [vmem:[#allocation2 + $0x191] sm:$0x1] %vm436, 0.0
        %472 = vst.msk [vmem:[#allocation2 + $0x1a9] sm:$0x1] %vm436, 0.0
        %v473 = vld [vmem:[%s398] sm:$0xff]
        %v474 = vld [vmem:[%s398 + $0x8] sm:$0xff]
        %v475 = vld [vmem:[%s398 + $0x10] sm:$0xff]
        %v476 = vld [vmem:[%s398 + $0x18] sm:$0xff]
        %v477 = vld [vmem:[%s398 + $0x20] sm:$0xff]
        %v478 = vld [vmem:[%s398 + $0x28] sm:$0xff]
        %v479 = vld [vmem:[%s398 + $0x30] sm:$0xff]
        %v480 = vld [vmem:[%s398 + $0x38] sm:$0xff]
        %v481 = vld [vmem:[%s398 + $0x40] sm:$0xff]
        %v482 = vld [vmem:[%s398 + $0x48] sm:$0xff]
        %v483 = vld [vmem:[%s398 + $0x50] sm:$0xff]
        %v484 = vld [vmem:[%s398 + $0x58] sm:$0xff]
        %v485 = vld [vmem:[%s398 + $0x60] sm:$0xff]
        %v486 = vld [vmem:[%s398 + $0x68] sm:$0xff]
        %v487 = vld [vmem:[%s398 + $0x70] sm:$0xff]
        %v488 = vld [vmem:[%s398 + $0x78] sm:$0xff]
        %v489 = vld [vmem:[%s398 + $0x80] sm:$0xff]
        %v490 = vld [vmem:[%s398 + $0x88] sm:$0xff]
        %v491 = vld [vmem:[%s398 + $0x90] sm:$0xff]
        %v492 = vld [vmem:[%s398 + $0x98] sm:$0xff]
        %v493 = vld [vmem:[%s398 + $0xa0] sm:$0xff]
        %v494 = vld [vmem:[%s398 + $0xa8] sm:$0xff]
        %v495 = vld [vmem:[%s398 + $0xb0] sm:$0xff]
        %v496 = vld [vmem:[%s398 + $0xb8] sm:$0xff]
        %v497 = vld [vmem:[%s398 + $0xc0] sm:$0xff]
        %v498 = vld [vmem:[%s398 + $0xc8] sm:$0xff]
        %v499 = vld [vmem:[%s398 + $0xd0] sm:$0xff]
        %v500 = vld [vmem:[%s398 + $0xd8] sm:$0xff]
        %v501 = vld [vmem:[%s398 + $0xe0] sm:$0xff]
        %v502 = vld [vmem:[%s398 + $0xe8] sm:$0xff]
        %v503 = vld [vmem:[%s398 + $0xf0] sm:$0xff]
        %v504 = vld [vmem:[%s398 + $0xf8] sm:$0xff]
        %v505 = vld [vmem:[%s3] sm:$0x3]
        %v506 = vpack.c.bf16 %v474, %v473
        %v507 = vpack.c.bf16 %v476, %v475
        %v508 = vpack.c.bf16 %v478, %v477
        %v509 = vpack.c.bf16 %v480, %v479
        %v510 = vpack.c.bf16 %v482, %v481
        %v511 = vpack.c.bf16 %v484, %v483
        %v512 = vpack.c.bf16 %v486, %v485
        %v513 = vpack.c.bf16 %v488, %v487
        %v514 = vpack.c.bf16 %v490, %v489
        %v515 = vpack.c.bf16 %v492, %v491
        %v516 = vpack.c.bf16 %v494, %v493
        %v517 = vpack.c.bf16 %v496, %v495
        %v518 = vpack.c.bf16 %v498, %v497
        %v519 = vpack.c.bf16 %v500, %v499
        %v520 = vpack.c.bf16 %v502, %v501
        %v521 = vpack.c.bf16 %v504, %v503
        %vm522 = vcmask 31744
        %v524 = vsel %vm522, %v506, 0
        %v527 = vsel %vm522, %v507, 0
        %v530 = vsel %vm522, %v508, 0
        %v533 = vsel %vm522, %v509, 0
        %v536 = vsel %vm522, %v510, 0
        %v539 = vsel %vm522, %v511, 0
        %v542 = vsel %vm522, %v512, 0
        %v545 = vsel %vm522, %v513, 0
        %v548 = vsel %vm522, %v514, 0
        %v551 = vsel %vm522, %v515, 0
        %v554 = vsel %vm522, %v516, 0
        %v557 = vsel %vm522, %v517, 0
        %v560 = vsel %vm522, %v518, 0
        %v563 = vsel %vm522, %v519, 0
        %v566 = vsel %vm522, %v520, 0
        %v569 = vsel %vm522, %v521, 0
        %vm571 = vcmask 1041408
        %v573 = vsel %vm571, %v505, 0
        %575 = vmatprep.subr.bf16.mxu0 0
        %576 = vmatpush1.bf16.msra.mxu0 %v573
        %577 = vmatprep.subr.bf16.mxu0 0
        %578 = vmatpush1.bf16.msra.mxu0 0
        %579 = vmatprep.subr.bf16.mxu0 0
        %580 = vmatpush1.bf16.msra.mxu0 0
        %581 = vmatprep.subr.bf16.mxu0 0
        %582 = vmatpush1.bf16.msra.mxu0 0
        %583 = vmatprep.subr.bf16.mxu0 0
        %584 = vmatpush1.bf16.msra.mxu0 0
        %585 = vmatprep.subr.bf16.mxu0 0
        %586 = vmatpush1.bf16.msra.mxu0 0
        %587 = vmatprep.subr.bf16.mxu0 0
        %588 = vmatpush1.bf16.msra.mxu0 0
        %589 = vmatprep.subr.bf16.mxu0 0
        %590 = vmatpush1.bf16.msra.mxu0 0
        %591 = vmatprep.subr.bf16.mxu0 0
        %592 = vmatpush1.bf16.msra.mxu0 0
        %593 = vmatprep.subr.bf16.mxu0 0
        %594 = vmatpush1.bf16.msra.mxu0 0
        %595 = vmatprep.subr.bf16.mxu0 0
        %596 = vmatpush1.bf16.msra.mxu0 0
        %597 = vmatprep.subr.bf16.mxu0 0
        %598 = vmatpush1.bf16.msra.mxu0 0
        %599 = vmatprep.subr.bf16.mxu0 0
        %600 = vmatpush1.bf16.msra.mxu0 0
        %601 = vmatprep.subr.bf16.mxu0 0
        %602 = vmatpush1.bf16.msra.mxu0 0
        %603 = vmatprep.subr.bf16.mxu0 0
        %604 = vmatpush1.bf16.msra.mxu0 0
        %605 = vmatprep.subr.bf16.mxu0 0
        %606 = vmatpush1.bf16.msra.mxu0 0
        %607 = vmatprep.mubr.bf16.mxu0 0
        %608 = vmatmul.mubr.bf16.gmra.mrb[0].mxu0 %v524
        %v609 = vpop.f32.mrb[0].mxu0
        %v610 = vadd.f32 0.0, %v609
        %v611 = vpop.f32.mrb[0].mxu0
        %v612 = vpop.f32.mrb[0].mxu0
        %v613 = vadd.f32 0.0, %v612
        %v614 = vpop.f32.mrb[0].mxu0
        %615 = vmatprep.mubr.bf16.mxu0 0
        %616 = vmatmul.mubr.bf16.gmra.mrb[0].mxu0 %v527
        %v617 = vpop.f32.mrb[0].mxu0
        %v618 = vadd.f32 0.0, %v617
        %v619 = vpop.f32.mrb[0].mxu0
        %v620 = vpop.f32.mrb[0].mxu0
        %v621 = vadd.f32 0.0, %v620
        %v622 = vpop.f32.mrb[0].mxu0
        %623 = vmatprep.mubr.bf16.mxu0 0
        %624 = vmatmul.mubr.bf16.gmra.mrb[0].mxu0 %v530
        %v625 = vpop.f32.mrb[0].mxu0
        %v626 = vadd.f32 0.0, %v625
        %v627 = vpop.f32.mrb[0].mxu0
        %v628 = vpop.f32.mrb[0].mxu0
        %v629 = vadd.f32 0.0, %v628
        %v630 = vpop.f32.mrb[0].mxu0
        %631 = vmatprep.mubr.bf16.mxu0 0
        %632 = vmatmul.mubr.bf16.gmra.mrb[0].mxu0 %v533
        %v633 = vpop.f32.mrb[0].mxu0
        %v634 = vadd.f32 0.0, %v633
        %v635 = vpop.f32.mrb[0].mxu0
        %v636 = vpop.f32.mrb[0].mxu0
        %v637 = vadd.f32 0.0, %v636
        %v638 = vpop.f32.mrb[0].mxu0
        %639 = vmatprep.mubr.bf16.mxu0 0
        %640 = vmatmul.mubr.bf16.gmra.mrb[0].mxu0 %v536
        %v641 = vpop.f32.mrb[0].mxu0
        %v642 = vadd.f32 0.0, %v641
        %v643 = vpop.f32.mrb[0].mxu0
        %v644 = vpop.f32.mrb[0].mxu0
        %v645 = vadd.f32 0.0, %v644
        %v646 = vpop.f32.mrb[0].mxu0
        %647 = vmatprep.mubr.bf16.mxu0 0
        %648 = vmatmul.mubr.bf16.gmra.mrb[0].mxu0 %v539
        %v649 = vpop.f32.mrb[0].mxu0
        %v650 = vadd.f32 0.0, %v649
        %v651 = vpop.f32.mrb[0].mxu0
        %v652 = vpop.f32.mrb[0].mxu0
        %v653 = vadd.f32 0.0, %v652
        %v654 = vpop.f32.mrb[0].mxu0
        %655 = vmatprep.mubr.bf16.mxu0 0
        %656 = vmatmul.mubr.bf16.gmra.mrb[0].mxu0 %v542
        %v657 = vpop.f32.mrb[0].mxu0
        %v658 = vadd.f32 0.0, %v657
        %v659 = vpop.f32.mrb[0].mxu0
        %v660 = vpop.f32.mrb[0].mxu0
        %v661 = vadd.f32 0.0, %v660
        %v662 = vpop.f32.mrb[0].mxu0
        %663 = vmatprep.mubr.bf16.mxu0 0
        %664 = vmatmul.mubr.bf16.gmra.mrb[0].mxu0 %v545
        %v665 = vpop.f32.mrb[0].mxu0
        %v666 = vadd.f32 0.0, %v665
        %v667 = vpop.f32.mrb[0].mxu0
        %v668 = vpop.f32.mrb[0].mxu0
        %v669 = vadd.f32 0.0, %v668
        %v670 = vpop.f32.mrb[0].mxu0
        %671 = vmatprep.mubr.bf16.mxu0 0
        %672 = vmatmul.mubr.bf16.gmra.mrb[0].mxu0 %v548
        %v673 = vpop.f32.mrb[0].mxu0
        %v674 = vadd.f32 0.0, %v673
        %v675 = vpop.f32.mrb[0].mxu0
        %v676 = vpop.f32.mrb[0].mxu0
        %v677 = vadd.f32 0.0, %v676
        %v678 = vpop.f32.mrb[0].mxu0
        %679 = vmatprep.mubr.bf16.mxu0 0
        %680 = vmatmul.mubr.bf16.gmra.mrb[0].mxu0 %v551
        %v681 = vpop.f32.mrb[0].mxu0
        %v682 = vadd.f32 0.0, %v681
        %v683 = vpop.f32.mrb[0].mxu0
        %v684 = vpop.f32.mrb[0].mxu0
        %v685 = vadd.f32 0.0, %v684
        %v686 = vpop.f32.mrb[0].mxu0
        %687 = vmatprep.mubr.bf16.mxu0 0
        %688 = vmatmul.mubr.bf16.gmra.mrb[0].mxu0 %v554
        %v689 = vpop.f32.mrb[0].mxu0
        %v690 = vadd.f32 0.0, %v689
        %v691 = vpop.f32.mrb[0].mxu0
        %v692 = vpop.f32.mrb[0].mxu0
        %v693 = vadd.f32 0.0, %v692
        %v694 = vpop.f32.mrb[0].mxu0
        %695 = vmatprep.mubr.bf16.mxu0 0
        %696 = vmatmul.mubr.bf16.gmra.mrb[0].mxu0 %v557
        %v697 = vpop.f32.mrb[0].mxu0
        %v698 = vadd.f32 0.0, %v697
        %v699 = vpop.f32.mrb[0].mxu0
        %v700 = vpop.f32.mrb[0].mxu0
        %v701 = vadd.f32 0.0, %v700
        %v702 = vpop.f32.mrb[0].mxu0
        %703 = vmatprep.mubr.bf16.mxu0 0
        %704 = vmatmul.mubr.bf16.gmra.mrb[0].mxu0 %v560
        %v705 = vpop.f32.mrb[0].mxu0
        %v706 = vadd.f32 0.0, %v705
        %v707 = vpop.f32.mrb[0].mxu0
        %v708 = vpop.f32.mrb[0].mxu0
        %v709 = vadd.f32 0.0, %v708
        %v710 = vpop.f32.mrb[0].mxu0
        %711 = vmatprep.mubr.bf16.mxu0 0
        %712 = vmatmul.mubr.bf16.gmra.mrb[0].mxu0 %v563
        %v713 = vpop.f32.mrb[0].mxu0
        %v714 = vadd.f32 0.0, %v713
        %v715 = vpop.f32.mrb[0].mxu0
        %v716 = vpop.f32.mrb[0].mxu0
        %v717 = vadd.f32 0.0, %v716
        %v718 = vpop.f32.mrb[0].mxu0
        %719 = vmatprep.mubr.bf16.mxu0 0
        %720 = vmatmul.mubr.bf16.gmra.mrb[0].mxu0 %v566
        %v721 = vpop.f32.mrb[0].mxu0
        %v722 = vadd.f32 0.0, %v721
        %v723 = vpop.f32.mrb[0].mxu0
        %v724 = vpop.f32.mrb[0].mxu0
        %v725 = vadd.f32 0.0, %v724
        %v726 = vpop.f32.mrb[0].mxu0
        %727 = vmatprep.mubr.bf16.mxu0 0
        %728 = vmatmul.mubr.bf16.gmra.mrb[0].mxu0 %v569
        %v729 = vpop.f32.mrb[0].mxu0
        %v730 = vadd.f32 0.0, %v729
        %v731 = vpop.f32.mrb[0].mxu0
        %v732 = vpop.f32.mrb[0].mxu0
        %v733 = vadd.f32 0.0, %v732
        %v734 = vpop.f32.mrb[0].mxu0
        %735 = vdwg.mxu0
        %v736 = vmul.f32 %v610, 0.1
        %v737 = vmul.f32 %v613, 0.1
        %v738 = vmul.f32 %v618, 0.1
        %v739 = vmul.f32 %v621, 0.1
        %v740 = vmul.f32 %v626, 0.1
        %v741 = vmul.f32 %v629, 0.1
        %v742 = vmul.f32 %v634, 0.1
        %v743 = vmul.f32 %v637, 0.1
        %v744 = vmul.f32 %v642, 0.1
        %v745 = vmul.f32 %v645, 0.1
        %v746 = vmul.f32 %v650, 0.1
        %v747 = vmul.f32 %v653, 0.1
        %v748 = vmul.f32 %v658, 0.1
        %v749 = vmul.f32 %v661, 0.1
        %v750 = vmul.f32 %v666, 0.1
        %v751 = vmul.f32 %v669, 0.1
        %v752 = vmul.f32 %v674, 0.1
        %v753 = vmul.f32 %v677, 0.1
        %v754 = vmul.f32 %v682, 0.1
        %v755 = vmul.f32 %v685, 0.1
        %v756 = vmul.f32 %v690, 0.1
        %v757 = vmul.f32 %v693, 0.1
        %v758 = vmul.f32 %v698, 0.1
        %v759 = vmul.f32 %v701, 0.1
        %v760 = vmul.f32 %v706, 0.1
        %v761 = vmul.f32 %v709, 0.1
        %v762 = vmul.f32 %v714, 0.1
        %v763 = vmul.f32 %v717, 0.1
        %v764 = vmul.f32 %v722, 0.1
        %v765 = vmul.f32 %v725, 0.1
        %v766 = vmul.f32 %v730, 0.1
        %v767 = vmul.f32 %v733, 0.1
        %v768 = vmax.f32 %v610, %v736
        %v769 = vmax.f32 %v613, %v737
        %v770 = vmax.f32 %v618, %v738
        %v771 = vmax.f32 %v621, %v739
        %v772 = vmax.f32 %v626, %v740
        %v773 = vmax.f32 %v629, %v741
        %v774 = vmax.f32 %v634, %v742
        %v775 = vmax.f32 %v637, %v743
        %v776 = vmax.f32 %v642, %v744
        %v777 = vmax.f32 %v645, %v745
        %v778 = vmax.f32 %v650, %v746
        %v779 = vmax.f32 %v653, %v747
        %v780 = vmax.f32 %v658, %v748
        %v781 = vmax.f32 %v661, %v749
        %v782 = vmax.f32 %v666, %v750
        %v783 = vmax.f32 %v669, %v751
        %v784 = vmax.f32 %v674, %v752
        %v785 = vmax.f32 %v677, %v753
        %v786 = vmax.f32 %v682, %v754
        %v787 = vmax.f32 %v685, %v755
        %v788 = vmax.f32 %v690, %v756
        %v789 = vmax.f32 %v693, %v757
        %v790 = vmax.f32 %v698, %v758
        %v791 = vmax.f32 %v701, %v759
        %v792 = vmax.f32 %v706, %v760
        %v793 = vmax.f32 %v709, %v761
        %v794 = vmax.f32 %v714, %v762
        %v795 = vmax.f32 %v717, %v763
        %v796 = vmax.f32 %v722, %v764
        %v797 = vmax.f32 %v725, %v765
        %v798 = vmax.f32 %v730, %v766
        %v799 = vmax.f32 %v733, %v767
        %s800 = scalar_lea.vmem [#allocation2], 24
        %vm801 = vcmask 64512
        %802 = vst.msk [vmem:[%s800 + $0x1] sm:$0xff] %vm801, %v768
        %803 = vst.msk [vmem:[%s800 + $0x9] sm:$0xff] %vm801, %v769
        %804 = vst.msk [vmem:[%s800 + $0x19] sm:$0xff] %vm801, %v770
        %805 = vst.msk [vmem:[%s800 + $0x21] sm:$0xff] %vm801, %v771
        %806 = vst.msk [vmem:[%s800 + $0x31] sm:$0xff] %vm801, %v772
        %807 = vst.msk [vmem:[%s800 + $0x39] sm:$0xff] %vm801, %v773
        %808 = vst.msk [vmem:[%s800 + $0x49] sm:$0xff] %vm801, %v774
        %809 = vst.msk [vmem:[%s800 + $0x51] sm:$0xff] %vm801, %v775
        %810 = vst.msk [vmem:[%s800 + $0x61] sm:$0xff] %vm801, %v776
        %811 = vst.msk [vmem:[%s800 + $0x69] sm:$0xff] %vm801, %v777
        %812 = vst.msk [vmem:[%s800 + $0x79] sm:$0xff] %vm801, %v778
        %813 = vst.msk [vmem:[%s800 + $0x81] sm:$0xff] %vm801, %v779
        %814 = vst.msk [vmem:[%s800 + $0x91] sm:$0xff] %vm801, %v780
        %815 = vst.msk [vmem:[%s800 + $0x99] sm:$0xff] %vm801, %v781
        %816 = vst.msk [vmem:[%s800 + $0xa9] sm:$0xff] %vm801, %v782
        %817 = vst.msk [vmem:[%s800 + $0xb1] sm:$0xff] %vm801, %v783
        %818 = vst.msk [vmem:[%s800 + $0xc1] sm:$0xff] %vm801, %v784
        %819 = vst.msk [vmem:[%s800 + $0xc9] sm:$0xff] %vm801, %v785
        %820 = vst.msk [vmem:[%s800 + $0xd9] sm:$0xff] %vm801, %v786
        %821 = vst.msk [vmem:[%s800 + $0xe1] sm:$0xff] %vm801, %v787
        %822 = vst.msk [vmem:[%s800 + $0xf1] sm:$0xff] %vm801, %v788
        %823 = vst.msk [vmem:[%s800 + $0xf9] sm:$0xff] %vm801, %v789
        %824 = vst.msk [vmem:[%s800 + $0x109] sm:$0xff] %vm801, %v790
        %825 = vst.msk [vmem:[%s800 + $0x111] sm:$0xff] %vm801, %v791
        %826 = vst.msk [vmem:[%s800 + $0x121] sm:$0xff] %vm801, %v792
        %827 = vst.msk [vmem:[%s800 + $0x129] sm:$0xff] %vm801, %v793
        %828 = vst.msk [vmem:[%s800 + $0x139] sm:$0xff] %vm801, %v794
        %829 = vst.msk [vmem:[%s800 + $0x141] sm:$0xff] %vm801, %v795
        %830 = vst.msk [vmem:[%s800 + $0x151] sm:$0xff] %vm801, %v796
        %831 = vst.msk [vmem:[%s800 + $0x159] sm:$0xff] %vm801, %v797
        %832 = vst.msk [vmem:[%s800 + $0x169] sm:$0xff] %vm801, %v798
        %833 = vst.msk [vmem:[%s800 + $0x171] sm:$0xff] %vm801, %v799
        %p834 = scmp.eq.s32.totalorder %s26, 0
        // Predicated region
        $region49: #{tpu_custom_call.1} parent=47 // pred_check
          %p835 = pneg %p834
        $region50: #{tpu_custom_call.1} parent=47 // pred_check_branch
          %837 = sbr.rel (%p835) target = $region52
        $region51: #{tpu_custom_call.1} parent=47 // pred_region
          %838 = vst.msk [vmem:[#allocation2 + $0x1] sm:$0xff] %vm801, 0.0
          %839 = vst.msk [vmem:[#allocation2 + $0x9] sm:$0xff] %vm801, 0.0
        $region52: #{tpu_custom_call.1} parent=47 // pred_fallthru
          _
        %p840 = scmp.gt.s32.totalorder %s26, 0
        // Predicated region
        $region53: #{tpu_custom_call.1} parent=47 // pred_check
          %p841 = pneg %p840
        $region54: #{tpu_custom_call.1} parent=47 // pred_check_branch
          %843 = sbr.rel (%p841) target = $region56
        $region55: #{tpu_custom_call.1} parent=47 // pred_region
          %v844 = vld [vmem:[%s412] sm:$0xff]
          %v845 = vld [vmem:[%s412 + $0x8] sm:$0xff]
          %v846 = vld [vmem:[%s3] sm:$0x3]
          %v847 = vpack.c.bf16 %v845, %v844
          %v849 = vsel %vm522, %v847, 0
          %v852 = vsel %vm571, %v846, 0
          %854 = vmatprep.subr.bf16.mxu0 0
          %855 = vmatpush1.bf16.msra.mxu0 %v852
          %856 = vmatprep.subr.bf16.mxu0 0
          %857 = vmatpush1.bf16.msra.mxu0 0
          %858 = vmatprep.subr.bf16.mxu0 0
          %859 = vmatpush1.bf16.msra.mxu0 0
          %860 = vmatprep.subr.bf16.mxu0 0
          %861 = vmatpush1.bf16.msra.mxu0 0
          %862 = vmatprep.subr.bf16.mxu0 0
          %863 = vmatpush1.bf16.msra.mxu0 0
          %864 = vmatprep.subr.bf16.mxu0 0
          %865 = vmatpush1.bf16.msra.mxu0 0
          %866 = vmatprep.subr.bf16.mxu0 0
          %867 = vmatpush1.bf16.msra.mxu0 0
          %868 = vmatprep.subr.bf16.mxu0 0
          %869 = vmatpush1.bf16.msra.mxu0 0
          %870 = vmatprep.subr.bf16.mxu0 0
          %871 = vmatpush1.bf16.msra.mxu0 0
          %872 = vmatprep.subr.bf16.mxu0 0
          %873 = vmatpush1.bf16.msra.mxu0 0
          %874 = vmatprep.subr.bf16.mxu0 0
          %875 = vmatpush1.bf16.msra.mxu0 0
          %876 = vmatprep.subr.bf16.mxu0 0
          %877 = vmatpush1.bf16.msra.mxu0 0
          %878 = vmatprep.subr.bf16.mxu0 0
          %879 = vmatpush1.bf16.msra.mxu0 0
          %880 = vmatprep.subr.bf16.mxu0 0
          %881 = vmatpush1.bf16.msra.mxu0 0
          %882 = vmatprep.subr.bf16.mxu0 0
          %883 = vmatpush1.bf16.msra.mxu0 0
          %884 = vmatprep.subr.bf16.mxu0 0
          %885 = vmatpush1.bf16.msra.mxu0 0
          %886 = vmatprep.mubr.bf16.mxu0 0
          %887 = vmatmul.mubr.bf16.gmra.mrb[0].mxu0 %v849
          %v888 = vpop.f32.mrb[0].mxu0
          %v889 = vadd.f32 0.0, %v888
          %v890 = vpop.f32.mrb[0].mxu0
          %v891 = vpop.f32.mrb[0].mxu0
          %v892 = vadd.f32 0.0, %v891
          %v893 = vpop.f32.mrb[0].mxu0
          %894 = vdwg.mxu0
          %v895 = vmul.f32 %v889, 0.1
          %v896 = vmul.f32 %v892, 0.1
          %v897 = vmax.f32 %v889, %v895
          %v898 = vmax.f32 %v892, %v896
          %899 = vst.msk [vmem:[#allocation2 + $0x1] sm:$0xff] %vm801, %v897
          %900 = vst.msk [vmem:[#allocation2 + $0x9] sm:$0xff] %vm801, %v898
        $region56: #{tpu_custom_call.1} parent=47 // pred_fallthru
          _
        // Predicated region
        $region57: #{tpu_custom_call.1} parent=47 // pred_check
          %p901 = pneg %p834
        $region58: #{tpu_custom_call.1} parent=47 // pred_check_branch
          %903 = sbr.rel (%p901) target = $region60
        $region59: #{tpu_custom_call.1} parent=47 // pred_region
          %s904 = scalar_lea.vmem [#allocation2], 408
          %905 = vst.msk [vmem:[%s904 + $0x1] sm:$0xff] %vm801, 0.0
          %906 = vst.msk [vmem:[%s904 + $0x9] sm:$0xff] %vm801, 0.0
        $region60: #{tpu_custom_call.1} parent=47 // pred_fallthru
          _
        %p907 = scmp.lt.s32.totalorder %s26, 0
        // Predicated region
        $region61: #{tpu_custom_call.1} parent=47 // pred_check
          %p908 = pneg %p907
        $region62: #{tpu_custom_call.1} parent=47 // pred_check_branch
          %910 = sbr.rel (%p908) target = $region64
        $region63: #{tpu_custom_call.1} parent=47 // pred_region
          %v911 = vld [vmem:[%s429] sm:$0xff]
          %v912 = vld [vmem:[%s429 + $0x8] sm:$0xff]
          %v913 = vld [vmem:[%s3] sm:$0x3]
          %v914 = vpack.c.bf16 %v912, %v911
          %v916 = vsel %vm522, %v914, 0
          %v919 = vsel %vm571, %v913, 0
          %921 = vmatprep.subr.bf16.mxu0 0
          %922 = vmatpush1.bf16.msra.mxu0 %v919
          %923 = vmatprep.subr.bf16.mxu0 0
          %924 = vmatpush1.bf16.msra.mxu0 0
          %925 = vmatprep.subr.bf16.mxu0 0
          %926 = vmatpush1.bf16.msra.mxu0 0
          %927 = vmatprep.subr.bf16.mxu0 0
          %928 = vmatpush1.bf16.msra.mxu0 0
          %929 = vmatprep.subr.bf16.mxu0 0
          %930 = vmatpush1.bf16.msra.mxu0 0
          %931 = vmatprep.subr.bf16.mxu0 0
          %932 = vmatpush1.bf16.msra.mxu0 0
          %933 = vmatprep.subr.bf16.mxu0 0
          %934 = vmatpush1.bf16.msra.mxu0 0
          %935 = vmatprep.subr.bf16.mxu0 0
          %936 = vmatpush1.bf16.msra.mxu0 0
          %937 = vmatprep.subr.bf16.mxu0 0
          %938 = vmatpush1.bf16.msra.mxu0 0
          %939 = vmatprep.subr.bf16.mxu0 0
          %940 = vmatpush1.bf16.msra.mxu0 0
          %941 = vmatprep.subr.bf16.mxu0 0
          %942 = vmatpush1.bf16.msra.mxu0 0
          %943 = vmatprep.subr.bf16.mxu0 0
          %944 = vmatpush1.bf16.msra.mxu0 0
          %945 = vmatprep.subr.bf16.mxu0 0
          %946 = vmatpush1.bf16.msra.mxu0 0
          %947 = vmatprep.subr.bf16.mxu0 0
          %948 = vmatpush1.bf16.msra.mxu0 0
          %949 = vmatprep.subr.bf16.mxu0 0
          %950 = vmatpush1.bf16.msra.mxu0 0
          %951 = vmatprep.subr.bf16.mxu0 0
          %952 = vmatpush1.bf16.msra.mxu0 0
          %953 = vmatprep.mubr.bf16.mxu0 0
          %954 = vmatmul.mubr.bf16.gmra.mrb[0].mxu0 %v916
          %v955 = vpop.f32.mrb[0].mxu0
          %v956 = vadd.f32 0.0, %v955
          %v957 = vpop.f32.mrb[0].mxu0
          %v958 = vpop.f32.mrb[0].mxu0
          %v959 = vadd.f32 0.0, %v958
          %v960 = vpop.f32.mrb[0].mxu0
          %961 = vdwg.mxu0
          %v962 = vmul.f32 %v956, 0.1
          %v963 = vmul.f32 %v959, 0.1
          %v964 = vmax.f32 %v956, %v962
          %v965 = vmax.f32 %v959, %v963
          %s966 = scalar_lea.vmem [#allocation2], 408
          %967 = vst.msk [vmem:[%s966 + $0x1] sm:$0xff] %vm801, %v964
          %968 = vst.msk [vmem:[%s966 + $0x9] sm:$0xff] %vm801, %v965
        $region64: #{tpu_custom_call.1} parent=47 // pred_fallthru
          _
        %v969 = vld [vmem:[#allocation2] sm:$0xff]
        %v970 = vld [vmem:[#allocation2 + $0x8] sm:$0xff]
        %v971 = vld [vmem:[#allocation2 + $0x18] sm:$0xff]
        %v972 = vld [vmem:[#allocation2 + $0x20] sm:$0xff]
        %v973 = vld [vmem:[#allocation2 + $0x30] sm:$0xff]
        %v974 = vld [vmem:[#allocation2 + $0x38] sm:$0xff]
        %v975 = vld [vmem:[#allocation2 + $0x48] sm:$0xff]
        %v976 = vld [vmem:[#allocation2 + $0x50] sm:$0xff]
        %v977 = vld [vmem:[#allocation2 + $0x60] sm:$0xff]
        %v978 = vld [vmem:[#allocation2 + $0x68] sm:$0xff]
        %v979 = vld [vmem:[#allocation2 + $0x78] sm:$0xff]
        %v980 = vld [vmem:[#allocation2 + $0x80] sm:$0xff]
        %v981 = vld [vmem:[#allocation2 + $0x90] sm:$0xff]
        %v982 = vld [vmem:[#allocation2 + $0x98] sm:$0xff]
        %v983 = vld [vmem:[#allocation2 + $0xa8] sm:$0xff]
        %v984 = vld [vmem:[#allocation2 + $0xb0] sm:$0xff]
        %v985 = vld [vmem:[#allocation2 + $0xc0] sm:$0xff]
        %v986 = vld [vmem:[#allocation2 + $0xc8] sm:$0xff]
        %v987 = vld [vmem:[#allocation2 + $0xd8] sm:$0xff]
        %v988 = vld [vmem:[#allocation2 + $0xe0] sm:$0xff]
        %v989 = vld [vmem:[#allocation2 + $0xf0] sm:$0xff]
        %v990 = vld [vmem:[#allocation2 + $0xf8] sm:$0xff]
        %v991 = vld [vmem:[#allocation2 + $0x108] sm:$0xff]
        %v992 = vld [vmem:[#allocation2 + $0x110] sm:$0xff]
        %v993 = vld [vmem:[#allocation2 + $0x120] sm:$0xff]
        %v994 = vld [vmem:[#allocation2 + $0x128] sm:$0xff]
        %v995 = vld [vmem:[#allocation2 + $0x138] sm:$0xff]
        %v996 = vld [vmem:[#allocation2 + $0x140] sm:$0xff]
        %v997 = vld [vmem:[#allocation2 + $0x150] sm:$0xff]
        %v998 = vld [vmem:[#allocation2 + $0x158] sm:$0xff]
        %v999 = vld [vmem:[#allocation2 + $0x168] sm:$0xff]
        %v1000 = vld [vmem:[#allocation2 + $0x170] sm:$0xff]
        %v1001 = vld [vmem:[#allocation2 + $0x1] sm:$0xff]
        %v1002 = vld [vmem:[#allocation2 + $0x9] sm:$0xff]
        %v1003 = vld [vmem:[#allocation2 + $0x19] sm:$0xff]
        %v1004 = vld [vmem:[#allocation2 + $0x21] sm:$0xff]
        %v1005 = vld [vmem:[#allocation2 + $0x31] sm:$0xff]
        %v1006 = vld [vmem:[#allocation2 + $0x39] sm:$0xff]
        %v1007 = vld [vmem:[#allocation2 + $0x49] sm:$0xff]
        %v1008 = vld [vmem:[#allocation2 + $0x51] sm:$0xff]
        %v1009 = vld [vmem:[#allocation2 + $0x61] sm:$0xff]
        %v1010 = vld [vmem:[#allocation2 + $0x69] sm:$0xff]
        %v1011 = vld [vmem:[#allocation2 + $0x79] sm:$0xff]
        %v1012 = vld [vmem:[#allocation2 + $0x81] sm:$0xff]
        %v1013 = vld [vmem:[#allocation2 + $0x91] sm:$0xff]
        %v1014 = vld [vmem:[#allocation2 + $0x99] sm:$0xff]
        %v1015 = vld [vmem:[#allocation2 + $0xa9] sm:$0xff]
        %v1016 = vld [vmem:[#allocation2 + $0xb1] sm:$0xff]
        %v1017 = vld [vmem:[#allocation2 + $0xc1] sm:$0xff]
        %v1018 = vld [vmem:[#allocation2 + $0xc9] sm:$0xff]
        %v1019 = vld [vmem:[#allocation2 + $0xd9] sm:$0xff]
        %v1020 = vld [vmem:[#allocation2 + $0xe1] sm:$0xff]
        %v1021 = vld [vmem:[#allocation2 + $0xf1] sm:$0xff]
        %v1022 = vld [vmem:[#allocation2 + $0xf9] sm:$0xff]
        %v1023 = vld [vmem:[#allocation2 + $0x109] sm:$0xff]
        %v1024 = vld [vmem:[#allocation2 + $0x111] sm:$0xff]
        %v1025 = vld [vmem:[#allocation2 + $0x121] sm:$0xff]
        %v1026 = vld [vmem:[#allocation2 + $0x129] sm:$0xff]
        %v1027 = vld [vmem:[#allocation2 + $0x139] sm:$0xff]
        %v1028 = vld [vmem:[#allocation2 + $0x141] sm:$0xff]
        %v1029 = vld [vmem:[#allocation2 + $0x151] sm:$0xff]
        %v1030 = vld [vmem:[#allocation2 + $0x159] sm:$0xff]
        %v1031 = vld [vmem:[#allocation2 + $0x169] sm:$0xff]
        %v1032 = vld [vmem:[#allocation2 + $0x171] sm:$0xff]
        %v1033 = vld [vmem:[#allocation2 + $0x2] sm:$0xff]
        %v1034 = vld [vmem:[#allocation2 + $0xa] sm:$0xff]
        %v1035 = vld [vmem:[#allocation2 + $0x1a] sm:$0xff]
        %v1036 = vld [vmem:[#allocation2 + $0x22] sm:$0xff]
        %v1037 = vld [vmem:[#allocation2 + $0x32] sm:$0xff]
        %v1038 = vld [vmem:[#allocation2 + $0x3a] sm:$0xff]
        %v1039 = vld [vmem:[#allocation2 + $0x4a] sm:$0xff]
        %v1040 = vld [vmem:[#allocation2 + $0x52] sm:$0xff]
        %v1041 = vld [vmem:[#allocation2 + $0x62] sm:$0xff]
        %v1042 = vld [vmem:[#allocation2 + $0x6a] sm:$0xff]
        %v1043 = vld [vmem:[#allocation2 + $0x7a] sm:$0xff]
        %v1044 = vld [vmem:[#allocation2 + $0x82] sm:$0xff]
        %v1045 = vld [vmem:[#allocation2 + $0x92] sm:$0xff]
        %v1046 = vld [vmem:[#allocation2 + $0x9a] sm:$0xff]
        %v1047 = vld [vmem:[#allocation2 + $0xaa] sm:$0xff]
        %v1048 = vld [vmem:[#allocation2 + $0xb2] sm:$0xff]
        %v1049 = vld [vmem:[#allocation2 + $0xc2] sm:$0xff]
        %v1050 = vld [vmem:[#allocation2 + $0xca] sm:$0xff]
        %v1051 = vld [vmem:[#allocation2 + $0xda] sm:$0xff]
        %v1052 = vld [vmem:[#allocation2 + $0xe2] sm:$0xff]
        %v1053 = vld [vmem:[#allocation2 + $0xf2] sm:$0xff]
        %v1054 = vld [vmem:[#allocation2 + $0xfa] sm:$0xff]
        %v1055 = vld [vmem:[#allocation2 + $0x10a] sm:$0xff]
        %v1056 = vld [vmem:[#allocation2 + $0x112] sm:$0xff]
        %v1057 = vld [vmem:[#allocation2 + $0x122] sm:$0xff]
        %v1058 = vld [vmem:[#allocation2 + $0x12a] sm:$0xff]
        %v1059 = vld [vmem:[#allocation2 + $0x13a] sm:$0xff]
        %v1060 = vld [vmem:[#allocation2 + $0x142] sm:$0xff]
        %v1061 = vld [vmem:[#allocation2 + $0x152] sm:$0xff]
        %v1062 = vld [vmem:[#allocation2 + $0x15a] sm:$0xff]
        %v1063 = vld [vmem:[#allocation2 + $0x16a] sm:$0xff]
        %v1064 = vld [vmem:[#allocation2 + $0x172] sm:$0xff]
        %v1065 = vld [vmem:[%s800] sm:$0xff]
        %v1066 = vld [vmem:[%s800 + $0x8] sm:$0xff]
        %v1067 = vld [vmem:[%s800 + $0x18] sm:$0xff]
        %v1068 = vld [vmem:[%s800 + $0x20] sm:$0xff]
        %v1069 = vld [vmem:[%s800 + $0x30] sm:$0xff]
        %v1070 = vld [vmem:[%s800 + $0x38] sm:$0xff]
        %v1071 = vld [vmem:[%s800 + $0x48] sm:$0xff]
        %v1072 = vld [vmem:[%s800 + $0x50] sm:$0xff]
        %v1073 = vld [vmem:[%s800 + $0x60] sm:$0xff]
        %v1074 = vld [vmem:[%s800 + $0x68] sm:$0xff]
        %v1075 = vld [vmem:[%s800 + $0x78] sm:$0xff]
        %v1076 = vld [vmem:[%s800 + $0x80] sm:$0xff]
        %v1077 = vld [vmem:[%s800 + $0x90] sm:$0xff]
        %v1078 = vld [vmem:[%s800 + $0x98] sm:$0xff]
        %v1079 = vld [vmem:[%s800 + $0xa8] sm:$0xff]
        %v1080 = vld [vmem:[%s800 + $0xb0] sm:$0xff]
        %v1081 = vld [vmem:[%s800 + $0xc0] sm:$0xff]
        %v1082 = vld [vmem:[%s800 + $0xc8] sm:$0xff]
        %v1083 = vld [vmem:[%s800 + $0xd8] sm:$0xff]
        %v1084 = vld [vmem:[%s800 + $0xe0] sm:$0xff]
        %v1085 = vld [vmem:[%s800 + $0xf0] sm:$0xff]
        %v1086 = vld [vmem:[%s800 + $0xf8] sm:$0xff]
        %v1087 = vld [vmem:[%s800 + $0x108] sm:$0xff]
        %v1088 = vld [vmem:[%s800 + $0x110] sm:$0xff]
        %v1089 = vld [vmem:[%s800 + $0x120] sm:$0xff]
        %v1090 = vld [vmem:[%s800 + $0x128] sm:$0xff]
        %v1091 = vld [vmem:[%s800 + $0x138] sm:$0xff]
        %v1092 = vld [vmem:[%s800 + $0x140] sm:$0xff]
        %v1093 = vld [vmem:[%s800 + $0x150] sm:$0xff]
        %v1094 = vld [vmem:[%s800 + $0x158] sm:$0xff]
        %v1095 = vld [vmem:[%s800 + $0x168] sm:$0xff]
        %v1096 = vld [vmem:[%s800 + $0x170] sm:$0xff]
        %v1097 = vld [vmem:[%s800 + $0x1] sm:$0xff]
        %v1098 = vld [vmem:[%s800 + $0x9] sm:$0xff]
        %v1099 = vld [vmem:[%s800 + $0x19] sm:$0xff]
        %v1100 = vld [vmem:[%s800 + $0x21] sm:$0xff]
        %v1101 = vld [vmem:[%s800 + $0x31] sm:$0xff]
        %v1102 = vld [vmem:[%s800 + $0x39] sm:$0xff]
        %v1103 = vld [vmem:[%s800 + $0x49] sm:$0xff]
        %v1104 = vld [vmem:[%s800 + $0x51] sm:$0xff]
        %v1105 = vld [vmem:[%s800 + $0x61] sm:$0xff]
        %v1106 = vld [vmem:[%s800 + $0x69] sm:$0xff]
        %v1107 = vld [vmem:[%s800 + $0x79] sm:$0xff]
        %v1108 = vld [vmem:[%s800 + $0x81] sm:$0xff]
        %v1109 = vld [vmem:[%s800 + $0x91] sm:$0xff]
        %v1110 = vld [vmem:[%s800 + $0x99] sm:$0xff]
        %v1111 = vld [vmem:[%s800 + $0xa9] sm:$0xff]
        %v1112 = vld [vmem:[%s800 + $0xb1] sm:$0xff]
        %v1113 = vld [vmem:[%s800 + $0xc1] sm:$0xff]
        %v1114 = vld [vmem:[%s800 + $0xc9] sm:$0xff]
        %v1115 = vld [vmem:[%s800 + $0xd9] sm:$0xff]
        %v1116 = vld [vmem:[%s800 + $0xe1] sm:$0xff]
        %v1117 = vld [vmem:[%s800 + $0xf1] sm:$0xff]
        %v1118 = vld [vmem:[%s800 + $0xf9] sm:$0xff]
        %v1119 = vld [vmem:[%s800 + $0x109] sm:$0xff]
        %v1120 = vld [vmem:[%s800 + $0x111] sm:$0xff]
        %v1121 = vld [vmem:[%s800 + $0x121] sm:$0xff]
        %v1122 = vld [vmem:[%s800 + $0x129] sm:$0xff]
        %v1123 = vld [vmem:[%s800 + $0x139] sm:$0xff]
        %v1124 = vld [vmem:[%s800 + $0x141] sm:$0xff]
        %v1125 = vld [vmem:[%s800 + $0x151] sm:$0xff]
        %v1126 = vld [vmem:[%s800 + $0x159] sm:$0xff]
        %v1127 = vld [vmem:[%s800 + $0x169] sm:$0xff]
        %v1128 = vld [vmem:[%s800 + $0x171] sm:$0xff]
        %v1129 = vld [vmem:[%s800 + $0x2] sm:$0xff]
        %v1130 = vld [vmem:[%s800 + $0xa] sm:$0xff]
        %v1131 = vld [vmem:[%s800 + $0x1a] sm:$0xff]
        %v1132 = vld [vmem:[%s800 + $0x22] sm:$0xff]
        %v1133 = vld [vmem:[%s800 + $0x32] sm:$0xff]
        %v1134 = vld [vmem:[%s800 + $0x3a] sm:$0xff]
        %v1135 = vld [vmem:[%s800 + $0x4a] sm:$0xff]
        %v1136 = vld [vmem:[%s800 + $0x52] sm:$0xff]
        %v1137 = vld [vmem:[%s800 + $0x62] sm:$0xff]
        %v1138 = vld [vmem:[%s800 + $0x6a] sm:$0xff]
        %v1139 = vld [vmem:[%s800 + $0x7a] sm:$0xff]
        %v1140 = vld [vmem:[%s800 + $0x82] sm:$0xff]
        %v1141 = vld [vmem:[%s800 + $0x92] sm:$0xff]
        %v1142 = vld [vmem:[%s800 + $0x9a] sm:$0xff]
        %v1143 = vld [vmem:[%s800 + $0xaa] sm:$0xff]
        %v1144 = vld [vmem:[%s800 + $0xb2] sm:$0xff]
        %v1145 = vld [vmem:[%s800 + $0xc2] sm:$0xff]
        %v1146 = vld [vmem:[%s800 + $0xca] sm:$0xff]
        %v1147 = vld [vmem:[%s800 + $0xda] sm:$0xff]
        %v1148 = vld [vmem:[%s800 + $0xe2] sm:$0xff]
        %v1149 = vld [vmem:[%s800 + $0xf2] sm:$0xff]
        %v1150 = vld [vmem:[%s800 + $0xfa] sm:$0xff]
        %v1151 = vld [vmem:[%s800 + $0x10a] sm:$0xff]
        %v1152 = vld [vmem:[%s800 + $0x112] sm:$0xff]
        %v1153 = vld [vmem:[%s800 + $0x122] sm:$0xff]
        %v1154 = vld [vmem:[%s800 + $0x12a] sm:$0xff]
        %v1155 = vld [vmem:[%s800 + $0x13a] sm:$0xff]
        %v1156 = vld [vmem:[%s800 + $0x142] sm:$0xff]
        %v1157 = vld [vmem:[%s800 + $0x152] sm:$0xff]
        %v1158 = vld [vmem:[%s800 + $0x15a] sm:$0xff]
        %v1159 = vld [vmem:[%s800 + $0x16a] sm:$0xff]
        %v1160 = vld [vmem:[%s800 + $0x172] sm:$0xff]
        %s1161 = scalar_lea.vmem [#allocation2], 48
        %v1162 = vld [vmem:[%s1161] sm:$0xff]
        %v1163 = vld [vmem:[%s1161 + $0x8] sm:$0xff]
        %v1164 = vld [vmem:[%s1161 + $0x18] sm:$0xff]
        %v1165 = vld [vmem:[%s1161 + $0x20] sm:$0xff]
        %v1166 = vld [vmem:[%s1161 + $0x30] sm:$0xff]
        %v1167 = vld [vmem:[%s1161 + $0x38] sm:$0xff]
        %v1168 = vld [vmem:[%s1161 + $0x48] sm:$0xff]
        %v1169 = vld [vmem:[%s1161 + $0x50] sm:$0xff]
        %v1170 = vld [vmem:[%s1161 + $0x60] sm:$0xff]
        %v1171 = vld [vmem:[%s1161 + $0x68] sm:$0xff]
        %v1172 = vld [vmem:[%s1161 + $0x78] sm:$0xff]
        %v1173 = vld [vmem:[%s1161 + $0x80] sm:$0xff]
        %v1174 = vld [vmem:[%s1161 + $0x90] sm:$0xff]
        %v1175 = vld [vmem:[%s1161 + $0x98] sm:$0xff]
        %v1176 = vld [vmem:[%s1161 + $0xa8] sm:$0xff]
        %v1177 = vld [vmem:[%s1161 + $0xb0] sm:$0xff]
        %v1178 = vld [vmem:[%s1161 + $0xc0] sm:$0xff]
        %v1179 = vld [vmem:[%s1161 + $0xc8] sm:$0xff]
        %v1180 = vld [vmem:[%s1161 + $0xd8] sm:$0xff]
        %v1181 = vld [vmem:[%s1161 + $0xe0] sm:$0xff]
        %v1182 = vld [vmem:[%s1161 + $0xf0] sm:$0xff]
        %v1183 = vld [vmem:[%s1161 + $0xf8] sm:$0xff]
        %v1184 = vld [vmem:[%s1161 + $0x108] sm:$0xff]
        %v1185 = vld [vmem:[%s1161 + $0x110] sm:$0xff]
        %v1186 = vld [vmem:[%s1161 + $0x120] sm:$0xff]
        %v1187 = vld [vmem:[%s1161 + $0x128] sm:$0xff]
        %v1188 = vld [vmem:[%s1161 + $0x138] sm:$0xff]
        %v1189 = vld [vmem:[%s1161 + $0x140] sm:$0xff]
        %v1190 = vld [vmem:[%s1161 + $0x150] sm:$0xff]
        %v1191 = vld [vmem:[%s1161 + $0x158] sm:$0xff]
        %v1192 = vld [vmem:[%s1161 + $0x168] sm:$0xff]
        %v1193 = vld [vmem:[%s1161 + $0x170] sm:$0xff]
        %v1194 = vld [vmem:[%s1161 + $0x1] sm:$0xff]
        %v1195 = vld [vmem:[%s1161 + $0x9] sm:$0xff]
        %v1196 = vld [vmem:[%s1161 + $0x19] sm:$0xff]
        %v1197 = vld [vmem:[%s1161 + $0x21] sm:$0xff]
        %v1198 = vld [vmem:[%s1161 + $0x31] sm:$0xff]
        %v1199 = vld [vmem:[%s1161 + $0x39] sm:$0xff]
        %v1200 = vld [vmem:[%s1161 + $0x49] sm:$0xff]
        %v1201 = vld [vmem:[%s1161 + $0x51] sm:$0xff]
        %v1202 = vld [vmem:[%s1161 + $0x61] sm:$0xff]
        %v1203 = vld [vmem:[%s1161 + $0x69] sm:$0xff]
        %v1204 = vld [vmem:[%s1161 + $0x79] sm:$0xff]
        %v1205 = vld [vmem:[%s1161 + $0x81] sm:$0xff]
        %v1206 = vld [vmem:[%s1161 + $0x91] sm:$0xff]
        %v1207 = vld [vmem:[%s1161 + $0x99] sm:$0xff]
        %v1208 = vld [vmem:[%s1161 + $0xa9] sm:$0xff]
        %v1209 = vld [vmem:[%s1161 + $0xb1] sm:$0xff]
        %v1210 = vld [vmem:[%s1161 + $0xc1] sm:$0xff]
        %v1211 = vld [vmem:[%s1161 + $0xc9] sm:$0xff]
        %v1212 = vld [vmem:[%s1161 + $0xd9] sm:$0xff]
        %v1213 = vld [vmem:[%s1161 + $0xe1] sm:$0xff]
        %v1214 = vld [vmem:[%s1161 + $0xf1] sm:$0xff]
        %v1215 = vld [vmem:[%s1161 + $0xf9] sm:$0xff]
        %v1216 = vld [vmem:[%s1161 + $0x109] sm:$0xff]
        %v1217 = vld [vmem:[%s1161 + $0x111] sm:$0xff]
        %v1218 = vld [vmem:[%s1161 + $0x121] sm:$0xff]
        %v1219 = vld [vmem:[%s1161 + $0x129] sm:$0xff]
        %v1220 = vld [vmem:[%s1161 + $0x139] sm:$0xff]
        %v1221 = vld [vmem:[%s1161 + $0x141] sm:$0xff]
        %v1222 = vld [vmem:[%s1161 + $0x151] sm:$0xff]
        %v1223 = vld [vmem:[%s1161 + $0x159] sm:$0xff]
        %v1224 = vld [vmem:[%s1161 + $0x169] sm:$0xff]
        %v1225 = vld [vmem:[%s1161 + $0x171] sm:$0xff]
        %v1226 = vld [vmem:[%s1161 + $0x2] sm:$0xff]
        %v1227 = vld [vmem:[%s1161 + $0xa] sm:$0xff]
        %v1228 = vld [vmem:[%s1161 + $0x1a] sm:$0xff]
        %v1229 = vld [vmem:[%s1161 + $0x22] sm:$0xff]
        %v1230 = vld [vmem:[%s1161 + $0x32] sm:$0xff]
        %v1231 = vld [vmem:[%s1161 + $0x3a] sm:$0xff]
        %v1232 = vld [vmem:[%s1161 + $0x4a] sm:$0xff]
        %v1233 = vld [vmem:[%s1161 + $0x52] sm:$0xff]
        %v1234 = vld [vmem:[%s1161 + $0x62] sm:$0xff]
        %v1235 = vld [vmem:[%s1161 + $0x6a] sm:$0xff]
        %v1236 = vld [vmem:[%s1161 + $0x7a] sm:$0xff]
        %v1237 = vld [vmem:[%s1161 + $0x82] sm:$0xff]
        %v1238 = vld [vmem:[%s1161 + $0x92] sm:$0xff]
        %v1239 = vld [vmem:[%s1161 + $0x9a] sm:$0xff]
        %v1240 = vld [vmem:[%s1161 + $0xaa] sm:$0xff]
        %v1241 = vld [vmem:[%s1161 + $0xb2] sm:$0xff]
        %v1242 = vld [vmem:[%s1161 + $0xc2] sm:$0xff]
        %v1243 = vld [vmem:[%s1161 + $0xca] sm:$0xff]
        %v1244 = vld [vmem:[%s1161 + $0xda] sm:$0xff]
        %v1245 = vld [vmem:[%s1161 + $0xe2] sm:$0xff]
        %v1246 = vld [vmem:[%s1161 + $0xf2] sm:$0xff]
        %v1247 = vld [vmem:[%s1161 + $0xfa] sm:$0xff]
        %v1248 = vld [vmem:[%s1161 + $0x10a] sm:$0xff]
        %v1249 = vld [vmem:[%s1161 + $0x112] sm:$0xff]
        %v1250 = vld [vmem:[%s1161 + $0x122] sm:$0xff]
        %v1251 = vld [vmem:[%s1161 + $0x12a] sm:$0xff]
        %v1252 = vld [vmem:[%s1161 + $0x13a] sm:$0xff]
        %v1253 = vld [vmem:[%s1161 + $0x142] sm:$0xff]
        %v1254 = vld [vmem:[%s1161 + $0x152] sm:$0xff]
        %v1255 = vld [vmem:[%s1161 + $0x15a] sm:$0xff]
        %v1256 = vld [vmem:[%s1161 + $0x16a] sm:$0xff]
        %v1257 = vld [vmem:[%s1161 + $0x172] sm:$0xff]
        %1290 = vrot.lane.b32.xlu0 %v1001, 8
        %v1291 = vpop.permute.xlu0 %1290
        %1292 = vrot.lane.b32.xlu0 %v1002, 8
        %v1293 = vpop.permute.xlu0 %1292
        %1294 = vrot.lane.b32.xlu0 %v1003, 8
        %v1295 = vpop.permute.xlu0 %1294
        %1296 = vrot.lane.b32.xlu0 %v1004, 8
        %v1297 = vpop.permute.xlu0 %1296
        %1298 = vrot.lane.b32.xlu0 %v1005, 8
        %v1299 = vpop.permute.xlu0 %1298
        %1300 = vrot.lane.b32.xlu0 %v1006, 8
        %v1301 = vpop.permute.xlu0 %1300
        %1302 = vrot.lane.b32.xlu0 %v1007, 8
        %v1303 = vpop.permute.xlu0 %1302
        %1304 = vrot.lane.b32.xlu0 %v1008, 8
        %v1305 = vpop.permute.xlu0 %1304
        %1306 = vrot.lane.b32.xlu0 %v1009, 8
        %v1307 = vpop.permute.xlu0 %1306
        %1308 = vrot.lane.b32.xlu0 %v1010, 8
        %v1309 = vpop.permute.xlu0 %1308
        %1310 = vrot.lane.b32.xlu0 %v1011, 8
        %v1311 = vpop.permute.xlu0 %1310
        %1312 = vrot.lane.b32.xlu0 %v1012, 8
        %v1313 = vpop.permute.xlu0 %1312
        %1314 = vrot.lane.b32.xlu0 %v1013, 8
        %v1315 = vpop.permute.xlu0 %1314
        %1316 = vrot.lane.b32.xlu0 %v1014, 8
        %v1317 = vpop.permute.xlu0 %1316
        %1318 = vrot.lane.b32.xlu0 %v1015, 8
        %v1319 = vpop.permute.xlu0 %1318
        %1320 = vrot.lane.b32.xlu0 %v1016, 8
        %v1321 = vpop.permute.xlu0 %1320
        %1322 = vrot.lane.b32.xlu0 %v1017, 8
        %v1323 = vpop.permute.xlu0 %1322
        %1324 = vrot.lane.b32.xlu0 %v1018, 8
        %v1325 = vpop.permute.xlu0 %1324
        %1326 = vrot.lane.b32.xlu0 %v1019, 8
        %v1327 = vpop.permute.xlu0 %1326
        %1328 = vrot.lane.b32.xlu0 %v1020, 8
        %v1329 = vpop.permute.xlu0 %1328
        %1330 = vrot.lane.b32.xlu0 %v1021, 8
        %v1331 = vpop.permute.xlu0 %1330
        %1332 = vrot.lane.b32.xlu0 %v1022, 8
        %v1333 = vpop.permute.xlu0 %1332
        %1334 = vrot.lane.b32.xlu0 %v1023, 8
        %v1335 = vpop.permute.xlu0 %1334
        %1336 = vrot.lane.b32.xlu0 %v1024, 8
        %v1337 = vpop.permute.xlu0 %1336
        %1338 = vrot.lane.b32.xlu0 %v1025, 8
        %v1339 = vpop.permute.xlu0 %1338
        %1340 = vrot.lane.b32.xlu0 %v1026, 8
        %v1341 = vpop.permute.xlu0 %1340
        %1342 = vrot.lane.b32.xlu0 %v1027, 8
        %v1343 = vpop.permute.xlu0 %1342
        %1344 = vrot.lane.b32.xlu0 %v1028, 8
        %v1345 = vpop.permute.xlu0 %1344
        %1346 = vrot.lane.b32.xlu0 %v1029, 8
        %v1347 = vpop.permute.xlu0 %1346
        %1348 = vrot.lane.b32.xlu0 %v1030, 8
        %v1349 = vpop.permute.xlu0 %1348
        %1350 = vrot.lane.b32.xlu0 %v1031, 8
        %v1351 = vpop.permute.xlu0 %1350
        %1352 = vrot.lane.b32.xlu0 %v1032, 8
        %v1353 = vpop.permute.xlu0 %1352
        %1418 = vrot.lane.b32.xlu0 %v1033, 16
        %v1419 = vpop.permute.xlu0 %1418
        %1420 = vrot.lane.b32.xlu0 %v1034, 16
        %v1421 = vpop.permute.xlu0 %1420
        %1422 = vrot.lane.b32.xlu0 %v1035, 16
        %v1423 = vpop.permute.xlu0 %1422
        %1424 = vrot.lane.b32.xlu0 %v1036, 16
        %v1425 = vpop.permute.xlu0 %1424
        %1426 = vrot.lane.b32.xlu0 %v1037, 16
        %v1427 = vpop.permute.xlu0 %1426
        %1428 = vrot.lane.b32.xlu0 %v1038, 16
        %v1429 = vpop.permute.xlu0 %1428
        %1430 = vrot.lane.b32.xlu0 %v1039, 16
        %v1431 = vpop.permute.xlu0 %1430
        %1432 = vrot.lane.b32.xlu0 %v1040, 16
        %v1433 = vpop.permute.xlu0 %1432
        %1434 = vrot.lane.b32.xlu0 %v1041, 16
        %v1435 = vpop.permute.xlu0 %1434
        %1436 = vrot.lane.b32.xlu0 %v1042, 16
        %v1437 = vpop.permute.xlu0 %1436
        %1438 = vrot.lane.b32.xlu0 %v1043, 16
        %v1439 = vpop.permute.xlu0 %1438
        %1440 = vrot.lane.b32.xlu0 %v1044, 16
        %v1441 = vpop.permute.xlu0 %1440
        %1442 = vrot.lane.b32.xlu0 %v1045, 16
        %v1443 = vpop.permute.xlu0 %1442
        %1444 = vrot.lane.b32.xlu0 %v1046, 16
        %v1445 = vpop.permute.xlu0 %1444
        %1446 = vrot.lane.b32.xlu0 %v1047, 16
        %v1447 = vpop.permute.xlu0 %1446
        %1448 = vrot.lane.b32.xlu0 %v1048, 16
        %v1449 = vpop.permute.xlu0 %1448
        %1450 = vrot.lane.b32.xlu0 %v1049, 16
        %v1451 = vpop.permute.xlu0 %1450
        %1452 = vrot.lane.b32.xlu0 %v1050, 16
        %v1453 = vpop.permute.xlu0 %1452
        %1454 = vrot.lane.b32.xlu0 %v1051, 16
        %v1455 = vpop.permute.xlu0 %1454
        %1456 = vrot.lane.b32.xlu0 %v1052, 16
        %v1457 = vpop.permute.xlu0 %1456
        %1458 = vrot.lane.b32.xlu0 %v1053, 16
        %v1459 = vpop.permute.xlu0 %1458
        %1460 = vrot.lane.b32.xlu0 %v1054, 16
        %v1461 = vpop.permute.xlu0 %1460
        %1462 = vrot.lane.b32.xlu0 %v1055, 16
        %v1463 = vpop.permute.xlu0 %1462
        %1464 = vrot.lane.b32.xlu0 %v1056, 16
        %v1465 = vpop.permute.xlu0 %1464
        %1466 = vrot.lane.b32.xlu0 %v1057, 16
        %v1467 = vpop.permute.xlu0 %1466
        %1468 = vrot.lane.b32.xlu0 %v1058, 16
        %v1469 = vpop.permute.xlu0 %1468
        %1470 = vrot.lane.b32.xlu0 %v1059, 16
        %v1471 = vpop.permute.xlu0 %1470
        %1472 = vrot.lane.b32.xlu0 %v1060, 16
        %v1473 = vpop.permute.xlu0 %1472
        %1474 = vrot.lane.b32.xlu0 %v1061, 16
        %v1475 = vpop.permute.xlu0 %1474
        %1476 = vrot.lane.b32.xlu0 %v1062, 16
        %v1477 = vpop.permute.xlu0 %1476
        %1478 = vrot.lane.b32.xlu0 %v1063, 16
        %v1479 = vpop.permute.xlu0 %1478
        %1480 = vrot.lane.b32.xlu0 %v1064, 16
        %v1481 = vpop.permute.xlu0 %1480
        %1546 = vrot.lane.b32.xlu0 %v1065, 24
        %v1547 = vpop.permute.xlu0 %1546
        %1548 = vrot.lane.b32.xlu0 %v1066, 24
        %v1549 = vpop.permute.xlu0 %1548
        %1550 = vrot.lane.b32.xlu0 %v1067, 24
        %v1551 = vpop.permute.xlu0 %1550
        %1552 = vrot.lane.b32.xlu0 %v1068, 24
        %v1553 = vpop.permute.xlu0 %1552
        %1554 = vrot.lane.b32.xlu0 %v1069, 24
        %v1555 = vpop.permute.xlu0 %1554
        %1556 = vrot.lane.b32.xlu0 %v1070, 24
        %v1557 = vpop.permute.xlu0 %1556
        %1558 = vrot.lane.b32.xlu0 %v1071, 24
        %v1559 = vpop.permute.xlu0 %1558
        %1560 = vrot.lane.b32.xlu0 %v1072, 24
        %v1561 = vpop.permute.xlu0 %1560
        %1562 = vrot.lane.b32.xlu0 %v1073, 24
        %v1563 = vpop.permute.xlu0 %1562
        %1564 = vrot.lane.b32.xlu0 %v1074, 24
        %v1565 = vpop.permute.xlu0 %1564
        %1566 = vrot.lane.b32.xlu0 %v1075, 24
        %v1567 = vpop.permute.xlu0 %1566
        %1568 = vrot.lane.b32.xlu0 %v1076, 24
        %v1569 = vpop.permute.xlu0 %1568
        %1570 = vrot.lane.b32.xlu0 %v1077, 24
        %v1571 = vpop.permute.xlu0 %1570
        %1572 = vrot.lane.b32.xlu0 %v1078, 24
        %v1573 = vpop.permute.xlu0 %1572
        %1574 = vrot.lane.b32.xlu0 %v1079, 24
        %v1575 = vpop.permute.xlu0 %1574
        %1576 = vrot.lane.b32.xlu0 %v1080, 24
        %v1577 = vpop.permute.xlu0 %1576
        %1578 = vrot.lane.b32.xlu0 %v1081, 24
        %v1579 = vpop.permute.xlu0 %1578
        %1580 = vrot.lane.b32.xlu0 %v1082, 24
        %v1581 = vpop.permute.xlu0 %1580
        %1582 = vrot.lane.b32.xlu0 %v1083, 24
        %v1583 = vpop.permute.xlu0 %1582
        %1584 = vrot.lane.b32.xlu0 %v1084, 24
        %v1585 = vpop.permute.xlu0 %1584
        %1586 = vrot.lane.b32.xlu0 %v1085, 24
        %v1587 = vpop.permute.xlu0 %1586
        %1588 = vrot.lane.b32.xlu0 %v1086, 24
        %v1589 = vpop.permute.xlu0 %1588
        %1590 = vrot.lane.b32.xlu0 %v1087, 24
        %v1591 = vpop.permute.xlu0 %1590
        %1592 = vrot.lane.b32.xlu0 %v1088, 24
        %v1593 = vpop.permute.xlu0 %1592
        %1594 = vrot.lane.b32.xlu0 %v1089, 24
        %v1595 = vpop.permute.xlu0 %1594
        %1596 = vrot.lane.b32.xlu0 %v1090, 24
        %v1597 = vpop.permute.xlu0 %1596
        %1598 = vrot.lane.b32.xlu0 %v1091, 24
        %v1599 = vpop.permute.xlu0 %1598
        %1600 = vrot.lane.b32.xlu0 %v1092, 24
        %v1601 = vpop.permute.xlu0 %1600
        %1602 = vrot.lane.b32.xlu0 %v1093, 24
        %v1603 = vpop.permute.xlu0 %1602
        %1604 = vrot.lane.b32.xlu0 %v1094, 24
        %v1605 = vpop.permute.xlu0 %1604
        %1606 = vrot.lane.b32.xlu0 %v1095, 24
        %v1607 = vpop.permute.xlu0 %1606
        %1608 = vrot.lane.b32.xlu0 %v1096, 24
        %v1609 = vpop.permute.xlu0 %1608
        %1674 = vrot.lane.b32.xlu0 %v1097, 32
        %v1675 = vpop.permute.xlu0 %1674
        %1676 = vrot.lane.b32.xlu0 %v1098, 32
        %v1677 = vpop.permute.xlu0 %1676
        %1678 = vrot.lane.b32.xlu0 %v1099, 32
        %v1679 = vpop.permute.xlu0 %1678
        %1680 = vrot.lane.b32.xlu0 %v1100, 32
        %v1681 = vpop.permute.xlu0 %1680
        %1682 = vrot.lane.b32.xlu0 %v1101, 32
        %v1683 = vpop.permute.xlu0 %1682
        %1684 = vrot.lane.b32.xlu0 %v1102, 32
        %v1685 = vpop.permute.xlu0 %1684
        %1686 = vrot.lane.b32.xlu0 %v1103, 32
        %v1687 = vpop.permute.xlu0 %1686
        %1688 = vrot.lane.b32.xlu0 %v1104, 32
        %v1689 = vpop.permute.xlu0 %1688
        %1690 = vrot.lane.b32.xlu0 %v1105, 32
        %v1691 = vpop.permute.xlu0 %1690
        %1692 = vrot.lane.b32.xlu0 %v1106, 32
        %v1693 = vpop.permute.xlu0 %1692
        %1694 = vrot.lane.b32.xlu0 %v1107, 32
        %v1695 = vpop.permute.xlu0 %1694
        %1696 = vrot.lane.b32.xlu0 %v1108, 32
        %v1697 = vpop.permute.xlu0 %1696
        %1698 = vrot.lane.b32.xlu0 %v1109, 32
        %v1699 = vpop.permute.xlu0 %1698
        %1700 = vrot.lane.b32.xlu0 %v1110, 32
        %v1701 = vpop.permute.xlu0 %1700
        %1702 = vrot.lane.b32.xlu0 %v1111, 32
        %v1703 = vpop.permute.xlu0 %1702
        %1704 = vrot.lane.b32.xlu0 %v1112, 32
        %v1705 = vpop.permute.xlu0 %1704
        %1706 = vrot.lane.b32.xlu0 %v1113, 32
        %v1707 = vpop.permute.xlu0 %1706
        %1708 = vrot.lane.b32.xlu0 %v1114, 32
        %v1709 = vpop.permute.xlu0 %1708
        %1710 = vrot.lane.b32.xlu0 %v1115, 32
        %v1711 = vpop.permute.xlu0 %1710
        %1712 = vrot.lane.b32.xlu0 %v1116, 32
        %v1713 = vpop.permute.xlu0 %1712
        %1714 = vrot.lane.b32.xlu0 %v1117, 32
        %v1715 = vpop.permute.xlu0 %1714
        %1716 = vrot.lane.b32.xlu0 %v1118, 32
        %v1717 = vpop.permute.xlu0 %1716
        %1718 = vrot.lane.b32.xlu0 %v1119, 32
        %v1719 = vpop.permute.xlu0 %1718
        %1720 = vrot.lane.b32.xlu0 %v1120, 32
        %v1721 = vpop.permute.xlu0 %1720
        %1722 = vrot.lane.b32.xlu0 %v1121, 32
        %v1723 = vpop.permute.xlu0 %1722
        %1724 = vrot.lane.b32.xlu0 %v1122, 32
        %v1725 = vpop.permute.xlu0 %1724
        %1726 = vrot.lane.b32.xlu0 %v1123, 32
        %v1727 = vpop.permute.xlu0 %1726
        %1728 = vrot.lane.b32.xlu0 %v1124, 32
        %v1729 = vpop.permute.xlu0 %1728
        %1730 = vrot.lane.b32.xlu0 %v1125, 32
        %v1731 = vpop.permute.xlu0 %1730
        %1732 = vrot.lane.b32.xlu0 %v1126, 32
        %v1733 = vpop.permute.xlu0 %1732
        %1734 = vrot.lane.b32.xlu0 %v1127, 32
        %v1735 = vpop.permute.xlu0 %1734
        %1736 = vrot.lane.b32.xlu0 %v1128, 32
        %v1737 = vpop.permute.xlu0 %1736
        %1802 = vrot.lane.b32.xlu0 %v1129, 40
        %v1803 = vpop.permute.xlu0 %1802
        %1804 = vrot.lane.b32.xlu0 %v1130, 40
        %v1805 = vpop.permute.xlu0 %1804
        %1806 = vrot.lane.b32.xlu0 %v1131, 40
        %v1807 = vpop.permute.xlu0 %1806
        %1808 = vrot.lane.b32.xlu0 %v1132, 40
        %v1809 = vpop.permute.xlu0 %1808
        %1810 = vrot.lane.b32.xlu0 %v1133, 40
        %v1811 = vpop.permute.xlu0 %1810
        %1812 = vrot.lane.b32.xlu0 %v1134, 40
        %v1813 = vpop.permute.xlu0 %1812
        %1814 = vrot.lane.b32.xlu0 %v1135, 40
        %v1815 = vpop.permute.xlu0 %1814
        %1816 = vrot.lane.b32.xlu0 %v1136, 40
        %v1817 = vpop.permute.xlu0 %1816
        %1818 = vrot.lane.b32.xlu0 %v1137, 40
        %v1819 = vpop.permute.xlu0 %1818
        %1820 = vrot.lane.b32.xlu0 %v1138, 40
        %v1821 = vpop.permute.xlu0 %1820
        %1822 = vrot.lane.b32.xlu0 %v1139, 40
        %v1823 = vpop.permute.xlu0 %1822
        %1824 = vrot.lane.b32.xlu0 %v1140, 40
        %v1825 = vpop.permute.xlu0 %1824
        %1826 = vrot.lane.b32.xlu0 %v1141, 40
        %v1827 = vpop.permute.xlu0 %1826
        %1828 = vrot.lane.b32.xlu0 %v1142, 40
        %v1829 = vpop.permute.xlu0 %1828
        %1830 = vrot.lane.b32.xlu0 %v1143, 40
        %v1831 = vpop.permute.xlu0 %1830
        %1832 = vrot.lane.b32.xlu0 %v1144, 40
        %v1833 = vpop.permute.xlu0 %1832
        %1834 = vrot.lane.b32.xlu0 %v1145, 40
        %v1835 = vpop.permute.xlu0 %1834
        %1836 = vrot.lane.b32.xlu0 %v1146, 40
        %v1837 = vpop.permute.xlu0 %1836
        %1838 = vrot.lane.b32.xlu0 %v1147, 40
        %v1839 = vpop.permute.xlu0 %1838
        %1840 = vrot.lane.b32.xlu0 %v1148, 40
        %v1841 = vpop.permute.xlu0 %1840
        %1842 = vrot.lane.b32.xlu0 %v1149, 40
        %v1843 = vpop.permute.xlu0 %1842
        %1844 = vrot.lane.b32.xlu0 %v1150, 40
        %v1845 = vpop.permute.xlu0 %1844
        %1846 = vrot.lane.b32.xlu0 %v1151, 40
        %v1847 = vpop.permute.xlu0 %1846
        %1848 = vrot.lane.b32.xlu0 %v1152, 40
        %v1849 = vpop.permute.xlu0 %1848
        %1850 = vrot.lane.b32.xlu0 %v1153, 40
        %v1851 = vpop.permute.xlu0 %1850
        %1852 = vrot.lane.b32.xlu0 %v1154, 40
        %v1853 = vpop.permute.xlu0 %1852
        %1854 = vrot.lane.b32.xlu0 %v1155, 40
        %v1855 = vpop.permute.xlu0 %1854
        %1856 = vrot.lane.b32.xlu0 %v1156, 40
        %v1857 = vpop.permute.xlu0 %1856
        %1858 = vrot.lane.b32.xlu0 %v1157, 40
        %v1859 = vpop.permute.xlu0 %1858
        %1860 = vrot.lane.b32.xlu0 %v1158, 40
        %v1861 = vpop.permute.xlu0 %1860
        %1862 = vrot.lane.b32.xlu0 %v1159, 40
        %v1863 = vpop.permute.xlu0 %1862
        %1864 = vrot.lane.b32.xlu0 %v1160, 40
        %v1865 = vpop.permute.xlu0 %1864
        %1930 = vrot.lane.b32.xlu0 %v1162, 48
        %v1931 = vpop.permute.xlu0 %1930
        %1932 = vrot.lane.b32.xlu0 %v1163, 48
        %v1933 = vpop.permute.xlu0 %1932
        %1934 = vrot.lane.b32.xlu0 %v1164, 48
        %v1935 = vpop.permute.xlu0 %1934
        %1936 = vrot.lane.b32.xlu0 %v1165, 48
        %v1937 = vpop.permute.xlu0 %1936
        %1938 = vrot.lane.b32.xlu0 %v1166, 48
        %v1939 = vpop.permute.xlu0 %1938
        %1940 = vrot.lane.b32.xlu0 %v1167, 48
        %v1941 = vpop.permute.xlu0 %1940
        %1942 = vrot.lane.b32.xlu0 %v1168, 48
        %v1943 = vpop.permute.xlu0 %1942
        %1944 = vrot.lane.b32.xlu0 %v1169, 48
        %v1945 = vpop.permute.xlu0 %1944
        %1946 = vrot.lane.b32.xlu0 %v1170, 48
        %v1947 = vpop.permute.xlu0 %1946
        %1948 = vrot.lane.b32.xlu0 %v1171, 48
        %v1949 = vpop.permute.xlu0 %1948
        %1950 = vrot.lane.b32.xlu0 %v1172, 48
        %v1951 = vpop.permute.xlu0 %1950
        %1952 = vrot.lane.b32.xlu0 %v1173, 48
        %v1953 = vpop.permute.xlu0 %1952
        %1954 = vrot.lane.b32.xlu0 %v1174, 48
        %v1955 = vpop.permute.xlu0 %1954
        %1956 = vrot.lane.b32.xlu0 %v1175, 48
        %v1957 = vpop.permute.xlu0 %1956
        %1958 = vrot.lane.b32.xlu0 %v1176, 48
        %v1959 = vpop.permute.xlu0 %1958
        %1960 = vrot.lane.b32.xlu0 %v1177, 48
        %v1961 = vpop.permute.xlu0 %1960
        %1962 = vrot.lane.b32.xlu0 %v1178, 48
        %v1963 = vpop.permute.xlu0 %1962
        %1964 = vrot.lane.b32.xlu0 %v1179, 48
        %v1965 = vpop.permute.xlu0 %1964
        %1966 = vrot.lane.b32.xlu0 %v1180, 48
        %v1967 = vpop.permute.xlu0 %1966
        %1968 = vrot.lane.b32.xlu0 %v1181, 48
        %v1969 = vpop.permute.xlu0 %1968
        %1970 = vrot.lane.b32.xlu0 %v1182, 48
        %v1971 = vpop.permute.xlu0 %1970
        %1972 = vrot.lane.b32.xlu0 %v1183, 48
        %v1973 = vpop.permute.xlu0 %1972
        %1974 = vrot.lane.b32.xlu0 %v1184, 48
        %v1975 = vpop.permute.xlu0 %1974
        %1976 = vrot.lane.b32.xlu0 %v1185, 48
        %v1977 = vpop.permute.xlu0 %1976
        %1978 = vrot.lane.b32.xlu0 %v1186, 48
        %v1979 = vpop.permute.xlu0 %1978
        %1980 = vrot.lane.b32.xlu0 %v1187, 48
        %v1981 = vpop.permute.xlu0 %1980
        %1982 = vrot.lane.b32.xlu0 %v1188, 48
        %v1983 = vpop.permute.xlu0 %1982
        %1984 = vrot.lane.b32.xlu0 %v1189, 48
        %v1985 = vpop.permute.xlu0 %1984
        %1986 = vrot.lane.b32.xlu0 %v1190, 48
        %v1987 = vpop.permute.xlu0 %1986
        %1988 = vrot.lane.b32.xlu0 %v1191, 48
        %v1989 = vpop.permute.xlu0 %1988
        %1990 = vrot.lane.b32.xlu0 %v1192, 48
        %v1991 = vpop.permute.xlu0 %1990
        %1992 = vrot.lane.b32.xlu0 %v1193, 48
        %v1993 = vpop.permute.xlu0 %1992
        %2058 = vrot.lane.b32.xlu0 %v1194, 56
        %v2059 = vpop.permute.xlu0 %2058
        %2060 = vrot.lane.b32.xlu0 %v1195, 56
        %v2061 = vpop.permute.xlu0 %2060
        %2062 = vrot.lane.b32.xlu0 %v1196, 56
        %v2063 = vpop.permute.xlu0 %2062
        %2064 = vrot.lane.b32.xlu0 %v1197, 56
        %v2065 = vpop.permute.xlu0 %2064
        %2066 = vrot.lane.b32.xlu0 %v1198, 56
        %v2067 = vpop.permute.xlu0 %2066
        %2068 = vrot.lane.b32.xlu0 %v1199, 56
        %v2069 = vpop.permute.xlu0 %2068
        %2070 = vrot.lane.b32.xlu0 %v1200, 56
        %v2071 = vpop.permute.xlu0 %2070
        %2072 = vrot.lane.b32.xlu0 %v1201, 56
        %v2073 = vpop.permute.xlu0 %2072
        %2074 = vrot.lane.b32.xlu0 %v1202, 56
        %v2075 = vpop.permute.xlu0 %2074
        %2076 = vrot.lane.b32.xlu0 %v1203, 56
        %v2077 = vpop.permute.xlu0 %2076
        %2078 = vrot.lane.b32.xlu0 %v1204, 56
        %v2079 = vpop.permute.xlu0 %2078
        %2080 = vrot.lane.b32.xlu0 %v1205, 56
        %v2081 = vpop.permute.xlu0 %2080
        %2082 = vrot.lane.b32.xlu0 %v1206, 56
        %v2083 = vpop.permute.xlu0 %2082
        %2084 = vrot.lane.b32.xlu0 %v1207, 56
        %v2085 = vpop.permute.xlu0 %2084
        %2086 = vrot.lane.b32.xlu0 %v1208, 56
        %v2087 = vpop.permute.xlu0 %2086
        %2088 = vrot.lane.b32.xlu0 %v1209, 56
        %v2089 = vpop.permute.xlu0 %2088
        %2090 = vrot.lane.b32.xlu0 %v1210, 56
        %v2091 = vpop.permute.xlu0 %2090
        %2092 = vrot.lane.b32.xlu0 %v1211, 56
        %v2093 = vpop.permute.xlu0 %2092
        %2094 = vrot.lane.b32.xlu0 %v1212, 56
        %v2095 = vpop.permute.xlu0 %2094
        %2096 = vrot.lane.b32.xlu0 %v1213, 56
        %v2097 = vpop.permute.xlu0 %2096
        %2098 = vrot.lane.b32.xlu0 %v1214, 56
        %v2099 = vpop.permute.xlu0 %2098
        %2100 = vrot.lane.b32.xlu0 %v1215, 56
        %v2101 = vpop.permute.xlu0 %2100
        %2102 = vrot.lane.b32.xlu0 %v1216, 56
        %v2103 = vpop.permute.xlu0 %2102
        %2104 = vrot.lane.b32.xlu0 %v1217, 56
        %v2105 = vpop.permute.xlu0 %2104
        %2106 = vrot.lane.b32.xlu0 %v1218, 56
        %v2107 = vpop.permute.xlu0 %2106
        %2108 = vrot.lane.b32.xlu0 %v1219, 56
        %v2109 = vpop.permute.xlu0 %2108
        %2110 = vrot.lane.b32.xlu0 %v1220, 56
        %v2111 = vpop.permute.xlu0 %2110
        %2112 = vrot.lane.b32.xlu0 %v1221, 56
        %v2113 = vpop.permute.xlu0 %2112
        %2114 = vrot.lane.b32.xlu0 %v1222, 56
        %v2115 = vpop.permute.xlu0 %2114
        %2116 = vrot.lane.b32.xlu0 %v1223, 56
        %v2117 = vpop.permute.xlu0 %2116
        %2118 = vrot.lane.b32.xlu0 %v1224, 56
        %v2119 = vpop.permute.xlu0 %2118
        %2120 = vrot.lane.b32.xlu0 %v1225, 56
        %v2121 = vpop.permute.xlu0 %2120
        %2186 = vrot.lane.b32.xlu0 %v1226, 64
        %v2187 = vpop.permute.xlu0 %2186
        %2188 = vrot.lane.b32.xlu0 %v1227, 64
        %v2189 = vpop.permute.xlu0 %2188
        %2190 = vrot.lane.b32.xlu0 %v1228, 64
        %v2191 = vpop.permute.xlu0 %2190
        %2192 = vrot.lane.b32.xlu0 %v1229, 64
        %v2193 = vpop.permute.xlu0 %2192
        %2194 = vrot.lane.b32.xlu0 %v1230, 64
        %v2195 = vpop.permute.xlu0 %2194
        %2196 = vrot.lane.b32.xlu0 %v1231, 64
        %v2197 = vpop.permute.xlu0 %2196
        %2198 = vrot.lane.b32.xlu0 %v1232, 64
        %v2199 = vpop.permute.xlu0 %2198
        %2200 = vrot.lane.b32.xlu0 %v1233, 64
        %v2201 = vpop.permute.xlu0 %2200
        %2202 = vrot.lane.b32.xlu0 %v1234, 64
        %v2203 = vpop.permute.xlu0 %2202
        %2204 = vrot.lane.b32.xlu0 %v1235, 64
        %v2205 = vpop.permute.xlu0 %2204
        %2206 = vrot.lane.b32.xlu0 %v1236, 64
        %v2207 = vpop.permute.xlu0 %2206
        %2208 = vrot.lane.b32.xlu0 %v1237, 64
        %v2209 = vpop.permute.xlu0 %2208
        %2210 = vrot.lane.b32.xlu0 %v1238, 64
        %v2211 = vpop.permute.xlu0 %2210
        %2212 = vrot.lane.b32.xlu0 %v1239, 64
        %v2213 = vpop.permute.xlu0 %2212
        %2214 = vrot.lane.b32.xlu0 %v1240, 64
        %v2215 = vpop.permute.xlu0 %2214
        %2216 = vrot.lane.b32.xlu0 %v1241, 64
        %v2217 = vpop.permute.xlu0 %2216
        %2218 = vrot.lane.b32.xlu0 %v1242, 64
        %v2219 = vpop.permute.xlu0 %2218
        %2220 = vrot.lane.b32.xlu0 %v1243, 64
        %v2221 = vpop.permute.xlu0 %2220
        %2222 = vrot.lane.b32.xlu0 %v1244, 64
        %v2223 = vpop.permute.xlu0 %2222
        %2224 = vrot.lane.b32.xlu0 %v1245, 64
        %v2225 = vpop.permute.xlu0 %2224
        %2226 = vrot.lane.b32.xlu0 %v1246, 64
        %v2227 = vpop.permute.xlu0 %2226
        %2228 = vrot.lane.b32.xlu0 %v1247, 64
        %v2229 = vpop.permute.xlu0 %2228
        %2230 = vrot.lane.b32.xlu0 %v1248, 64
        %v2231 = vpop.permute.xlu0 %2230
        %2232 = vrot.lane.b32.xlu0 %v1249, 64
        %v2233 = vpop.permute.xlu0 %2232
        %2234 = vrot.lane.b32.xlu0 %v1250, 64
        %v2235 = vpop.permute.xlu0 %2234
        %2236 = vrot.lane.b32.xlu0 %v1251, 64
        %v2237 = vpop.permute.xlu0 %2236
        %2238 = vrot.lane.b32.xlu0 %v1252, 64
        %v2239 = vpop.permute.xlu0 %2238
        %2240 = vrot.lane.b32.xlu0 %v1253, 64
        %v2241 = vpop.permute.xlu0 %2240
        %2242 = vrot.lane.b32.xlu0 %v1254, 64
        %v2243 = vpop.permute.xlu0 %2242
        %2244 = vrot.lane.b32.xlu0 %v1255, 64
        %v2245 = vpop.permute.xlu0 %2244
        %2246 = vrot.lane.b32.xlu0 %v1256, 64
        %v2247 = vpop.permute.xlu0 %2246
        %2248 = vrot.lane.b32.xlu0 %v1257, 64
        %v2249 = vpop.permute.xlu0 %2248
        %v2282 = vsel %vm801, %v969, %v1291
        %v2283 = vsel %vm801, %v970, %v1293
        %v2284 = vsel %vm801, %v971, %v1295
        %v2285 = vsel %vm801, %v972, %v1297
        %v2286 = vsel %vm801, %v973, %v1299
        %v2287 = vsel %vm801, %v974, %v1301
        %v2288 = vsel %vm801, %v975, %v1303
        %v2289 = vsel %vm801, %v976, %v1305
        %v2290 = vsel %vm801, %v977, %v1307
        %v2291 = vsel %vm801, %v978, %v1309
        %v2292 = vsel %vm801, %v979, %v1311
        %v2293 = vsel %vm801, %v980, %v1313
        %v2294 = vsel %vm801, %v981, %v1315
        %v2295 = vsel %vm801, %v982, %v1317
        %v2296 = vsel %vm801, %v983, %v1319
        %v2297 = vsel %vm801, %v984, %v1321
        %v2298 = vsel %vm801, %v985, %v1323
        %v2299 = vsel %vm801, %v986, %v1325
        %v2300 = vsel %vm801, %v987, %v1327
        %v2301 = vsel %vm801, %v988, %v1329
        %v2302 = vsel %vm801, %v989, %v1331
        %v2303 = vsel %vm801, %v990, %v1333
        %v2304 = vsel %vm801, %v991, %v1335
        %v2305 = vsel %vm801, %v992, %v1337
        %v2306 = vsel %vm801, %v993, %v1339
        %v2307 = vsel %vm801, %v994, %v1341
        %v2308 = vsel %vm801, %v995, %v1343
        %v2309 = vsel %vm801, %v996, %v1345
        %v2310 = vsel %vm801, %v997, %v1347
        %v2311 = vsel %vm801, %v998, %v1349
        %v2312 = vsel %vm801, %v999, %v1351
        %v2313 = vsel %vm801, %v1000, %v1353
        %vm2314 = vcmask 130048
        %v2315 = vsel %vm2314, %v2282, %v1419
        %v2316 = vsel %vm2314, %v2283, %v1421
        %v2317 = vsel %vm2314, %v2284, %v1423
        %v2318 = vsel %vm2314, %v2285, %v1425
        %v2319 = vsel %vm2314, %v2286, %v1427
        %v2320 = vsel %vm2314, %v2287, %v1429
        %v2321 = vsel %vm2314, %v2288, %v1431
        %v2322 = vsel %vm2314, %v2289, %v1433
        %v2323 = vsel %vm2314, %v2290, %v1435
        %v2324 = vsel %vm2314, %v2291, %v1437
        %v2325 = vsel %vm2314, %v2292, %v1439
        %v2326 = vsel %vm2314, %v2293, %v1441
        %v2327 = vsel %vm2314, %v2294, %v1443
        %v2328 = vsel %vm2314, %v2295, %v1445
        %v2329 = vsel %vm2314, %v2296, %v1447
        %v2330 = vsel %vm2314, %v2297, %v1449
        %v2331 = vsel %vm2314, %v2298, %v1451
        %v2332 = vsel %vm2314, %v2299, %v1453
        %v2333 = vsel %vm2314, %v2300, %v1455
        %v2334 = vsel %vm2314, %v2301, %v1457
        %v2335 = vsel %vm2314, %v2302, %v1459
        %v2336 = vsel %vm2314, %v2303, %v1461
        %v2337 = vsel %vm2314, %v2304, %v1463
        %v2338 = vsel %vm2314, %v2305, %v1465
        %v2339 = vsel %vm2314, %v2306, %v1467
        %v2340 = vsel %vm2314, %v2307, %v1469
        %v2341 = vsel %vm2314, %v2308, %v1471
        %v2342 = vsel %vm2314, %v2309, %v1473
        %v2343 = vsel %vm2314, %v2310, %v1475
        %v2344 = vsel %vm2314, %v2311, %v1477
        %v2345 = vsel %vm2314, %v2312, %v1479
        %v2346 = vsel %vm2314, %v2313, %v1481
        %vm2347 = vcmask 195584
        %v2348 = vsel %vm2347, %v2315, %v1547
        %v2349 = vsel %vm2347, %v2316, %v1549
        %v2350 = vsel %vm2347, %v2317, %v1551
        %v2351 = vsel %vm2347, %v2318, %v1553
        %v2352 = vsel %vm2347, %v2319, %v1555
        %v2353 = vsel %vm2347, %v2320, %v1557
        %v2354 = vsel %vm2347, %v2321, %v1559
        %v2355 = vsel %vm2347, %v2322, %v1561
        %v2356 = vsel %vm2347, %v2323, %v1563
        %v2357 = vsel %vm2347, %v2324, %v1565
        %v2358 = vsel %vm2347, %v2325, %v1567
        %v2359 = vsel %vm2347, %v2326, %v1569
        %v2360 = vsel %vm2347, %v2327, %v1571
        %v2361 = vsel %vm2347, %v2328, %v1573
        %v2362 = vsel %vm2347, %v2329, %v1575
        %v2363 = vsel %vm2347, %v2330, %v1577
        %v2364 = vsel %vm2347, %v2331, %v1579
        %v2365 = vsel %vm2347, %v2332, %v1581
        %v2366 = vsel %vm2347, %v2333, %v1583
        %v2367 = vsel %vm2347, %v2334, %v1585
        %v2368 = vsel %vm2347, %v2335, %v1587
        %v2369 = vsel %vm2347, %v2336, %v1589
        %v2370 = vsel %vm2347, %v2337, %v1591
        %v2371 = vsel %vm2347, %v2338, %v1593
        %v2372 = vsel %vm2347, %v2339, %v1595
        %v2373 = vsel %vm2347, %v2340, %v1597
        %v2374 = vsel %vm2347, %v2341, %v1599
        %v2375 = vsel %vm2347, %v2342, %v1601
        %v2376 = vsel %vm2347, %v2343, %v1603
        %v2377 = vsel %vm2347, %v2344, %v1605
        %v2378 = vsel %vm2347, %v2345, %v1607
        %v2379 = vsel %vm2347, %v2346, %v1609
        %vm2380 = vcmask 261120
        %v2381 = vsel %vm2380, %v2348, %v1675
        %v2382 = vsel %vm2380, %v2349, %v1677
        %v2383 = vsel %vm2380, %v2350, %v1679
        %v2384 = vsel %vm2380, %v2351, %v1681
        %v2385 = vsel %vm2380, %v2352, %v1683
        %v2386 = vsel %vm2380, %v2353, %v1685
        %v2387 = vsel %vm2380, %v2354, %v1687
        %v2388 = vsel %vm2380, %v2355, %v1689
        %v2389 = vsel %vm2380, %v2356, %v1691
        %v2390 = vsel %vm2380, %v2357, %v1693
        %v2391 = vsel %vm2380, %v2358, %v1695
        %v2392 = vsel %vm2380, %v2359, %v1697
        %v2393 = vsel %vm2380, %v2360, %v1699
        %v2394 = vsel %vm2380, %v2361, %v1701
        %v2395 = vsel %vm2380, %v2362, %v1703
        %v2396 = vsel %vm2380, %v2363, %v1705
        %v2397 = vsel %vm2380, %v2364, %v1707
        %v2398 = vsel %vm2380, %v2365, %v1709
        %v2399 = vsel %vm2380, %v2366, %v1711
        %v2400 = vsel %vm2380, %v2367, %v1713
        %v2401 = vsel %vm2380, %v2368, %v1715
        %v2402 = vsel %vm2380, %v2369, %v1717
        %v2403 = vsel %vm2380, %v2370, %v1719
        %v2404 = vsel %vm2380, %v2371, %v1721
        %v2405 = vsel %vm2380, %v2372, %v1723
        %v2406 = vsel %vm2380, %v2373, %v1725
        %v2407 = vsel %vm2380, %v2374, %v1727
        %v2408 = vsel %vm2380, %v2375, %v1729
        %v2409 = vsel %vm2380, %v2376, %v1731
        %v2410 = vsel %vm2380, %v2377, %v1733
        %v2411 = vsel %vm2380, %v2378, %v1735
        %v2412 = vsel %vm2380, %v2379, %v1737
        %vm2413 = vcmask 326656
        %v2414 = vsel %vm2413, %v2381, %v1803
        %v2415 = vsel %vm2413, %v2382, %v1805
        %v2416 = vsel %vm2413, %v2383, %v1807
        %v2417 = vsel %vm2413, %v2384, %v1809
        %v2418 = vsel %vm2413, %v2385, %v1811
        %v2419 = vsel %vm2413, %v2386, %v1813
        %v2420 = vsel %vm2413, %v2387, %v1815
        %v2421 = vsel %vm2413, %v2388, %v1817
        %v2422 = vsel %vm2413, %v2389, %v1819
        %v2423 = vsel %vm2413, %v2390, %v1821
        %v2424 = vsel %vm2413, %v2391, %v1823
        %v2425 = vsel %vm2413, %v2392, %v1825
        %v2426 = vsel %vm2413, %v2393, %v1827
        %v2427 = vsel %vm2413, %v2394, %v1829
        %v2428 = vsel %vm2413, %v2395, %v1831
        %v2429 = vsel %vm2413, %v2396, %v1833
        %v2430 = vsel %vm2413, %v2397, %v1835
        %v2431 = vsel %vm2413, %v2398, %v1837
        %v2432 = vsel %vm2413, %v2399, %v1839
        %v2433 = vsel %vm2413, %v2400, %v1841
        %v2434 = vsel %vm2413, %v2401, %v1843
        %v2435 = vsel %vm2413, %v2402, %v1845
        %v2436 = vsel %vm2413, %v2403, %v1847
        %v2437 = vsel %vm2413, %v2404, %v1849
        %v2438 = vsel %vm2413, %v2405, %v1851
        %v2439 = vsel %vm2413, %v2406, %v1853
        %v2440 = vsel %vm2413, %v2407, %v1855
        %v2441 = vsel %vm2413, %v2408, %v1857
        %v2442 = vsel %vm2413, %v2409, %v1859
        %v2443 = vsel %vm2413, %v2410, %v1861
        %v2444 = vsel %vm2413, %v2411, %v1863
        %v2445 = vsel %vm2413, %v2412, %v1865
        %vm2446 = vcmask 392192
        %v2447 = vsel %vm2446, %v2414, %v1931
        %v2448 = vsel %vm2446, %v2415, %v1933
        %v2449 = vsel %vm2446, %v2416, %v1935
        %v2450 = vsel %vm2446, %v2417, %v1937
        %v2451 = vsel %vm2446, %v2418, %v1939
        %v2452 = vsel %vm2446, %v2419, %v1941
        %v2453 = vsel %vm2446, %v2420, %v1943
        %v2454 = vsel %vm2446, %v2421, %v1945
        %v2455 = vsel %vm2446, %v2422, %v1947
        %v2456 = vsel %vm2446, %v2423, %v1949
        %v2457 = vsel %vm2446, %v2424, %v1951
        %v2458 = vsel %vm2446, %v2425, %v1953
        %v2459 = vsel %vm2446, %v2426, %v1955
        %v2460 = vsel %vm2446, %v2427, %v1957
        %v2461 = vsel %vm2446, %v2428, %v1959
        %v2462 = vsel %vm2446, %v2429, %v1961
        %v2463 = vsel %vm2446, %v2430, %v1963
        %v2464 = vsel %vm2446, %v2431, %v1965
        %v2465 = vsel %vm2446, %v2432, %v1967
        %v2466 = vsel %vm2446, %v2433, %v1969
        %v2467 = vsel %vm2446, %v2434, %v1971
        %v2468 = vsel %vm2446, %v2435, %v1973
        %v2469 = vsel %vm2446, %v2436, %v1975
        %v2470 = vsel %vm2446, %v2437, %v1977
        %v2471 = vsel %vm2446, %v2438, %v1979
        %v2472 = vsel %vm2446, %v2439, %v1981
        %v2473 = vsel %vm2446, %v2440, %v1983
        %v2474 = vsel %vm2446, %v2441, %v1985
        %v2475 = vsel %vm2446, %v2442, %v1987
        %v2476 = vsel %vm2446, %v2443, %v1989
        %v2477 = vsel %vm2446, %v2444, %v1991
        %v2478 = vsel %vm2446, %v2445, %v1993
        %vm2479 = vcmask 457728
        %v2480 = vsel %vm2479, %v2447, %v2059
        %v2481 = vsel %vm2479, %v2448, %v2061
        %v2482 = vsel %vm2479, %v2449, %v2063
        %v2483 = vsel %vm2479, %v2450, %v2065
        %v2484 = vsel %vm2479, %v2451, %v2067
        %v2485 = vsel %vm2479, %v2452, %v2069
        %v2486 = vsel %vm2479, %v2453, %v2071
        %v2487 = vsel %vm2479, %v2454, %v2073
        %v2488 = vsel %vm2479, %v2455, %v2075
        %v2489 = vsel %vm2479, %v2456, %v2077
        %v2490 = vsel %vm2479, %v2457, %v2079
        %v2491 = vsel %vm2479, %v2458, %v2081
        %v2492 = vsel %vm2479, %v2459, %v2083
        %v2493 = vsel %vm2479, %v2460, %v2085
        %v2494 = vsel %vm2479, %v2461, %v2087
        %v2495 = vsel %vm2479, %v2462, %v2089
        %v2496 = vsel %vm2479, %v2463, %v2091
        %v2497 = vsel %vm2479, %v2464, %v2093
        %v2498 = vsel %vm2479, %v2465, %v2095
        %v2499 = vsel %vm2479, %v2466, %v2097
        %v2500 = vsel %vm2479, %v2467, %v2099
        %v2501 = vsel %vm2479, %v2468, %v2101
        %v2502 = vsel %vm2479, %v2469, %v2103
        %v2503 = vsel %vm2479, %v2470, %v2105
        %v2504 = vsel %vm2479, %v2471, %v2107
        %v2505 = vsel %vm2479, %v2472, %v2109
        %v2506 = vsel %vm2479, %v2473, %v2111
        %v2507 = vsel %vm2479, %v2474, %v2113
        %v2508 = vsel %vm2479, %v2475, %v2115
        %v2509 = vsel %vm2479, %v2476, %v2117
        %v2510 = vsel %vm2479, %v2477, %v2119
        %v2511 = vsel %vm2479, %v2478, %v2121
        %vm2512 = vcmask 523264
        %v2513 = vsel %vm2512, %v2480, %v2187
        %v2514 = vsel %vm2512, %v2481, %v2189
        %v2515 = vsel %vm2512, %v2482, %v2191
        %v2516 = vsel %vm2512, %v2483, %v2193
        %v2517 = vsel %vm2512, %v2484, %v2195
        %v2518 = vsel %vm2512, %v2485, %v2197
        %v2519 = vsel %vm2512, %v2486, %v2199
        %v2520 = vsel %vm2512, %v2487, %v2201
        %v2521 = vsel %vm2512, %v2488, %v2203
        %v2522 = vsel %vm2512, %v2489, %v2205
        %v2523 = vsel %vm2512, %v2490, %v2207
        %v2524 = vsel %vm2512, %v2491, %v2209
        %v2525 = vsel %vm2512, %v2492, %v2211
        %v2526 = vsel %vm2512, %v2493, %v2213
        %v2527 = vsel %vm2512, %v2494, %v2215
        %v2528 = vsel %vm2512, %v2495, %v2217
        %v2529 = vsel %vm2512, %v2496, %v2219
        %v2530 = vsel %vm2512, %v2497, %v2221
        %v2531 = vsel %vm2512, %v2498, %v2223
        %v2532 = vsel %vm2512, %v2499, %v2225
        %v2533 = vsel %vm2512, %v2500, %v2227
        %v2534 = vsel %vm2512, %v2501, %v2229
        %v2535 = vsel %vm2512, %v2502, %v2231
        %v2536 = vsel %vm2512, %v2503, %v2233
        %v2537 = vsel %vm2512, %v2504, %v2235
        %v2538 = vsel %vm2512, %v2505, %v2237
        %v2539 = vsel %vm2512, %v2506, %v2239
        %v2540 = vsel %vm2512, %v2507, %v2241
        %v2541 = vsel %vm2512, %v2508, %v2243
        %v2542 = vsel %vm2512, %v2509, %v2245
        %v2543 = vsel %vm2512, %v2510, %v2247
        %v2544 = vsel %vm2512, %v2511, %v2249
        %v2545 = vld [vmem:[%s4] sm:$0xf]
        %v2546 = vld [vmem:[%s4 + $0x4] sm:$0xf]
        %v2547 = vld [vmem:[%s4 + $0x8] sm:$0xf]
        %v2548 = vld [vmem:[%s4 + $0xc] sm:$0xf]
        %v2549 = vld [vmem:[%s4 + $0x10] sm:$0xf]
        %v2550 = vld [vmem:[%s4 + $0x14] sm:$0xf]
        %v2551 = vld [vmem:[%s4 + $0x18] sm:$0xf]
        %v2552 = vld [vmem:[%s4 + $0x1c] sm:$0xf]
        %v2553 = vld [vmem:[%s4 + $0x20] sm:$0xf]
        %v2554 = vpack.c.bf16 %v2514, %v2513
        %v2555 = vpack.c.bf16 %v2516, %v2515
        %v2556 = vpack.c.bf16 %v2518, %v2517
        %v2557 = vpack.c.bf16 %v2520, %v2519
        %v2558 = vpack.c.bf16 %v2522, %v2521
        %v2559 = vpack.c.bf16 %v2524, %v2523
        %v2560 = vpack.c.bf16 %v2526, %v2525
        %v2561 = vpack.c.bf16 %v2528, %v2527
        %v2562 = vpack.c.bf16 %v2530, %v2529
        %v2563 = vpack.c.bf16 %v2532, %v2531
        %v2564 = vpack.c.bf16 %v2534, %v2533
        %v2565 = vpack.c.bf16 %v2536, %v2535
        %v2566 = vpack.c.bf16 %v2538, %v2537
        %v2567 = vpack.c.bf16 %v2540, %v2539
        %v2568 = vpack.c.bf16 %v2542, %v2541
        %v2569 = vpack.c.bf16 %v2544, %v2543
        %v2579 = vunpack.c.l.b16 %v2545
        %v2580 = vunpack.c.l.b16 %v2546
        %v2581 = vunpack.c.l.b16 %v2547
        %v2582 = vunpack.c.l.b16 %v2548
        %v2583 = vunpack.c.l.b16 %v2549
        %v2584 = vunpack.c.l.b16 %v2550
        %v2585 = vunpack.c.l.b16 %v2551
        %v2586 = vunpack.c.l.b16 %v2552
        %v2587 = vunpack.c.l.b16 %v2553
        %v2588 = vpack.c.b16 %v2580, %v2579
        %v2589 = vpack.c.b16 %v2582, %v2581
        %v2590 = vpack.c.b16 %v2584, %v2583
        %v2591 = vpack.c.b16 %v2586, %v2585
        %v2592 = vpack.c.b16 %v2587, %v2587
        %vm2597 = vcmask 588800
        %v2599 = vsel %vm2597, %v2554, 0
        %v2602 = vsel %vm2597, %v2555, 0
        %v2605 = vsel %vm2597, %v2556, 0
        %v2608 = vsel %vm2597, %v2557, 0
        %v2611 = vsel %vm2597, %v2558, 0
        %v2614 = vsel %vm2597, %v2559, 0
        %v2617 = vsel %vm2597, %v2560, 0
        %v2620 = vsel %vm2597, %v2561, 0
        %v2623 = vsel %vm2597, %v2562, 0
        %v2626 = vsel %vm2597, %v2563, 0
        %v2629 = vsel %vm2597, %v2564, 0
        %v2632 = vsel %vm2597, %v2565, 0
        %v2635 = vsel %vm2597, %v2566, 0
        %v2638 = vsel %vm2597, %v2567, 0
        %v2641 = vsel %vm2597, %v2568, 0
        %v2644 = vsel %vm2597, %v2569, 0
        %vm2646 = vcmask 1043456
        %v2648 = vsel %vm2646, %v2592, 0
        %2650 = vmatprep.subr.bf16.mxu0 0
        %2651 = vmatpush1.bf16.msra.mxu0 %v2588
        %2652 = vmatprep.subr.bf16.mxu0 0
        %2653 = vmatpush1.bf16.msra.mxu0 %v2589
        %2654 = vmatprep.subr.bf16.mxu0 0
        %2655 = vmatpush1.bf16.msra.mxu0 %v2590
        %2656 = vmatprep.subr.bf16.mxu0 0
        %2657 = vmatpush1.bf16.msra.mxu0 %v2591
        %2658 = vmatprep.subr.bf16.mxu0 0
        %2659 = vmatpush1.bf16.msra.mxu0 %v2648
        %2660 = vmatprep.subr.bf16.mxu0 0
        %2661 = vmatpush1.bf16.msra.mxu0 0
        %2662 = vmatprep.subr.bf16.mxu0 0
        %2663 = vmatpush1.bf16.msra.mxu0 0
        %2664 = vmatprep.subr.bf16.mxu0 0
        %2665 = vmatpush1.bf16.msra.mxu0 0
        %2666 = vmatprep.subr.bf16.mxu0 0
        %2667 = vmatpush1.bf16.msra.mxu0 0
        %2668 = vmatprep.subr.bf16.mxu0 0
        %2669 = vmatpush1.bf16.msra.mxu0 0
        %2670 = vmatprep.subr.bf16.mxu0 0
        %2671 = vmatpush1.bf16.msra.mxu0 0
        %2672 = vmatprep.subr.bf16.mxu0 0
        %2673 = vmatpush1.bf16.msra.mxu0 0
        %2674 = vmatprep.subr.bf16.mxu0 0
        %2675 = vmatpush1.bf16.msra.mxu0 0
        %2676 = vmatprep.subr.bf16.mxu0 0
        %2677 = vmatpush1.bf16.msra.mxu0 0
        %2678 = vmatprep.subr.bf16.mxu0 0
        %2679 = vmatpush1.bf16.msra.mxu0 0
        %2680 = vmatprep.subr.bf16.mxu0 0
        %2681 = vmatpush1.bf16.msra.mxu0 0
        %2682 = vmatprep.mubr.bf16.mxu0 0
        %2683 = vmatmul.mubr.bf16.gmra.mrb[0].mxu0 %v2599
        %v2684 = vpop.f32.mrb[0].mxu0
        %v2685 = vadd.f32 0.0, %v2684
        %v2686 = vpop.f32.mrb[0].mxu0
        %v2687 = vpop.f32.mrb[0].mxu0
        %v2688 = vadd.f32 0.0, %v2687
        %v2689 = vpop.f32.mrb[0].mxu0
        %2690 = vmatprep.mubr.bf16.mxu0 0
        %2691 = vmatmul.mubr.bf16.gmra.mrb[0].mxu0 %v2602
        %v2692 = vpop.f32.mrb[0].mxu0
        %v2693 = vadd.f32 0.0, %v2692
        %v2694 = vpop.f32.mrb[0].mxu0
        %v2695 = vpop.f32.mrb[0].mxu0
        %v2696 = vadd.f32 0.0, %v2695
        %v2697 = vpop.f32.mrb[0].mxu0
        %2698 = vmatprep.mubr.bf16.mxu0 0
        %2699 = vmatmul.mubr.bf16.gmra.mrb[0].mxu0 %v2605
        %v2700 = vpop.f32.mrb[0].mxu0
        %v2701 = vadd.f32 0.0, %v2700
        %v2702 = vpop.f32.mrb[0].mxu0
        %v2703 = vpop.f32.mrb[0].mxu0
        %v2704 = vadd.f32 0.0, %v2703
        %v2705 = vpop.f32.mrb[0].mxu0
        %2706 = vmatprep.mubr.bf16.mxu0 0
        %2707 = vmatmul.mubr.bf16.gmra.mrb[0].mxu0 %v2608
        %v2708 = vpop.f32.mrb[0].mxu0
        %v2709 = vadd.f32 0.0, %v2708
        %v2710 = vpop.f32.mrb[0].mxu0
        %v2711 = vpop.f32.mrb[0].mxu0
        %v2712 = vadd.f32 0.0, %v2711
        %v2713 = vpop.f32.mrb[0].mxu0
        %2714 = vmatprep.mubr.bf16.mxu0 0
        %2715 = vmatmul.mubr.bf16.gmra.mrb[0].mxu0 %v2611
        %v2716 = vpop.f32.mrb[0].mxu0
        %v2717 = vadd.f32 0.0, %v2716
        %v2718 = vpop.f32.mrb[0].mxu0
        %v2719 = vpop.f32.mrb[0].mxu0
        %v2720 = vadd.f32 0.0, %v2719
        %v2721 = vpop.f32.mrb[0].mxu0
        %2722 = vmatprep.mubr.bf16.mxu0 0
        %2723 = vmatmul.mubr.bf16.gmra.mrb[0].mxu0 %v2614
        %v2724 = vpop.f32.mrb[0].mxu0
        %v2725 = vadd.f32 0.0, %v2724
        %v2726 = vpop.f32.mrb[0].mxu0
        %v2727 = vpop.f32.mrb[0].mxu0
        %v2728 = vadd.f32 0.0, %v2727
        %v2729 = vpop.f32.mrb[0].mxu0
        %2730 = vmatprep.mubr.bf16.mxu0 0
        %2731 = vmatmul.mubr.bf16.gmra.mrb[0].mxu0 %v2617
        %v2732 = vpop.f32.mrb[0].mxu0
        %v2733 = vadd.f32 0.0, %v2732
        %v2734 = vpop.f32.mrb[0].mxu0
        %v2735 = vpop.f32.mrb[0].mxu0
        %v2736 = vadd.f32 0.0, %v2735
        %v2737 = vpop.f32.mrb[0].mxu0
        %2738 = vmatprep.mubr.bf16.mxu0 0
        %2739 = vmatmul.mubr.bf16.gmra.mrb[0].mxu0 %v2620
        %v2740 = vpop.f32.mrb[0].mxu0
        %v2741 = vadd.f32 0.0, %v2740
        %v2742 = vpop.f32.mrb[0].mxu0
        %v2743 = vpop.f32.mrb[0].mxu0
        %v2744 = vadd.f32 0.0, %v2743
        %v2745 = vpop.f32.mrb[0].mxu0
        %2746 = vmatprep.mubr.bf16.mxu0 0
        %2747 = vmatmul.mubr.bf16.gmra.mrb[0].mxu0 %v2623
        %v2748 = vpop.f32.mrb[0].mxu0
        %v2749 = vadd.f32 0.0, %v2748
        %v2750 = vpop.f32.mrb[0].mxu0
        %v2751 = vpop.f32.mrb[0].mxu0
        %v2752 = vadd.f32 0.0, %v2751
        %v2753 = vpop.f32.mrb[0].mxu0
        %2754 = vmatprep.mubr.bf16.mxu0 0
        %2755 = vmatmul.mubr.bf16.gmra.mrb[0].mxu0 %v2626
        %v2756 = vpop.f32.mrb[0].mxu0
        %v2757 = vadd.f32 0.0, %v2756
        %v2758 = vpop.f32.mrb[0].mxu0
        %v2759 = vpop.f32.mrb[0].mxu0
        %v2760 = vadd.f32 0.0, %v2759
        %v2761 = vpop.f32.mrb[0].mxu0
        %2762 = vmatprep.mubr.bf16.mxu0 0
        %2763 = vmatmul.mubr.bf16.gmra.mrb[0].mxu0 %v2629
        %v2764 = vpop.f32.mrb[0].mxu0
        %v2765 = vadd.f32 0.0, %v2764
        %v2766 = vpop.f32.mrb[0].mxu0
        %v2767 = vpop.f32.mrb[0].mxu0
        %v2768 = vadd.f32 0.0, %v2767
        %v2769 = vpop.f32.mrb[0].mxu0
        %2770 = vmatprep.mubr.bf16.mxu0 0
        %2771 = vmatmul.mubr.bf16.gmra.mrb[0].mxu0 %v2632
        %v2772 = vpop.f32.mrb[0].mxu0
        %v2773 = vadd.f32 0.0, %v2772
        %v2774 = vpop.f32.mrb[0].mxu0
        %v2775 = vpop.f32.mrb[0].mxu0
        %v2776 = vadd.f32 0.0, %v2775
        %v2777 = vpop.f32.mrb[0].mxu0
        %2778 = vmatprep.mubr.bf16.mxu0 0
        %2779 = vmatmul.mubr.bf16.gmra.mrb[0].mxu0 %v2635
        %v2780 = vpop.f32.mrb[0].mxu0
        %v2781 = vadd.f32 0.0, %v2780
        %v2782 = vpop.f32.mrb[0].mxu0
        %v2783 = vpop.f32.mrb[0].mxu0
        %v2784 = vadd.f32 0.0, %v2783
        %v2785 = vpop.f32.mrb[0].mxu0
        %2786 = vmatprep.mubr.bf16.mxu0 0
        %2787 = vmatmul.mubr.bf16.gmra.mrb[0].mxu0 %v2638
        %v2788 = vpop.f32.mrb[0].mxu0
        %v2789 = vadd.f32 0.0, %v2788
        %v2790 = vpop.f32.mrb[0].mxu0
        %v2791 = vpop.f32.mrb[0].mxu0
        %v2792 = vadd.f32 0.0, %v2791
        %v2793 = vpop.f32.mrb[0].mxu0
        %2794 = vmatprep.mubr.bf16.mxu0 0
        %2795 = vmatmul.mubr.bf16.gmra.mrb[0].mxu0 %v2641
        %v2796 = vpop.f32.mrb[0].mxu0
        %v2797 = vadd.f32 0.0, %v2796
        %v2798 = vpop.f32.mrb[0].mxu0
        %v2799 = vpop.f32.mrb[0].mxu0
        %v2800 = vadd.f32 0.0, %v2799
        %v2801 = vpop.f32.mrb[0].mxu0
        %2802 = vmatprep.mubr.bf16.mxu0 0
        %2803 = vmatmul.mubr.bf16.gmra.mrb[0].mxu0 %v2644
        %v2804 = vpop.f32.mrb[0].mxu0
        %v2805 = vadd.f32 0.0, %v2804
        %v2806 = vpop.f32.mrb[0].mxu0
        %v2807 = vpop.f32.mrb[0].mxu0
        %v2808 = vadd.f32 0.0, %v2807
        %v2809 = vpop.f32.mrb[0].mxu0
        %2810 = vdwg.mxu0
        %v2811 = vmul.f32 %v2685, 0.1
        %v2812 = vmul.f32 %v2688, 0.1
        %v2813 = vmul.f32 %v2693, 0.1
        %v2814 = vmul.f32 %v2696, 0.1
        %v2815 = vmul.f32 %v2701, 0.1
        %v2816 = vmul.f32 %v2704, 0.1
        %v2817 = vmul.f32 %v2709, 0.1
        %v2818 = vmul.f32 %v2712, 0.1
        %v2819 = vmul.f32 %v2717, 0.1
        %v2820 = vmul.f32 %v2720, 0.1
        %v2821 = vmul.f32 %v2725, 0.1
        %v2822 = vmul.f32 %v2728, 0.1
        %v2823 = vmul.f32 %v2733, 0.1
        %v2824 = vmul.f32 %v2736, 0.1
        %v2825 = vmul.f32 %v2741, 0.1
        %v2826 = vmul.f32 %v2744, 0.1
        %v2827 = vmul.f32 %v2749, 0.1
        %v2828 = vmul.f32 %v2752, 0.1
        %v2829 = vmul.f32 %v2757, 0.1
        %v2830 = vmul.f32 %v2760, 0.1
        %v2831 = vmul.f32 %v2765, 0.1
        %v2832 = vmul.f32 %v2768, 0.1
        %v2833 = vmul.f32 %v2773, 0.1
        %v2834 = vmul.f32 %v2776, 0.1
        %v2835 = vmul.f32 %v2781, 0.1
        %v2836 = vmul.f32 %v2784, 0.1
        %v2837 = vmul.f32 %v2789, 0.1
        %v2838 = vmul.f32 %v2792, 0.1
        %v2839 = vmul.f32 %v2797, 0.1
        %v2840 = vmul.f32 %v2800, 0.1
        %v2841 = vmul.f32 %v2805, 0.1
        %v2842 = vmul.f32 %v2808, 0.1
        %v2843 = vmax.f32 %v2685, %v2811
        %v2844 = vmax.f32 %v2688, %v2812
        %v2845 = vmax.f32 %v2693, %v2813
        %v2846 = vmax.f32 %v2696, %v2814
        %v2847 = vmax.f32 %v2701, %v2815
        %v2848 = vmax.f32 %v2704, %v2816
        %v2849 = vmax.f32 %v2709, %v2817
        %v2850 = vmax.f32 %v2712, %v2818
        %v2851 = vmax.f32 %v2717, %v2819
        %v2852 = vmax.f32 %v2720, %v2820
        %v2853 = vmax.f32 %v2725, %v2821
        %v2854 = vmax.f32 %v2728, %v2822
        %v2855 = vmax.f32 %v2733, %v2823
        %v2856 = vmax.f32 %v2736, %v2824
        %v2857 = vmax.f32 %v2741, %v2825
        %v2858 = vmax.f32 %v2744, %v2826
        %v2859 = vmax.f32 %v2749, %v2827
        %v2860 = vmax.f32 %v2752, %v2828
        %v2861 = vmax.f32 %v2757, %v2829
        %v2862 = vmax.f32 %v2760, %v2830
        %v2863 = vmax.f32 %v2765, %v2831
        %v2864 = vmax.f32 %v2768, %v2832
        %v2865 = vmax.f32 %v2773, %v2833
        %v2866 = vmax.f32 %v2776, %v2834
        %v2867 = vmax.f32 %v2781, %v2835
        %v2868 = vmax.f32 %v2784, %v2836
        %v2869 = vmax.f32 %v2789, %v2837
        %v2870 = vmax.f32 %v2792, %v2838
        %v2871 = vmax.f32 %v2797, %v2839
        %v2872 = vmax.f32 %v2800, %v2840
        %v2873 = vmax.f32 %v2805, %v2841
        %v2874 = vmax.f32 %v2808, %v2842
        %v2875 = vld [vmem:[%s5] sm:$0xf]
        %v2876 = vpack.c.bf16 %v2844, %v2843
        %v2877 = vpack.c.bf16 %v2846, %v2845
        %v2878 = vpack.c.bf16 %v2848, %v2847
        %v2879 = vpack.c.bf16 %v2850, %v2849
        %v2880 = vpack.c.bf16 %v2852, %v2851
        %v2881 = vpack.c.bf16 %v2854, %v2853
        %v2882 = vpack.c.bf16 %v2856, %v2855
        %v2883 = vpack.c.bf16 %v2858, %v2857
        %v2884 = vpack.c.bf16 %v2860, %v2859
        %v2885 = vpack.c.bf16 %v2862, %v2861
        %v2886 = vpack.c.bf16 %v2864, %v2863
        %v2887 = vpack.c.bf16 %v2866, %v2865
        %v2888 = vpack.c.bf16 %v2868, %v2867
        %v2889 = vpack.c.bf16 %v2870, %v2869
        %v2890 = vpack.c.bf16 %v2872, %v2871
        %v2891 = vpack.c.bf16 %v2874, %v2873
        %v2893 = vsel %vm801, %v2876, 0
        %v2896 = vsel %vm801, %v2877, 0
        %v2899 = vsel %vm801, %v2878, 0
        %v2902 = vsel %vm801, %v2879, 0
        %v2905 = vsel %vm801, %v2880, 0
        %v2908 = vsel %vm801, %v2881, 0
        %v2911 = vsel %vm801, %v2882, 0
        %v2914 = vsel %vm801, %v2883, 0
        %v2917 = vsel %vm801, %v2884, 0
        %v2920 = vsel %vm801, %v2885, 0
        %v2923 = vsel %vm801, %v2886, 0
        %v2926 = vsel %vm801, %v2887, 0
        %v2929 = vsel %vm801, %v2888, 0
        %v2932 = vsel %vm801, %v2889, 0
        %v2935 = vsel %vm801, %v2890, 0
        %v2938 = vsel %vm801, %v2891, 0
        %v2941 = vsel %vm2646, %v2875, 0
        %2943 = vmatprep.subr.bf16.mxu0 0
        %2944 = vmatpush1.bf16.msra.mxu0 %v2941
        %2945 = vmatprep.subr.bf16.mxu0 0
        %2946 = vmatpush1.bf16.msra.mxu0 0
        %2947 = vmatprep.subr.bf16.mxu0 0
        %2948 = vmatpush1.bf16.msra.mxu0 0
        %2949 = vmatprep.subr.bf16.mxu0 0
        %2950 = vmatpush1.bf16.msra.mxu0 0
        %2951 = vmatprep.subr.bf16.mxu0 0
        %2952 = vmatpush1.bf16.msra.mxu0 0
        %2953 = vmatprep.subr.bf16.mxu0 0
        %2954 = vmatpush1.bf16.msra.mxu0 0
        %2955 = vmatprep.subr.bf16.mxu0 0
        %2956 = vmatpush1.bf16.msra.mxu0 0
        %2957 = vmatprep.subr.bf16.mxu0 0
        %2958 = vmatpush1.bf16.msra.mxu0 0
        %2959 = vmatprep.subr.bf16.mxu0 0
        %2960 = vmatpush1.bf16.msra.mxu0 0
        %2961 = vmatprep.subr.bf16.mxu0 0
        %2962 = vmatpush1.bf16.msra.mxu0 0
        %2963 = vmatprep.subr.bf16.mxu0 0
        %2964 = vmatpush1.bf16.msra.mxu0 0
        %2965 = vmatprep.subr.bf16.mxu0 0
        %2966 = vmatpush1.bf16.msra.mxu0 0
        %2967 = vmatprep.subr.bf16.mxu0 0
        %2968 = vmatpush1.bf16.msra.mxu0 0
        %2969 = vmatprep.subr.bf16.mxu0 0
        %2970 = vmatpush1.bf16.msra.mxu0 0
        %2971 = vmatprep.subr.bf16.mxu0 0
        %2972 = vmatpush1.bf16.msra.mxu0 0
        %2973 = vmatprep.subr.bf16.mxu0 0
        %2974 = vmatpush1.bf16.msra.mxu0 0
        %2975 = vmatprep.mubr.bf16.mxu0 0
        %2976 = vmatmul.mubr.bf16.gmra.mrb[0].mxu0 %v2893
        %v2977 = vpop.f32.mrb[0].mxu0
        %v2978 = vadd.f32 0.0, %v2977
        %v2979 = vpop.f32.mrb[0].mxu0
        %v2980 = vpop.f32.mrb[0].mxu0
        %v2981 = vadd.f32 0.0, %v2980
        %v2982 = vpop.f32.mrb[0].mxu0
        %2983 = vmatprep.mubr.bf16.mxu0 0
        %2984 = vmatmul.mubr.bf16.gmra.mrb[0].mxu0 %v2896
        %v2985 = vpop.f32.mrb[0].mxu0
        %v2986 = vadd.f32 0.0, %v2985
        %v2987 = vpop.f32.mrb[0].mxu0
        %v2988 = vpop.f32.mrb[0].mxu0
        %v2989 = vadd.f32 0.0, %v2988
        %v2990 = vpop.f32.mrb[0].mxu0
        %2991 = vmatprep.mubr.bf16.mxu0 0
        %2992 = vmatmul.mubr.bf16.gmra.mrb[0].mxu0 %v2899
        %v2993 = vpop.f32.mrb[0].mxu0
        %v2994 = vadd.f32 0.0, %v2993
        %v2995 = vpop.f32.mrb[0].mxu0
        %v2996 = vpop.f32.mrb[0].mxu0
        %v2997 = vadd.f32 0.0, %v2996
        %v2998 = vpop.f32.mrb[0].mxu0
        %2999 = vmatprep.mubr.bf16.mxu0 0
        %3000 = vmatmul.mubr.bf16.gmra.mrb[0].mxu0 %v2902
        %v3001 = vpop.f32.mrb[0].mxu0
        %v3002 = vadd.f32 0.0, %v3001
        %v3003 = vpop.f32.mrb[0].mxu0
        %v3004 = vpop.f32.mrb[0].mxu0
        %v3005 = vadd.f32 0.0, %v3004
        %v3006 = vpop.f32.mrb[0].mxu0
        %3007 = vmatprep.mubr.bf16.mxu0 0
        %3008 = vmatmul.mubr.bf16.gmra.mrb[0].mxu0 %v2905
        %v3009 = vpop.f32.mrb[0].mxu0
        %v3010 = vadd.f32 0.0, %v3009
        %v3011 = vpop.f32.mrb[0].mxu0
        %v3012 = vpop.f32.mrb[0].mxu0
        %v3013 = vadd.f32 0.0, %v3012
        %v3014 = vpop.f32.mrb[0].mxu0
        %3015 = vmatprep.mubr.bf16.mxu0 0
        %3016 = vmatmul.mubr.bf16.gmra.mrb[0].mxu0 %v2908
        %v3017 = vpop.f32.mrb[0].mxu0
        %v3018 = vadd.f32 0.0, %v3017
        %v3019 = vpop.f32.mrb[0].mxu0
        %v3020 = vpop.f32.mrb[0].mxu0
        %v3021 = vadd.f32 0.0, %v3020
        %v3022 = vpop.f32.mrb[0].mxu0
        %3023 = vmatprep.mubr.bf16.mxu0 0
        %3024 = vmatmul.mubr.bf16.gmra.mrb[0].mxu0 %v2911
        %v3025 = vpop.f32.mrb[0].mxu0
        %v3026 = vadd.f32 0.0, %v3025
        %v3027 = vpop.f32.mrb[0].mxu0
        %v3028 = vpop.f32.mrb[0].mxu0
        %v3029 = vadd.f32 0.0, %v3028
        %v3030 = vpop.f32.mrb[0].mxu0
        %3031 = vmatprep.mubr.bf16.mxu0 0
        %3032 = vmatmul.mubr.bf16.gmra.mrb[0].mxu0 %v2914
        %v3033 = vpop.f32.mrb[0].mxu0
        %v3034 = vadd.f32 0.0, %v3033
        %v3035 = vpop.f32.mrb[0].mxu0
        %v3036 = vpop.f32.mrb[0].mxu0
        %v3037 = vadd.f32 0.0, %v3036
        %v3038 = vpop.f32.mrb[0].mxu0
        %3039 = vmatprep.mubr.bf16.mxu0 0
        %3040 = vmatmul.mubr.bf16.gmra.mrb[0].mxu0 %v2917
        %v3041 = vpop.f32.mrb[0].mxu0
        %v3042 = vadd.f32 0.0, %v3041
        %v3043 = vpop.f32.mrb[0].mxu0
        %v3044 = vpop.f32.mrb[0].mxu0
        %v3045 = vadd.f32 0.0, %v3044
        %v3046 = vpop.f32.mrb[0].mxu0
        %3047 = vmatprep.mubr.bf16.mxu0 0
        %3048 = vmatmul.mubr.bf16.gmra.mrb[0].mxu0 %v2920
        %v3049 = vpop.f32.mrb[0].mxu0
        %v3050 = vadd.f32 0.0, %v3049
        %v3051 = vpop.f32.mrb[0].mxu0
        %v3052 = vpop.f32.mrb[0].mxu0
        %v3053 = vadd.f32 0.0, %v3052
        %v3054 = vpop.f32.mrb[0].mxu0
        %3055 = vmatprep.mubr.bf16.mxu0 0
        %3056 = vmatmul.mubr.bf16.gmra.mrb[0].mxu0 %v2923
        %v3057 = vpop.f32.mrb[0].mxu0
        %v3058 = vadd.f32 0.0, %v3057
        %v3059 = vpop.f32.mrb[0].mxu0
        %v3060 = vpop.f32.mrb[0].mxu0
        %v3061 = vadd.f32 0.0, %v3060
        %v3062 = vpop.f32.mrb[0].mxu0
        %3063 = vmatprep.mubr.bf16.mxu0 0
        %3064 = vmatmul.mubr.bf16.gmra.mrb[0].mxu0 %v2926
        %v3065 = vpop.f32.mrb[0].mxu0
        %v3066 = vadd.f32 0.0, %v3065
        %v3067 = vpop.f32.mrb[0].mxu0
        %v3068 = vpop.f32.mrb[0].mxu0
        %v3069 = vadd.f32 0.0, %v3068
        %v3070 = vpop.f32.mrb[0].mxu0
        %3071 = vmatprep.mubr.bf16.mxu0 0
        %3072 = vmatmul.mubr.bf16.gmra.mrb[0].mxu0 %v2929
        %v3073 = vpop.f32.mrb[0].mxu0
        %v3074 = vadd.f32 0.0, %v3073
        %v3075 = vpop.f32.mrb[0].mxu0
        %v3076 = vpop.f32.mrb[0].mxu0
        %v3077 = vadd.f32 0.0, %v3076
        %v3078 = vpop.f32.mrb[0].mxu0
        %3079 = vmatprep.mubr.bf16.mxu0 0
        %3080 = vmatmul.mubr.bf16.gmra.mrb[0].mxu0 %v2932
        %v3081 = vpop.f32.mrb[0].mxu0
        %v3082 = vadd.f32 0.0, %v3081
        %v3083 = vpop.f32.mrb[0].mxu0
        %v3084 = vpop.f32.mrb[0].mxu0
        %v3085 = vadd.f32 0.0, %v3084
        %v3086 = vpop.f32.mrb[0].mxu0
        %3087 = vmatprep.mubr.bf16.mxu0 0
        %3088 = vmatmul.mubr.bf16.gmra.mrb[0].mxu0 %v2935
        %v3089 = vpop.f32.mrb[0].mxu0
        %v3090 = vadd.f32 0.0, %v3089
        %v3091 = vpop.f32.mrb[0].mxu0
        %v3092 = vpop.f32.mrb[0].mxu0
        %v3093 = vadd.f32 0.0, %v3092
        %v3094 = vpop.f32.mrb[0].mxu0
        %3095 = vmatprep.mubr.bf16.mxu0 0
        %3096 = vmatmul.mubr.bf16.gmra.mrb[0].mxu0 %v2938
        %v3097 = vpop.f32.mrb[0].mxu0
        %v3098 = vadd.f32 0.0, %v3097
        %v3099 = vpop.f32.mrb[0].mxu0
        %v3100 = vpop.f32.mrb[0].mxu0
        %v3101 = vadd.f32 0.0, %v3100
        %v3102 = vpop.f32.mrb[0].mxu0
        %3103 = vdwg.mxu0
        %v3104 = vmul.f32 %v2978, 0.1
        %v3105 = vmul.f32 %v2981, 0.1
        %v3106 = vmul.f32 %v2986, 0.1
        %v3107 = vmul.f32 %v2989, 0.1
        %v3108 = vmul.f32 %v2994, 0.1
        %v3109 = vmul.f32 %v2997, 0.1
        %v3110 = vmul.f32 %v3002, 0.1
        %v3111 = vmul.f32 %v3005, 0.1
        %v3112 = vmul.f32 %v3010, 0.1
        %v3113 = vmul.f32 %v3013, 0.1
        %v3114 = vmul.f32 %v3018, 0.1
        %v3115 = vmul.f32 %v3021, 0.1
        %v3116 = vmul.f32 %v3026, 0.1
        %v3117 = vmul.f32 %v3029, 0.1
        %v3118 = vmul.f32 %v3034, 0.1
        %v3119 = vmul.f32 %v3037, 0.1
        %v3120 = vmul.f32 %v3042, 0.1
        %v3121 = vmul.f32 %v3045, 0.1
        %v3122 = vmul.f32 %v3050, 0.1
        %v3123 = vmul.f32 %v3053, 0.1
        %v3124 = vmul.f32 %v3058, 0.1
        %v3125 = vmul.f32 %v3061, 0.1
        %v3126 = vmul.f32 %v3066, 0.1
        %v3127 = vmul.f32 %v3069, 0.1
        %v3128 = vmul.f32 %v3074, 0.1
        %v3129 = vmul.f32 %v3077, 0.1
        %v3130 = vmul.f32 %v3082, 0.1
        %v3131 = vmul.f32 %v3085, 0.1
        %v3132 = vmul.f32 %v3090, 0.1
        %v3133 = vmul.f32 %v3093, 0.1
        %v3134 = vmul.f32 %v3098, 0.1
        %v3135 = vmul.f32 %v3101, 0.1
        %v3136 = vmax.f32 %v2978, %v3104
        %v3137 = vmax.f32 %v2981, %v3105
        %v3138 = vmax.f32 %v2986, %v3106
        %v3139 = vmax.f32 %v2989, %v3107
        %v3140 = vmax.f32 %v2994, %v3108
        %v3141 = vmax.f32 %v2997, %v3109
        %v3142 = vmax.f32 %v3002, %v3110
        %v3143 = vmax.f32 %v3005, %v3111
        %v3144 = vmax.f32 %v3010, %v3112
        %v3145 = vmax.f32 %v3013, %v3113
        %v3146 = vmax.f32 %v3018, %v3114
        %v3147 = vmax.f32 %v3021, %v3115
        %v3148 = vmax.f32 %v3026, %v3116
        %v3149 = vmax.f32 %v3029, %v3117
        %v3150 = vmax.f32 %v3034, %v3118
        %v3151 = vmax.f32 %v3037, %v3119
        %v3152 = vmax.f32 %v3042, %v3120
        %v3153 = vmax.f32 %v3045, %v3121
        %v3154 = vmax.f32 %v3050, %v3122
        %v3155 = vmax.f32 %v3053, %v3123
        %v3156 = vmax.f32 %v3058, %v3124
        %v3157 = vmax.f32 %v3061, %v3125
        %v3158 = vmax.f32 %v3066, %v3126
        %v3159 = vmax.f32 %v3069, %v3127
        %v3160 = vmax.f32 %v3074, %v3128
        %v3161 = vmax.f32 %v3077, %v3129
        %v3162 = vmax.f32 %v3082, %v3130
        %v3163 = vmax.f32 %v3085, %v3131
        %v3164 = vmax.f32 %v3090, %v3132
        %v3165 = vmax.f32 %v3093, %v3133
        %v3166 = vmax.f32 %v3098, %v3134
        %v3167 = vmax.f32 %v3101, %v3135
        %v3168 = vld [vmem:[%s6] sm:$0x3]
        %v3170 = vsel %vm571, %v3168, 0
        %3172 = vmatprep.subr.bf16.mxu0 0
        %3173 = vmatpush1.bf16.msra.mxu0 %v3170
        %3174 = vmatprep.subr.bf16.mxu0 0
        %3175 = vmatpush1.bf16.msra.mxu0 0
        %3176 = vmatprep.subr.bf16.mxu0 0
        %3177 = vmatpush1.bf16.msra.mxu0 0
        %3178 = vmatprep.subr.bf16.mxu0 0
        %3179 = vmatpush1.bf16.msra.mxu0 0
        %3180 = vmatprep.subr.bf16.mxu0 0
        %3181 = vmatpush1.bf16.msra.mxu0 0
        %3182 = vmatprep.subr.bf16.mxu0 0
        %3183 = vmatpush1.bf16.msra.mxu0 0
        %3184 = vmatprep.subr.bf16.mxu0 0
        %3185 = vmatpush1.bf16.msra.mxu0 0
        %3186 = vmatprep.subr.bf16.mxu0 0
        %3187 = vmatpush1.bf16.msra.mxu0 0
        %3188 = vmatprep.subr.bf16.mxu0 0
        %3189 = vmatpush1.bf16.msra.mxu0 0
        %3190 = vmatprep.subr.bf16.mxu0 0
        %3191 = vmatpush1.bf16.msra.mxu0 0
        %3192 = vmatprep.subr.bf16.mxu0 0
        %3193 = vmatpush1.bf16.msra.mxu0 0
        %3194 = vmatprep.subr.bf16.mxu0 0
        %3195 = vmatpush1.bf16.msra.mxu0 0
        %3196 = vmatprep.subr.bf16.mxu0 0
        %3197 = vmatpush1.bf16.msra.mxu0 0
        %3198 = vmatprep.subr.bf16.mxu0 0
        %3199 = vmatpush1.bf16.msra.mxu0 0
        %3200 = vmatprep.subr.bf16.mxu0 0
        %3201 = vmatpush1.bf16.msra.mxu0 0
        %3202 = vmatprep.subr.bf16.mxu0 0
        %3203 = vmatpush1.bf16.msra.mxu0 0
        %3204 = vmatprep.mubr.bf16.mxu0 0
        %3205 = vmatmul.mubr.bf16.gmra.mrb[0].mxu0 %v524
        %v3206 = vpop.f32.mrb[0].mxu0
        %v3207 = vadd.f32 0.0, %v3206
        %v3208 = vpop.f32.mrb[0].mxu0
        %v3209 = vpop.f32.mrb[0].mxu0
        %v3210 = vadd.f32 0.0, %v3209
        %v3211 = vpop.f32.mrb[0].mxu0
        %3212 = vmatprep.mubr.bf16.mxu0 0
        %3213 = vmatmul.mubr.bf16.gmra.mrb[0].mxu0 %v527
        %v3214 = vpop.f32.mrb[0].mxu0
        %v3215 = vadd.f32 0.0, %v3214
        %v3216 = vpop.f32.mrb[0].mxu0
        %v3217 = vpop.f32.mrb[0].mxu0
        %v3218 = vadd.f32 0.0, %v3217
        %v3219 = vpop.f32.mrb[0].mxu0
        %3220 = vmatprep.mubr.bf16.mxu0 0
        %3221 = vmatmul.mubr.bf16.gmra.mrb[0].mxu0 %v530
        %v3222 = vpop.f32.mrb[0].mxu0
        %v3223 = vadd.f32 0.0, %v3222
        %v3224 = vpop.f32.mrb[0].mxu0
        %v3225 = vpop.f32.mrb[0].mxu0
        %v3226 = vadd.f32 0.0, %v3225
        %v3227 = vpop.f32.mrb[0].mxu0
        %3228 = vmatprep.mubr.bf16.mxu0 0
        %3229 = vmatmul.mubr.bf16.gmra.mrb[0].mxu0 %v533
        %v3230 = vpop.f32.mrb[0].mxu0
        %v3231 = vadd.f32 0.0, %v3230
        %v3232 = vpop.f32.mrb[0].mxu0
        %v3233 = vpop.f32.mrb[0].mxu0
        %v3234 = vadd.f32 0.0, %v3233
        %v3235 = vpop.f32.mrb[0].mxu0
        %3236 = vmatprep.mubr.bf16.mxu0 0
        %3237 = vmatmul.mubr.bf16.gmra.mrb[0].mxu0 %v536
        %v3238 = vpop.f32.mrb[0].mxu0
        %v3239 = vadd.f32 0.0, %v3238
        %v3240 = vpop.f32.mrb[0].mxu0
        %v3241 = vpop.f32.mrb[0].mxu0
        %v3242 = vadd.f32 0.0, %v3241
        %v3243 = vpop.f32.mrb[0].mxu0
        %3244 = vmatprep.mubr.bf16.mxu0 0
        %3245 = vmatmul.mubr.bf16.gmra.mrb[0].mxu0 %v539
        %v3246 = vpop.f32.mrb[0].mxu0
        %v3247 = vadd.f32 0.0, %v3246
        %v3248 = vpop.f32.mrb[0].mxu0
        %v3249 = vpop.f32.mrb[0].mxu0
        %v3250 = vadd.f32 0.0, %v3249
        %v3251 = vpop.f32.mrb[0].mxu0
        %3252 = vmatprep.mubr.bf16.mxu0 0
        %3253 = vmatmul.mubr.bf16.gmra.mrb[0].mxu0 %v542
        %v3254 = vpop.f32.mrb[0].mxu0
        %v3255 = vadd.f32 0.0, %v3254
        %v3256 = vpop.f32.mrb[0].mxu0
        %v3257 = vpop.f32.mrb[0].mxu0
        %v3258 = vadd.f32 0.0, %v3257
        %v3259 = vpop.f32.mrb[0].mxu0
        %3260 = vmatprep.mubr.bf16.mxu0 0
        %3261 = vmatmul.mubr.bf16.gmra.mrb[0].mxu0 %v545
        %v3262 = vpop.f32.mrb[0].mxu0
        %v3263 = vadd.f32 0.0, %v3262
        %v3264 = vpop.f32.mrb[0].mxu0
        %v3265 = vpop.f32.mrb[0].mxu0
        %v3266 = vadd.f32 0.0, %v3265
        %v3267 = vpop.f32.mrb[0].mxu0
        %3268 = vmatprep.mubr.bf16.mxu0 0
        %3269 = vmatmul.mubr.bf16.gmra.mrb[0].mxu0 %v548
        %v3270 = vpop.f32.mrb[0].mxu0
        %v3271 = vadd.f32 0.0, %v3270
        %v3272 = vpop.f32.mrb[0].mxu0
        %v3273 = vpop.f32.mrb[0].mxu0
        %v3274 = vadd.f32 0.0, %v3273
        %v3275 = vpop.f32.mrb[0].mxu0
        %3276 = vmatprep.mubr.bf16.mxu0 0
        %3277 = vmatmul.mubr.bf16.gmra.mrb[0].mxu0 %v551
        %v3278 = vpop.f32.mrb[0].mxu0
        %v3279 = vadd.f32 0.0, %v3278
        %v3280 = vpop.f32.mrb[0].mxu0
        %v3281 = vpop.f32.mrb[0].mxu0
        %v3282 = vadd.f32 0.0, %v3281
        %v3283 = vpop.f32.mrb[0].mxu0
        %3284 = vmatprep.mubr.bf16.mxu0 0
        %3285 = vmatmul.mubr.bf16.gmra.mrb[0].mxu0 %v554
        %v3286 = vpop.f32.mrb[0].mxu0
        %v3287 = vadd.f32 0.0, %v3286
        %v3288 = vpop.f32.mrb[0].mxu0
        %v3289 = vpop.f32.mrb[0].mxu0
        %v3290 = vadd.f32 0.0, %v3289
        %v3291 = vpop.f32.mrb[0].mxu0
        %3292 = vmatprep.mubr.bf16.mxu0 0
        %3293 = vmatmul.mubr.bf16.gmra.mrb[0].mxu0 %v557
        %v3294 = vpop.f32.mrb[0].mxu0
        %v3295 = vadd.f32 0.0, %v3294
        %v3296 = vpop.f32.mrb[0].mxu0
        %v3297 = vpop.f32.mrb[0].mxu0
        %v3298 = vadd.f32 0.0, %v3297
        %v3299 = vpop.f32.mrb[0].mxu0
        %3300 = vmatprep.mubr.bf16.mxu0 0
        %3301 = vmatmul.mubr.bf16.gmra.mrb[0].mxu0 %v560
        %v3302 = vpop.f32.mrb[0].mxu0
        %v3303 = vadd.f32 0.0, %v3302
        %v3304 = vpop.f32.mrb[0].mxu0
        %v3305 = vpop.f32.mrb[0].mxu0
        %v3306 = vadd.f32 0.0, %v3305
        %v3307 = vpop.f32.mrb[0].mxu0
        %3308 = vmatprep.mubr.bf16.mxu0 0
        %3309 = vmatmul.mubr.bf16.gmra.mrb[0].mxu0 %v563
        %v3310 = vpop.f32.mrb[0].mxu0
        %v3311 = vadd.f32 0.0, %v3310
        %v3312 = vpop.f32.mrb[0].mxu0
        %v3313 = vpop.f32.mrb[0].mxu0
        %v3314 = vadd.f32 0.0, %v3313
        %v3315 = vpop.f32.mrb[0].mxu0
        %3316 = vmatprep.mubr.bf16.mxu0 0
        %3317 = vmatmul.mubr.bf16.gmra.mrb[0].mxu0 %v566
        %v3318 = vpop.f32.mrb[0].mxu0
        %v3319 = vadd.f32 0.0, %v3318
        %v3320 = vpop.f32.mrb[0].mxu0
        %v3321 = vpop.f32.mrb[0].mxu0
        %v3322 = vadd.f32 0.0, %v3321
        %v3323 = vpop.f32.mrb[0].mxu0
        %3324 = vmatprep.mubr.bf16.mxu0 0
        %3325 = vmatmul.mubr.bf16.gmra.mrb[0].mxu0 %v569
        %v3326 = vpop.f32.mrb[0].mxu0
        %v3327 = vadd.f32 0.0, %v3326
        %v3328 = vpop.f32.mrb[0].mxu0
        %v3329 = vpop.f32.mrb[0].mxu0
        %v3330 = vadd.f32 0.0, %v3329
        %v3331 = vpop.f32.mrb[0].mxu0
        %3332 = vdwg.mxu0
        %v3333 = vadd.f32 %v3136, %v3207
        %v3334 = vadd.f32 %v3137, %v3210
        %v3335 = vadd.f32 %v3138, %v3215
        %v3336 = vadd.f32 %v3139, %v3218
        %v3337 = vadd.f32 %v3140, %v3223
        %v3338 = vadd.f32 %v3141, %v3226
        %v3339 = vadd.f32 %v3142, %v3231
        %v3340 = vadd.f32 %v3143, %v3234
        %v3341 = vadd.f32 %v3144, %v3239
        %v3342 = vadd.f32 %v3145, %v3242
        %v3343 = vadd.f32 %v3146, %v3247
        %v3344 = vadd.f32 %v3147, %v3250
        %v3345 = vadd.f32 %v3148, %v3255
        %v3346 = vadd.f32 %v3149, %v3258
        %v3347 = vadd.f32 %v3150, %v3263
        %v3348 = vadd.f32 %v3151, %v3266
        %v3349 = vadd.f32 %v3152, %v3271
        %v3350 = vadd.f32 %v3153, %v3274
        %v3351 = vadd.f32 %v3154, %v3279
        %v3352 = vadd.f32 %v3155, %v3282
        %v3353 = vadd.f32 %v3156, %v3287
        %v3354 = vadd.f32 %v3157, %v3290
        %v3355 = vadd.f32 %v3158, %v3295
        %v3356 = vadd.f32 %v3159, %v3298
        %v3357 = vadd.f32 %v3160, %v3303
        %v3358 = vadd.f32 %v3161, %v3306
        %v3359 = vadd.f32 %v3162, %v3311
        %v3360 = vadd.f32 %v3163, %v3314
        %v3361 = vadd.f32 %v3164, %v3319
        %v3362 = vadd.f32 %v3165, %v3322
        %v3363 = vadd.f32 %v3166, %v3327
        %v3364 = vadd.f32 %v3167, %v3330
        %v3365 = vmul.f32 %v3333, 0.1
        %v3366 = vmul.f32 %v3334, 0.1
        %v3367 = vmul.f32 %v3335, 0.1
        %v3368 = vmul.f32 %v3336, 0.1
        %v3369 = vmul.f32 %v3337, 0.1
        %v3370 = vmul.f32 %v3338, 0.1
        %v3371 = vmul.f32 %v3339, 0.1
        %v3372 = vmul.f32 %v3340, 0.1
        %v3373 = vmul.f32 %v3341, 0.1
        %v3374 = vmul.f32 %v3342, 0.1
        %v3375 = vmul.f32 %v3343, 0.1
        %v3376 = vmul.f32 %v3344, 0.1
        %v3377 = vmul.f32 %v3345, 0.1
        %v3378 = vmul.f32 %v3346, 0.1
        %v3379 = vmul.f32 %v3347, 0.1
        %v3380 = vmul.f32 %v3348, 0.1
        %v3381 = vmul.f32 %v3349, 0.1
        %v3382 = vmul.f32 %v3350, 0.1
        %v3383 = vmul.f32 %v3351, 0.1
        %v3384 = vmul.f32 %v3352, 0.1
        %v3385 = vmul.f32 %v3353, 0.1
        %v3386 = vmul.f32 %v3354, 0.1
        %v3387 = vmul.f32 %v3355, 0.1
        %v3388 = vmul.f32 %v3356, 0.1
        %v3389 = vmul.f32 %v3357, 0.1
        %v3390 = vmul.f32 %v3358, 0.1
        %v3391 = vmul.f32 %v3359, 0.1
        %v3392 = vmul.f32 %v3360, 0.1
        %v3393 = vmul.f32 %v3361, 0.1
        %v3394 = vmul.f32 %v3362, 0.1
        %v3395 = vmul.f32 %v3363, 0.1
        %v3396 = vmul.f32 %v3364, 0.1
        %v3397 = vmax.f32 %v3333, %v3365
        %v3398 = vmax.f32 %v3334, %v3366
        %v3399 = vmax.f32 %v3335, %v3367
        %v3400 = vmax.f32 %v3336, %v3368
        %v3401 = vmax.f32 %v3337, %v3369
        %v3402 = vmax.f32 %v3338, %v3370
        %v3403 = vmax.f32 %v3339, %v3371
        %v3404 = vmax.f32 %v3340, %v3372
        %v3405 = vmax.f32 %v3341, %v3373
        %v3406 = vmax.f32 %v3342, %v3374
        %v3407 = vmax.f32 %v3343, %v3375
        %v3408 = vmax.f32 %v3344, %v3376
        %v3409 = vmax.f32 %v3345, %v3377
        %v3410 = vmax.f32 %v3346, %v3378
        %v3411 = vmax.f32 %v3347, %v3379
        %v3412 = vmax.f32 %v3348, %v3380
        %v3413 = vmax.f32 %v3349, %v3381
        %v3414 = vmax.f32 %v3350, %v3382
        %v3415 = vmax.f32 %v3351, %v3383
        %v3416 = vmax.f32 %v3352, %v3384
        %v3417 = vmax.f32 %v3353, %v3385
        %v3418 = vmax.f32 %v3354, %v3386
        %v3419 = vmax.f32 %v3355, %v3387
        %v3420 = vmax.f32 %v3356, %v3388
        %v3421 = vmax.f32 %v3357, %v3389
        %v3422 = vmax.f32 %v3358, %v3390
        %v3423 = vmax.f32 %v3359, %v3391
        %v3424 = vmax.f32 %v3360, %v3392
        %v3425 = vmax.f32 %v3361, %v3393
        %v3426 = vmax.f32 %v3362, %v3394
        %v3427 = vmax.f32 %v3363, %v3395
        %v3428 = vmax.f32 %v3364, %v3396
        %3429 = vst.msk [vmem:[%s388] sm:$0xff] %vm2380, %v3397
        %3430 = vst.msk [vmem:[%s388 + $0x8] sm:$0xff] %vm2380, %v3398
        %3431 = vst.msk [vmem:[%s388 + $0x10] sm:$0xff] %vm2380, %v3399
        %3432 = vst.msk [vmem:[%s388 + $0x18] sm:$0xff] %vm2380, %v3400
        %3433 = vst.msk [vmem:[%s388 + $0x20] sm:$0xff] %vm2380, %v3401
        %3434 = vst.msk [vmem:[%s388 + $0x28] sm:$0xff] %vm2380, %v3402
        %3435 = vst.msk [vmem:[%s388 + $0x30] sm:$0xff] %vm2380, %v3403
        %3436 = vst.msk [vmem:[%s388 + $0x38] sm:$0xff] %vm2380, %v3404
        %3437 = vst.msk [vmem:[%s388 + $0x40] sm:$0xff] %vm2380, %v3405
        %3438 = vst.msk [vmem:[%s388 + $0x48] sm:$0xff] %vm2380, %v3406
        %3439 = vst.msk [vmem:[%s388 + $0x50] sm:$0xff] %vm2380, %v3407
        %3440 = vst.msk [vmem:[%s388 + $0x58] sm:$0xff] %vm2380, %v3408
        %3441 = vst.msk [vmem:[%s388 + $0x60] sm:$0xff] %vm2380, %v3409
        %3442 = vst.msk [vmem:[%s388 + $0x68] sm:$0xff] %vm2380, %v3410
        %3443 = vst.msk [vmem:[%s388 + $0x70] sm:$0xff] %vm2380, %v3411
        %3444 = vst.msk [vmem:[%s388 + $0x78] sm:$0xff] %vm2380, %v3412
        %3445 = vst.msk [vmem:[%s388 + $0x80] sm:$0xff] %vm2380, %v3413
        %3446 = vst.msk [vmem:[%s388 + $0x88] sm:$0xff] %vm2380, %v3414
        %3447 = vst.msk [vmem:[%s388 + $0x90] sm:$0xff] %vm2380, %v3415
        %3448 = vst.msk [vmem:[%s388 + $0x98] sm:$0xff] %vm2380, %v3416
        %3449 = vst.msk [vmem:[%s388 + $0xa0] sm:$0xff] %vm2380, %v3417
        %3450 = vst.msk [vmem:[%s388 + $0xa8] sm:$0xff] %vm2380, %v3418
        %3451 = vst.msk [vmem:[%s388 + $0xb0] sm:$0xff] %vm2380, %v3419
        %3452 = vst.msk [vmem:[%s388 + $0xb8] sm:$0xff] %vm2380, %v3420
        %3453 = vst.msk [vmem:[%s388 + $0xc0] sm:$0xff] %vm2380, %v3421
        %3454 = vst.msk [vmem:[%s388 + $0xc8] sm:$0xff] %vm2380, %v3422
        %3455 = vst.msk [vmem:[%s388 + $0xd0] sm:$0xff] %vm2380, %v3423
        %3456 = vst.msk [vmem:[%s388 + $0xd8] sm:$0xff] %vm2380, %v3424
        %3457 = vst.msk [vmem:[%s388 + $0xe0] sm:$0xff] %vm2380, %v3425
        %3458 = vst.msk [vmem:[%s388 + $0xe8] sm:$0xff] %vm2380, %v3426
        %3459 = vst.msk [vmem:[%s388 + $0xf0] sm:$0xff] %vm2380, %v3427
        %3460 = vst.msk [vmem:[%s388 + $0xf8] sm:$0xff] %vm2380, %v3428
        %s3461 = sand.u32 %s227, 1
        %s3462 = scalar_lea.sflag [#allocation4], %s3461
        %s3463 = sand.u32 %s227, 1
        %s3464 = smul.addr %s3463, 256
        %s3465 = scalar_lea.vmem [#allocation3], %s3464
        // Predicated region
        $region65: #{tpu_custom_call.1} parent=47 // pred_check
          %p3466 = pneg %p237
        $region66: #{tpu_custom_call.1} parent=47 // pred_check_branch
          %3468 = sbr.rel (%p3466) target = $region68
        $region67: #{tpu_custom_call.1} parent=47 // pred_region
          %s3469 = smul.u32 16, %s26
          %s3471 = ssub.s32 4096, 4096
          %3472 = vsyncadd %s3462, %s3471
          %s3473 = smul.addr %s3469, 2
          %s3474 = smul.addr %s25, 32
          %s3475 = sadd.s32 %s3473, %s3474
          %s3476 = smul.addr %s3475, 128
          %s3477 = scalar_lea.hbm %s7, %s3476
          %s3478 = sshll.u32 %s3465, 4
          %s3479 = int_to_ptr.vmem [resolvable:$true] %s3478
          %3484 = dma.vmem_to_hbm [thread:$0]  %s3479, 4096, %s3477, %s3462, 128, 128, 8
        $region68: #{tpu_custom_call.1} parent=47 // pred_fallthru
          _
      $region48: #{tpu_custom_call.1} parent=5 // pred_fallthru
        _
      %p3485 = scmp.le.s32.totalorder 2, %s16
      // Predicated region
      $region69: #{tpu_custom_call.1} parent=5 // pred_check
        %p3486 = pneg %p3485
      $region70: #{tpu_custom_call.1} parent=5 // pred_check_branch
        %3488 = sbr.rel (%p3486) target = $region72
      $region71: #{tpu_custom_call.1} parent=5 // pred_region
        %s3489 = ssub.s32 %s16, 2
        // Predicated region
        $region73: #{tpu_custom_call.1} parent=71 // pred_check
          %p3490 = pneg %p243
        $region74: #{tpu_custom_call.1} parent=71 // pred_check_branch
          %3492 = sbr.rel (%p3490) target = $region76
        $region75: #{tpu_custom_call.1} parent=71 // pred_region
          %s3493 = sand.u32 %s228, 1
          %s3494 = scalar_lea.sflag [#allocation4], %s3493
          %s3495 = sand.u32 %s228, 1
          %s3496 = smul.addr %s3495, 256
          %s3497 = scalar_lea.vmem [#allocation3], %s3496
          %3498 = dma.done %s3494, 4096
        $region76: #{tpu_custom_call.1} parent=71 // pred_fallthru
          _
      $region72: #{tpu_custom_call.1} parent=5 // pred_fallthru
        _
    $region6: #{tpu_custom_call.1} parent=1 // loop_footer
      %s20 = sadd.s32 1, %s16
    $region7: #{tpu_custom_call.1} parent=1 // loop_footer_branch
      %15 = sbr.rel target = $region3
    $region8: #{tpu_custom_call.1} parent=1 // loop_exit
      _
    %3499 = vsyncpa [#allocation4], 1
    %s3500 = scalar_lea.sflag [#allocation4], 1
    %3501 = vsyncpa %s3500, 1

</llo_original>
